<compile_context>
chip_gen: v7x
topology: tpu7x:2x2x1
jax: 0.10.0
libtpu: 0.0.40
codegen_flags: <defaults>
</compile_context>

<pallas_src>
import functools

import jax
import jax.numpy as jnp
from jax.experimental import pallas as pl
from jax.experimental.pallas import tpu as pltpu

EPS = 1e-5                       # nn.BatchNorm2d default eps
_LANE = 128                      # lane width / output-channel block size
_VMEM_LIMIT = 32 * 1024 * 1024   # explicit scoped-VMEM budget (safe on v7x)

# Static architecture description (matches the PyTorch module).
_LAYERS = (
    dict(name="enc1", kind="conv",  c_in=3,   c_out=32,  act="relu"),
    dict(name="enc2", kind="conv",  c_in=32,  c_out=64,  act="relu"),
    dict(name="enc3", kind="conv",  c_in=64,  c_out=128, act="relu"),
    dict(name="dec1", kind="convT", c_in=128, c_out=64,  act="relu"),
    dict(name="dec2", kind="convT", c_in=64,  c_out=32,  act="relu"),
    dict(name="dec3", kind="convT", c_in=32,  c_out=3,   act="sigmoid"),
)


def _round_up(x, m):
    return (x + m - 1) // m * m


# ----------------------------------------------------------------------------
# Fused Pallas kernel: matmul + BN(train) stats + affine + activation
# ----------------------------------------------------------------------------
def _fused_layer_kernel(x_ref, w_ref, fold_ref, gamma_ref, beta_ref, o_ref, *,
                        act, inv_count):
    # (M_pad, K_pad) @ (K_pad, 128) on the MXU, f32 accumulation.
    y = jnp.dot(x_ref[...], w_ref[...], preferred_element_type=jnp.float32)

    # Per-column batch statistics over ALL rows of this layer (single M tile;
    # zero-padded rows contribute exact zeros because there is no bias).
    s = jnp.sum(y, axis=0, keepdims=True)          # (1, 128) sum
    ss = jnp.sum(y * y, axis=0, keepdims=True)     # (1, 128) sum of squares

    # Fold the n_phase sub-pixel columns of each real channel.  fold_ref is a
    # block-diagonal 0/1 matrix (identity for plain conv); the result is
    # already broadcast back to every column of the group.
    s_g = jnp.dot(s, fold_ref[...], preferred_element_type=jnp.float32)
    ss_g = jnp.dot(ss, fold_ref[...], preferred_element_type=jnp.float32)

    mean = s_g * inv_count
    var = jnp.maximum(ss_g * inv_count - mean * mean, 0.0)   # biased variance
    scale = gamma_ref[...] * jax.lax.rsqrt(var + EPS)        # EUP rsqrt
    shift = beta_ref[...] - mean * scale

    z = y * scale + shift
    if act == "relu":
        z = jnp.maximum(z, 0.0)
    else:  # sigmoid (EUP)
        z = jax.nn.sigmoid(z)
    o_ref[...] = z.astype(o_ref.dtype)


def _fused_layer_call(patches, lp, *, act, count):
    """patches: (M, K) bf16; lp: packed layer params; count: real BN count."""
    m, k = patches.shape
    k_pad, c_pad = lp["w"].shape
    m_pad = _round_up(m, 8)
    # Single-VMEM-tile design: at this problem size M <= 128.  Guard misuse.
    assert m_pad <= 2048, "M too large for the single-tile fused layer kernel"
    if (m_pad != m) or (k_pad != k):
        patches = jnp.pad(patches, ((0, m_pad - m), (0, k_pad - k)))

    n_blk = c_pad // _LANE
    kernel = functools.partial(_fused_layer_kernel, act=act,
                               inv_count=1.0 / float(count))
    return pl.pallas_call(
        kernel,
        out_shape=jax.ShapeDtypeStruct((m_pad, c_pad), jnp.bfloat16),
        grid=(n_blk,),
        in_specs=[
            pl.BlockSpec((m_pad, k_pad), lambda j: (0, 0)),   # patches (shared)
            pl.BlockSpec((k_pad, _LANE), lambda j: (0, j)),   # weight block
            pl.BlockSpec((_LANE, _LANE), lambda j: (0, 0)),   # fold matrix
            pl.BlockSpec((1, _LANE), lambda j: (0, j)),       # gamma (expanded)
            pl.BlockSpec((1, _LANE), lambda j: (0, j)),       # beta  (expanded)
        ],
        out_specs=pl.BlockSpec((m_pad, _LANE), lambda j: (0, j)),
        compiler_params=pltpu.CompilerParams(
            dimension_semantics=("parallel",),
            vmem_limit_bytes=_VMEM_LIMIT),
    )(patches, lp["w"], lp["fold"], lp["gamma"], lp["beta"])


# ----------------------------------------------------------------------------
# XLA glue: NHWC patch extraction + layer drivers
# ----------------------------------------------------------------------------
def _im2col_nhwc(x, kh, kw, stride, pad):
    """x: (N, H, W, C) bf16 -> (N*Ho*Wo, kh*kw*C), K order (kh, kw, C)."""
    n, h, w, c = x.shape
    xp = jnp.pad(x, ((0, 0), (pad, pad), (pad, pad), (0, 0)))
    ho = (h + 2 * pad - kh) // stride + 1
    wo = (w + 2 * pad - kw) // stride + 1
    slabs = []
    for i in range(kh):
        for j in range(kw):
            slabs.append(xp[:, i:i + stride * ho:stride,
                                j:j + stride * wo:stride, :])
    p = jnp.stack(slabs, axis=3)                      # (N, Ho, Wo, kh*kw, C)
    return p.reshape(n * ho * wo, kh * kw * c), (n, ho, wo)


def _im2col_2x2(x):
    """2x2 forward neighbourhood: (N*H*W, 4*C), K order (dh, dw, C)."""
    n, h, w, c = x.shape
    xp = jnp.pad(x, ((0, 0), (0, 1), (0, 1), (0, 0)))
    slabs = []
    for di in range(2):
        for dj in range(2):
            slabs.append(xp[:, di:di + h, dj:dj + w, :])
    return jnp.stack(slabs, axis=3).reshape(n * h * w, 4 * c)


def _conv_layer(x, lp, cfg):
    """Conv2d(k=3, s=2, p=1) + BN(train) + act; x NHWC bf16."""
    c_out = cfg["c_out"]
    patches, (n, ho, wo) = _im2col_nhwc(x, 3, 3, stride=2, pad=1)
    m = patches.shape[0]
    out = _fused_layer_call(patches, lp, act=cfg["act"], count=m)
    return out[:m, :c_out].reshape(n, ho, wo, c_out)


def _convT_layer(x, lp, cfg):
    """ConvTranspose2d(k=3, s=2, p=1, op=1) + BN(train) + act; x NHWC bf16."""
    c_out = cfg["c_out"]
    n, h, w, _ = x.shape
    patches = _im2col_2x2(x)                  # (N*H*W, 4*Cin) -- no zero dilation
    m = n * h * w
    out = _fused_layer_call(patches, lp, act=cfg["act"], count=m * 4)
    out = out[:m, :4 * c_out].reshape(n, h, w, c_out, 2, 2)   # (..., Cout, ph, pw)
    out = jnp.transpose(out, (0, 1, 4, 2, 5, 3))              # pixel shuffle
    return out.reshape(n, 2 * h, 2 * w, c_out)


# ----------------------------------------------------------------------------
# One-time parameter packing (done at init, NOT in the forward pass)
# ----------------------------------------------------------------------------
def _pack_conv(w, gamma, beta):
    c_out, c_in, kh, kw = w.shape
    k = kh * kw * c_in
    k_pad = _round_up(k, 16)                  # bf16 sublane packing
    c_pad = _round_up(c_out, _LANE)           # lane-dense outputs
    w2d = jnp.transpose(w, (2, 3, 1, 0)).reshape(k, c_out)
    w_p = jnp.zeros((k_pad, c_pad), jnp.bfloat16).at[:k, :c_out].set(
        w2d.astype(jnp.bfloat16))
    gamma_e = jnp.zeros((1, c_pad), jnp.float32).at[0, :c_out].set(gamma)
    beta_e = jnp.zeros((1, c_pad), jnp.float32).at[0, :c_out].set(beta)
    fold = jnp.eye(_LANE, dtype=jnp.float32)  # n_phase = 1 -> identity
    return dict(w=w_p, gamma=gamma_e, beta=beta_e, fold=fold)


def _convT_weight_subpixel(w):
    """PyTorch ConvT weight (Cin, Cout, 3, 3), s=2/p=1/op=1 -> sub-pixel weight
    (4*Cin, 4*Cout): K order (dh, dw, Cin), output order (Cout, ph, pw)."""
    c_in, c_out = w.shape[0], w.shape[1]
    w_eff = jnp.zeros((2, 2, c_in, c_out, 2, 2), w.dtype)
    tap = {(0, 0): 1, (1, 0): 2, (1, 1): 0}   # (phase, neighbour_offset) -> tap
    for (ph, dh), th in tap.items():
        for (pw, dw), tw in tap.items():
            w_eff = w_eff.at[dh, dw, :, :, ph, pw].set(w[:, :, th, tw])
    return w_eff.reshape(4 * c_in, 4 * c_out)


def _pack_convT(w, gamma, beta):
    c_in, c_out = w.shape[0], w.shape[1]
    k, c = 4 * c_in, 4 * c_out
    k_pad = _round_up(k, 16)
    c_pad = _round_up(c, _LANE)
    w2d = _convT_weight_subpixel(w)
    w_p = jnp.zeros((k_pad, c_pad), jnp.bfloat16).at[:k, :c].set(
        w2d.astype(jnp.bfloat16))
    gamma_e = jnp.zeros((1, c_pad), jnp.float32).at[0, :c].set(
        jnp.repeat(gamma, 4))                 # per-column (ch*4 + phase)
    beta_e = jnp.zeros((1, c_pad), jnp.float32).at[0, :c].set(
        jnp.repeat(beta, 4))
    lane = jnp.arange(_LANE)
    fold = (lane[:, None] // 4 == lane[None, :] // 4).astype(jnp.float32)
    return dict(w=w_p, gamma=gamma_e, beta=beta_e, fold=fold)


def pack_params(params):
    packed = {}
    for cfg in _LAYERS:
        p = params[cfg["name"]]
        pack = _pack_conv if cfg["kind"] == "conv" else _pack_convT
        packed[cfg["name"]] = pack(p["w"], p["gamma"], p["beta"])
    return packed


# ----------------------------------------------------------------------------
# Parameter init (deterministic, synthetic) and full forward
# ----------------------------------------------------------------------------
def init_params(key):
    # Conv/ConvT bias omitted: exactly cancelled by train-mode BatchNorm.
    params = {}
    ks = jax.random.split(key, len(_LAYERS))
    for cfg, k in zip(_LAYERS, ks):
        if cfg["kind"] == "conv":
            shape = (cfg["c_out"], cfg["c_in"], 3, 3)
        else:
            shape = (cfg["c_in"], cfg["c_out"], 3, 3)
        params[cfg["name"]] = dict(
            w=0.1 * jax.random.normal(k, shape, jnp.float32),
            gamma=jnp.ones((cfg["c_out"],), jnp.float32),
            beta=jnp.zeros((cfg["c_out"],), jnp.float32))
    return params


def encoder_decoder_forward(x, packed):
    h = jnp.transpose(x, (0, 2, 3, 1)).astype(jnp.bfloat16)   # NCHW -> NHWC once
    for cfg in _LAYERS:
        lp = packed[cfg["name"]]
        if cfg["kind"] == "conv":
            h = _conv_layer(h, lp, cfg)
        else:
            h = _convT_layer(h, lp, cfg)
    return jnp.transpose(h, (0, 3, 1, 2)).astype(jnp.float32)  # NHWC -> NCHW


if __name__ == "__main__":
    key = jax.random.PRNGKey(0)
    k_param, k_x = jax.random.split(key)
    params = init_params(k_param)
    packed = pack_params(params)              # one-time weight packing
    # NCHW input consistent with the module: 3 channels, 16x16 spatial, batch 2.
    x = jax.random.normal(k_x, (2, 3, 16, 16), jnp.float32)

    fwd = jax.jit(encoder_decoder_forward)
    out = fwd(x, packed)
    out = jax.block_until_ready(out)

    assert out.shape == (2, 3, 16, 16), out.shape
    assert bool(jnp.all(jnp.isfinite(out)))
    assert bool(jnp.all((out >= 0.0) & (out <= 1.0)))  # sigmoid output range
    print("KERNEL_OK")
</pallas_src>

<mosaic_0001>
module attributes {stable_mosaic.version = 11 : i64} {
  func.func @_fused_layer_kernel(%arg0: i32, %arg1: memref<128x32xbf16, #tpu.memory_space<vmem>>, %arg2: memref<32x128xbf16, #tpu.memory_space<vmem>>, %arg3: memref<128x128xf32, #tpu.memory_space<vmem>>, %arg4: memref<1x128xf32, #tpu.memory_space<vmem>>, %arg5: memref<1x128xf32, #tpu.memory_space<vmem>>, %arg6: memref<128x128xbf16, #tpu.memory_space<vmem>>) attributes {dimension_semantics = [#tpu.dimension_semantics<parallel>], iteration_bounds = array<i64: 1>, scalar_prefetch = 0 : i64, scratch_operands = 0 : i64, tpu.core_type = #tpu.core_type<tc>, window_params = [{pipeline_mode = #tpu.pipeline_mode<synchronous>, transform_indices = @transform_0, window_bounds = array<i64: 128, 32>}, {transform_indices = @transform_1, window_bounds = array<i64: 32, 128>}, {pipeline_mode = #tpu.pipeline_mode<synchronous>, transform_indices = @transform_2, window_bounds = array<i64: 128, 128>}, {transform_indices = @transform_3, window_bounds = array<i64: 1, 128>}, {transform_indices = @transform_4, window_bounds = array<i64: 1, 128>}, {transform_indices = @transform_5, window_bounds = array<i64: 128, 128>}]} {
    %c0 = arith.constant 0 : index
    %c0_0 = arith.constant 0 : index
    %0 = vector.load %arg1[%c0, %c0_0] : memref<128x32xbf16, #tpu.memory_space<vmem>>, vector<128x32xbf16>
    %c0_1 = arith.constant 0 : index
    %c0_2 = arith.constant 0 : index
    %1 = vector.load %arg2[%c0_1, %c0_2] : memref<32x128xbf16, #tpu.memory_space<vmem>>, vector<32x128xbf16>
    %cst = arith.constant dense<0.000000e+00> : vector<128x128xf32>
    %2 = tpu.matmul %0, %1, %cst {dimension_numbers = #tpu.dot_dimension_numbers<[1], [0], [0], [1], [0, 0, 1, 1], [], []>} : vector<128x32xbf16>, vector<32x128xbf16>, vector<128x128xf32> -> vector<128x128xf32>
    %cst_3 = arith.constant dense<0.000000e+00> : vector<128xf32>
    %3 = vector.multi_reduction <add>, %2, %cst_3 [0] : vector<128x128xf32> to vector<128xf32>
    %4 = vector.shape_cast %3 : vector<128xf32> to vector<1x128xf32>
    %5 = arith.mulf %2, %2 : vector<128x128xf32>
    %cst_4 = arith.constant dense<0.000000e+00> : vector<128xf32>
    %6 = vector.multi_reduction <add>, %5, %cst_4 [0] : vector<128x128xf32> to vector<128xf32>
    %7 = vector.shape_cast %6 : vector<128xf32> to vector<1x128xf32>
    %c0_5 = arith.constant 0 : index
    %c0_6 = arith.constant 0 : index
    %8 = vector.load %arg3[%c0_5, %c0_6] : memref<128x128xf32, #tpu.memory_space<vmem>>, vector<128x128xf32>
    %cst_7 = arith.constant dense<0.000000e+00> : vector<1x128xf32>
    %9 = tpu.matmul %4, %8, %cst_7 {dimension_numbers = #tpu.dot_dimension_numbers<[1], [0], [0], [1], [0, 0, 1, 1], [], []>} : vector<1x128xf32>, vector<128x128xf32>, vector<1x128xf32> -> vector<1x128xf32>
    %c0_8 = arith.constant 0 : index
    %c0_9 = arith.constant 0 : index
    %10 = vector.load %arg3[%c0_8, %c0_9] : memref<128x128xf32, #tpu.memory_space<vmem>>, vector<128x128xf32>
    %cst_10 = arith.constant dense<0.000000e+00> : vector<1x128xf32>
    %11 = tpu.matmul %7, %10, %cst_10 {dimension_numbers = #tpu.dot_dimension_numbers<[1], [0], [0], [1], [0, 0, 1, 1], [], []>} : vector<1x128xf32>, vector<128x128xf32>, vector<1x128xf32> -> vector<1x128xf32>
    %cst_11 = arith.constant 7.812500e-03 : f32
    %12 = vector.broadcast %cst_11 : f32 to vector<1x128xf32>
    %13 = arith.mulf %9, %12 : vector<1x128xf32>
    %cst_12 = arith.constant 7.812500e-03 : f32
    %14 = vector.broadcast %cst_12 : f32 to vector<1x128xf32>
    %15 = arith.mulf %11, %14 : vector<1x128xf32>
    %16 = arith.mulf %13, %13 : vector<1x128xf32>
    %17 = arith.subf %15, %16 : vector<1x128xf32>
    %cst_13 = arith.constant 0.000000e+00 : f32
    %18 = vector.broadcast %cst_13 : f32 to vector<1x128xf32>
    %19 = arith.maximumf %17, %18 : vector<1x128xf32>
    %c0_14 = arith.constant 0 : index
    %c0_15 = arith.constant 0 : index
    %20 = vector.load %arg4[%c0_14, %c0_15] : memref<1x128xf32, #tpu.memory_space<vmem>>, vector<1x128xf32>
    %cst_16 = arith.constant 9.99999974E-6 : f32
    %21 = vector.broadcast %cst_16 : f32 to vector<1x128xf32>
    %22 = arith.addf %19, %21 : vector<1x128xf32>
    %23 = math.rsqrt %22 : vector<1x128xf32>
    %24 = arith.mulf %20, %23 : vector<1x128xf32>
    %c0_17 = arith.constant 0 : index
    %c0_18 = arith.constant 0 : index
    %25 = vector.load %arg5[%c0_17, %c0_18] : memref<1x128xf32, #tpu.memory_space<vmem>>, vector<1x128xf32>
    %26 = arith.mulf %13, %24 : vector<1x128xf32>
    %27 = arith.subf %25, %26 : vector<1x128xf32>
    %28 = vector.broadcast %24 : vector<1x128xf32> to vector<128x128xf32>
    %29 = arith.mulf %2, %28 : vector<128x128xf32>
    %30 = vector.broadcast %27 : vector<1x128xf32> to vector<128x128xf32>
    %31 = arith.addf %29, %30 : vector<128x128xf32>
    %cst_19 = arith.constant 0.000000e+00 : f32
    %32 = vector.broadcast %cst_19 : f32 to vector<128x128xf32>
    %33 = arith.maximumf %31, %32 : vector<128x128xf32>
    %34 = arith.truncf %33 : vector<128x128xf32> to vector<128x128xbf16>
    %c0_20 = arith.constant 0 : index
    %c0_21 = arith.constant 0 : index
    %35 = vector.load %arg6[%c0_20, %c0_21] : memref<128x128xbf16, #tpu.memory_space<vmem>>, vector<128x128xbf16>
    tpu.vector_store %arg6[%c0_20, %c0_21], %34 {strides = array<i32>} : memref<128x128xbf16, #tpu.memory_space<vmem>>, vector<128x128xbf16>,
    return
  }
  func.func @transform_0(%arg0: i32) -> (i32, i32) {
    %c0_i32 = arith.constant 0 : i32
    %c0_i32_0 = arith.constant 0 : i32
    %c0_i32_1 = arith.constant 0 : i32
    return %c0_i32, %c0_i32_0 : i32, i32
  }
  func.func @transform_1(%arg0: i32) -> (i32, i32) {
    %c0_i32 = arith.constant 0 : i32
    %c0_i32_0 = arith.constant 0 : i32
    return %c0_i32, %arg0 : i32, i32
  }
  func.func @transform_2(%arg0: i32) -> (i32, i32) {
    %c0_i32 = arith.constant 0 : i32
    %c0_i32_0 = arith.constant 0 : i32
    %c0_i32_1 = arith.constant 0 : i32
    return %c0_i32, %c0_i32_0 : i32, i32
  }
  func.func @transform_3(%arg0: i32) -> (i32, i32) {
    %c0_i32 = arith.constant 0 : i32
    %c0_i32_0 = arith.constant 0 : i32
    return %c0_i32, %arg0 : i32, i32
  }
  func.func @transform_4(%arg0: i32) -> (i32, i32) {
    %c0_i32 = arith.constant 0 : i32
    %c0_i32_0 = arith.constant 0 : i32
    return %c0_i32, %arg0 : i32, i32
  }
  func.func @transform_5(%arg0: i32) -> (i32, i32) {
    %c0_i32 = arith.constant 0 : i32
    %c0_i32_0 = arith.constant 0 : i32
    return %c0_i32, %arg0 : i32, i32
  }
}

module attributes {stable_mosaic.version = 11 : i64} {
  func.func @_fused_layer_kernel(%arg0: i32, %arg1: memref<32x288xbf16, #tpu.memory_space<vmem>>, %arg2: memref<288x128xbf16, #tpu.memory_space<vmem>>, %arg3: memref<128x128xf32, #tpu.memory_space<vmem>>, %arg4: memref<1x128xf32, #tpu.memory_space<vmem>>, %arg5: memref<1x128xf32, #tpu.memory_space<vmem>>, %arg6: memref<32x128xbf16, #tpu.memory_space<vmem>>) attributes {dimension_semantics = [#tpu.dimension_semantics<parallel>], iteration_bounds = array<i64: 1>, scalar_prefetch = 0 : i64, scratch_operands = 0 : i64, tpu.core_type = #tpu.core_type<tc>, window_params = [{pipeline_mode = #tpu.pipeline_mode<synchronous>, transform_indices = @transform_0, window_bounds = array<i64: 32, 288>}, {transform_indices = @transform_1, window_bounds = array<i64: 288, 128>}, {pipeline_mode = #tpu.pipeline_mode<synchronous>, transform_indices = @transform_2, window_bounds = array<i64: 128, 128>}, {transform_indices = @transform_3, window_bounds = array<i64: 1, 128>}, {transform_indices = @transform_4, window_bounds = array<i64: 1, 128>}, {transform_indices = @transform_5, window_bounds = array<i64: 32, 128>}]} {
    %c0 = arith.constant 0 : index
    %c0_0 = arith.constant 0 : index
    %0 = vector.load %arg1[%c0, %c0_0] : memref<32x288xbf16, #tpu.memory_space<vmem>>, vector<32x288xbf16>
    %c0_1 = arith.constant 0 : index
    %c0_2 = arith.constant 0 : index
    %1 = vector.load %arg2[%c0_1, %c0_2] : memref<288x128xbf16, #tpu.memory_space<vmem>>, vector<288x128xbf16>
    %cst = arith.constant dense<0.000000e+00> : vector<32x128xf32>
    %2 = tpu.matmul %0, %1, %cst {dimension_numbers = #tpu.dot_dimension_numbers<[1], [0], [0], [1], [0, 0, 1, 1], [], []>} : vector<32x288xbf16>, vector<288x128xbf16>, vector<32x128xf32> -> vector<32x128xf32>
    %cst_3 = arith.constant dense<0.000000e+00> : vector<128xf32>
    %3 = vector.multi_reduction <add>, %2, %cst_3 [0] : vector<32x128xf32> to vector<128xf32>
    %4 = vector.shape_cast %3 : vector<128xf32> to vector<1x128xf32>
    %5 = arith.mulf %2, %2 : vector<32x128xf32>
    %cst_4 = arith.constant dense<0.000000e+00> : vector<128xf32>
    %6 = vector.multi_reduction <add>, %5, %cst_4 [0] : vector<32x128xf32> to vector<128xf32>
    %7 = vector.shape_cast %6 : vector<128xf32> to vector<1x128xf32>
    %c0_5 = arith.constant 0 : index
    %c0_6 = arith.constant 0 : index
    %8 = vector.load %arg3[%c0_5, %c0_6] : memref<128x128xf32, #tpu.memory_space<vmem>>, vector<128x128xf32>
    %cst_7 = arith.constant dense<0.000000e+00> : vector<1x128xf32>
    %9 = tpu.matmul %4, %8, %cst_7 {dimension_numbers = #tpu.dot_dimension_numbers<[1], [0], [0], [1], [0, 0, 1, 1], [], []>} : vector<1x128xf32>, vector<128x128xf32>, vector<1x128xf32> -> vector<1x128xf32>
    %c0_8 = arith.constant 0 : index
    %c0_9 = arith.constant 0 : index
    %10 = vector.load %arg3[%c0_8, %c0_9] : memref<128x128xf32, #tpu.memory_space<vmem>>, vector<128x128xf32>
    %cst_10 = arith.constant dense<0.000000e+00> : vector<1x128xf32>
    %11 = tpu.matmul %7, %10, %cst_10 {dimension_numbers = #tpu.dot_dimension_numbers<[1], [0], [0], [1], [0, 0, 1, 1], [], []>} : vector<1x128xf32>, vector<128x128xf32>, vector<1x128xf32> -> vector<1x128xf32>
    %cst_11 = arith.constant 3.125000e-02 : f32
    %12 = vector.broadcast %cst_11 : f32 to vector<1x128xf32>
    %13 = arith.mulf %9, %12 : vector<1x128xf32>
    %cst_12 = arith.constant 3.125000e-02 : f32
    %14 = vector.broadcast %cst_12 : f32 to vector<1x128xf32>
    %15 = arith.mulf %11, %14 : vector<1x128xf32>
    %16 = arith.mulf %13, %13 : vector<1x128xf32>
    %17 = arith.subf %15, %16 : vector<1x128xf32>
    %cst_13 = arith.constant 0.000000e+00 : f32
    %18 = vector.broadcast %cst_13 : f32 to vector<1x128xf32>
    %19 = arith.maximumf %17, %18 : vector<1x128xf32>
    %c0_14 = arith.constant 0 : index
    %c0_15 = arith.constant 0 : index
    %20 = vector.load %arg4[%c0_14, %c0_15] : memref<1x128xf32, #tpu.memory_space<vmem>>, vector<1x128xf32>
    %cst_16 = arith.constant 9.99999974E-6 : f32
    %21 = vector.broadcast %cst_16 : f32 to vector<1x128xf32>
    %22 = arith.addf %19, %21 : vector<1x128xf32>
    %23 = math.rsqrt %22 : vector<1x128xf32>
    %24 = arith.mulf %20, %23 : vector<1x128xf32>
    %c0_17 = arith.constant 0 : index
    %c0_18 = arith.constant 0 : index
    %25 = vector.load %arg5[%c0_17, %c0_18] : memref<1x128xf32, #tpu.memory_space<vmem>>, vector<1x128xf32>
    %26 = arith.mulf %13, %24 : vector<1x128xf32>
    %27 = arith.subf %25, %26 : vector<1x128xf32>
    %28 = vector.broadcast %24 : vector<1x128xf32> to vector<32x128xf32>
    %29 = arith.mulf %2, %28 : vector<32x128xf32>
    %30 = vector.broadcast %27 : vector<1x128xf32> to vector<32x128xf32>
    %31 = arith.addf %29, %30 : vector<32x128xf32>
    %cst_19 = arith.constant 0.000000e+00 : f32
    %32 = vector.broadcast %cst_19 : f32 to vector<32x128xf32>
    %33 = arith.maximumf %31, %32 : vector<32x128xf32>
    %34 = arith.truncf %33 : vector<32x128xf32> to vector<32x128xbf16>
    %c0_20 = arith.constant 0 : index
    %c0_21 = arith.constant 0 : index
    %35 = vector.load %arg6[%c0_20, %c0_21] : memref<32x128xbf16, #tpu.memory_space<vmem>>, vector<32x128xbf16>
    tpu.vector_store %arg6[%c0_20, %c0_21], %34 {strides = array<i32>} : memref<32x128xbf16, #tpu.memory_space<vmem>>, vector<32x128xbf16>,
    return
  }
  func.func @transform_0(%arg0: i32) -> (i32, i32) {
    %c0_i32 = arith.constant 0 : i32
    %c0_i32_0 = arith.constant 0 : i32
    %c0_i32_1 = arith.constant 0 : i32
    return %c0_i32, %c0_i32_0 : i32, i32
  }
  func.func @transform_1(%arg0: i32) -> (i32, i32) {
    %c0_i32 = arith.constant 0 : i32
    %c0_i32_0 = arith.constant 0 : i32
    return %c0_i32, %arg0 : i32, i32
  }
  func.func @transform_2(%arg0: i32) -> (i32, i32) {
    %c0_i32 = arith.constant 0 : i32
    %c0_i32_0 = arith.constant 0 : i32
    %c0_i32_1 = arith.constant 0 : i32
    return %c0_i32, %c0_i32_0 : i32, i32
  }
  func.func @transform_3(%arg0: i32) -> (i32, i32) {
    %c0_i32 = arith.constant 0 : i32
    %c0_i32_0 = arith.constant 0 : i32
    return %c0_i32, %arg0 : i32, i32
  }
  func.func @transform_4(%arg0: i32) -> (i32, i32) {
    %c0_i32 = arith.constant 0 : i32
    %c0_i32_0 = arith.constant 0 : i32
    return %c0_i32, %arg0 : i32, i32
  }
  func.func @transform_5(%arg0: i32) -> (i32, i32) {
    %c0_i32 = arith.constant 0 : i32
    %c0_i32_0 = arith.constant 0 : i32
    return %c0_i32, %arg0 : i32, i32
  }
}

module attributes {stable_mosaic.version = 11 : i64} {
  func.func @_fused_layer_kernel(%arg0: i32, %arg1: memref<8x576xbf16, #tpu.memory_space<vmem>>, %arg2: memref<576x128xbf16, #tpu.memory_space<vmem>>, %arg3: memref<128x128xf32, #tpu.memory_space<vmem>>, %arg4: memref<1x128xf32, #tpu.memory_space<vmem>>, %arg5: memref<1x128xf32, #tpu.memory_space<vmem>>, %arg6: memref<8x128xbf16, #tpu.memory_space<vmem>>) attributes {dimension_semantics = [#tpu.dimension_semantics<parallel>], iteration_bounds = array<i64: 1>, scalar_prefetch = 0 : i64, scratch_operands = 0 : i64, tpu.core_type = #tpu.core_type<tc>, window_params = [{pipeline_mode = #tpu.pipeline_mode<synchronous>, transform_indices = @transform_0, window_bounds = array<i64: 8, 576>}, {transform_indices = @transform_1, window_bounds = array<i64: 576, 128>}, {pipeline_mode = #tpu.pipeline_mode<synchronous>, transform_indices = @transform_2, window_bounds = array<i64: 128, 128>}, {transform_indices = @transform_3, window_bounds = array<i64: 1, 128>}, {transform_indices = @transform_4, window_bounds = array<i64: 1, 128>}, {transform_indices = @transform_5, window_bounds = array<i64: 8, 128>}]} {
    %c0 = arith.constant 0 : index
    %c0_0 = arith.constant 0 : index
    %0 = vector.load %arg1[%c0, %c0_0] : memref<8x576xbf16, #tpu.memory_space<vmem>>, vector<8x576xbf16>
    %c0_1 = arith.constant 0 : index
    %c0_2 = arith.constant 0 : index
    %1 = vector.load %arg2[%c0_1, %c0_2] : memref<576x128xbf16, #tpu.memory_space<vmem>>, vector<576x128xbf16>
    %cst = arith.constant dense<0.000000e+00> : vector<8x128xf32>
    %2 = tpu.matmul %0, %1, %cst {dimension_numbers = #tpu.dot_dimension_numbers<[1], [0], [0], [1], [0, 0, 1, 1], [], []>} : vector<8x576xbf16>, vector<576x128xbf16>, vector<8x128xf32> -> vector<8x128xf32>
    %cst_3 = arith.constant dense<0.000000e+00> : vector<128xf32>
    %3 = vector.multi_reduction <add>, %2, %cst_3 [0] : vector<8x128xf32> to vector<128xf32>
    %4 = vector.shape_cast %3 : vector<128xf32> to vector<1x128xf32>
    %5 = arith.mulf %2, %2 : vector<8x128xf32>
    %cst_4 = arith.constant dense<0.000000e+00> : vector<128xf32>
    %6 = vector.multi_reduction <add>, %5, %cst_4 [0] : vector<8x128xf32> to vector<128xf32>
    %7 = vector.shape_cast %6 : vector<128xf32> to vector<1x128xf32>
    %c0_5 = arith.constant 0 : index
    %c0_6 = arith.constant 0 : index
    %8 = vector.load %arg3[%c0_5, %c0_6] : memref<128x128xf32, #tpu.memory_space<vmem>>, vector<128x128xf32>
    %cst_7 = arith.constant dense<0.000000e+00> : vector<1x128xf32>
    %9 = tpu.matmul %4, %8, %cst_7 {dimension_numbers = #tpu.dot_dimension_numbers<[1], [0], [0], [1], [0, 0, 1, 1], [], []>} : vector<1x128xf32>, vector<128x128xf32>, vector<1x128xf32> -> vector<1x128xf32>
    %c0_8 = arith.constant 0 : index
    %c0_9 = arith.constant 0 : index
    %10 = vector.load %arg3[%c0_8, %c0_9] : memref<128x128xf32, #tpu.memory_space<vmem>>, vector<128x128xf32>
    %cst_10 = arith.constant dense<0.000000e+00> : vector<1x128xf32>
    %11 = tpu.matmul %7, %10, %cst_10 {dimension_numbers = #tpu.dot_dimension_numbers<[1], [0], [0], [1], [0, 0, 1, 1], [], []>} : vector<1x128xf32>, vector<128x128xf32>, vector<1x128xf32> -> vector<1x128xf32>
    %cst_11 = arith.constant 1.250000e-01 : f32
    %12 = vector.broadcast %cst_11 : f32 to vector<1x128xf32>
    %13 = arith.mulf %9, %12 : vector<1x128xf32>
    %cst_12 = arith.constant 1.250000e-01 : f32
    %14 = vector.broadcast %cst_12 : f32 to vector<1x128xf32>
    %15 = arith.mulf %11, %14 : vector<1x128xf32>
    %16 = arith.mulf %13, %13 : vector<1x128xf32>
    %17 = arith.subf %15, %16 : vector<1x128xf32>
    %cst_13 = arith.constant 0.000000e+00 : f32
    %18 = vector.broadcast %cst_13 : f32 to vector<1x128xf32>
    %19 = arith.maximumf %17, %18 : vector<1x128xf32>
    %c0_14 = arith.constant 0 : index
    %c0_15 = arith.constant 0 : index
    %20 = vector.load %arg4[%c0_14, %c0_15] : memref<1x128xf32, #tpu.memory_space<vmem>>, vector<1x128xf32>
    %cst_16 = arith.constant 9.99999974E-6 : f32
    %21 = vector.broadcast %cst_16 : f32 to vector<1x128xf32>
    %22 = arith.addf %19, %21 : vector<1x128xf32>
    %23 = math.rsqrt %22 : vector<1x128xf32>
    %24 = arith.mulf %20, %23 : vector<1x128xf32>
    %c0_17 = arith.constant 0 : index
    %c0_18 = arith.constant 0 : index
    %25 = vector.load %arg5[%c0_17, %c0_18] : memref<1x128xf32, #tpu.memory_space<vmem>>, vector<1x128xf32>
    %26 = arith.mulf %13, %24 : vector<1x128xf32>
    %27 = arith.subf %25, %26 : vector<1x128xf32>
    %28 = vector.broadcast %24 : vector<1x128xf32> to vector<8x128xf32>
    %29 = arith.mulf %2, %28 : vector<8x128xf32>
    %30 = vector.broadcast %27 : vector<1x128xf32> to vector<8x128xf32>
    %31 = arith.addf %29, %30 : vector<8x128xf32>
    %cst_19 = arith.constant 0.000000e+00 : f32
    %32 = vector.broadcast %cst_19 : f32 to vector<8x128xf32>
    %33 = arith.maximumf %31, %32 : vector<8x128xf32>
    %34 = arith.truncf %33 : vector<8x128xf32> to vector<8x128xbf16>
    %c0_20 = arith.constant 0 : index
    %c0_21 = arith.constant 0 : index
    %35 = vector.load %arg6[%c0_20, %c0_21] : memref<8x128xbf16, #tpu.memory_space<vmem>>, vector<8x128xbf16>
    tpu.vector_store %arg6[%c0_20, %c0_21], %34 {strides = array<i32>} : memref<8x128xbf16, #tpu.memory_space<vmem>>, vector<8x128xbf16>,
    return
  }
  func.func @transform_0(%arg0: i32) -> (i32, i32) {
    %c0_i32 = arith.constant 0 : i32
    %c0_i32_0 = arith.constant 0 : i32
    %c0_i32_1 = arith.constant 0 : i32
    return %c0_i32, %c0_i32_0 : i32, i32
  }
  func.func @transform_1(%arg0: i32) -> (i32, i32) {
    %c0_i32 = arith.constant 0 : i32
    %c0_i32_0 = arith.constant 0 : i32
    return %c0_i32, %arg0 : i32, i32
  }
  func.func @transform_2(%arg0: i32) -> (i32, i32) {
    %c0_i32 = arith.constant 0 : i32
    %c0_i32_0 = arith.constant 0 : i32
    %c0_i32_1 = arith.constant 0 : i32
    return %c0_i32, %c0_i32_0 : i32, i32
  }
  func.func @transform_3(%arg0: i32) -> (i32, i32) {
    %c0_i32 = arith.constant 0 : i32
    %c0_i32_0 = arith.constant 0 : i32
    return %c0_i32, %arg0 : i32, i32
  }
  func.func @transform_4(%arg0: i32) -> (i32, i32) {
    %c0_i32 = arith.constant 0 : i32
    %c0_i32_0 = arith.constant 0 : i32
    return %c0_i32, %arg0 : i32, i32
  }
  func.func @transform_5(%arg0: i32) -> (i32, i32) {
    %c0_i32 = arith.constant 0 : i32
    %c0_i32_0 = arith.constant 0 : i32
    return %c0_i32, %arg0 : i32, i32
  }
}

module attributes {stable_mosaic.version = 11 : i64} {
  func.func @_fused_layer_kernel(%arg0: i32, %arg1: memref<8x512xbf16, #tpu.memory_space<vmem>>, %arg2: memref<512x128xbf16, #tpu.memory_space<vmem>>, %arg3: memref<128x128xf32, #tpu.memory_space<vmem>>, %arg4: memref<1x128xf32, #tpu.memory_space<vmem>>, %arg5: memref<1x128xf32, #tpu.memory_space<vmem>>, %arg6: memref<8x128xbf16, #tpu.memory_space<vmem>>) attributes {dimension_semantics = [#tpu.dimension_semantics<parallel>], iteration_bounds = array<i64: 2>, scalar_prefetch = 0 : i64, scratch_operands = 0 : i64, tpu.core_type = #tpu.core_type<tc>, window_params = [{pipeline_mode = #tpu.pipeline_mode<synchronous>, transform_indices = @transform_0, window_bounds = array<i64: 8, 512>}, {transform_indices = @transform_1, window_bounds = array<i64: 512, 128>}, {pipeline_mode = #tpu.pipeline_mode<synchronous>, transform_indices = @transform_2, window_bounds = array<i64: 128, 128>}, {transform_indices = @transform_3, window_bounds = array<i64: 1, 128>}, {transform_indices = @transform_4, window_bounds = array<i64: 1, 128>}, {transform_indices = @transform_5, window_bounds = array<i64: 8, 128>}]} {
    %c0 = arith.constant 0 : index
    %c0_0 = arith.constant 0 : index
    %0 = vector.load %arg1[%c0, %c0_0] : memref<8x512xbf16, #tpu.memory_space<vmem>>, vector<8x512xbf16>
    %c0_1 = arith.constant 0 : index
    %c0_2 = arith.constant 0 : index
    %1 = vector.load %arg2[%c0_1, %c0_2] : memref<512x128xbf16, #tpu.memory_space<vmem>>, vector<512x128xbf16>
    %cst = arith.constant dense<0.000000e+00> : vector<8x128xf32>
    %2 = tpu.matmul %0, %1, %cst {dimension_numbers = #tpu.dot_dimension_numbers<[1], [0], [0], [1], [0, 0, 1, 1], [], []>} : vector<8x512xbf16>, vector<512x128xbf16>, vector<8x128xf32> -> vector<8x128xf32>
    %cst_3 = arith.constant dense<0.000000e+00> : vector<128xf32>
    %3 = vector.multi_reduction <add>, %2, %cst_3 [0] : vector<8x128xf32> to vector<128xf32>
    %4 = vector.shape_cast %3 : vector<128xf32> to vector<1x128xf32>
    %5 = arith.mulf %2, %2 : vector<8x128xf32>
    %cst_4 = arith.constant dense<0.000000e+00> : vector<128xf32>
    %6 = vector.multi_reduction <add>, %5, %cst_4 [0] : vector<8x128xf32> to vector<128xf32>
    %7 = vector.shape_cast %6 : vector<128xf32> to vector<1x128xf32>
    %c0_5 = arith.constant 0 : index
    %c0_6 = arith.constant 0 : index
    %8 = vector.load %arg3[%c0_5, %c0_6] : memref<128x128xf32, #tpu.memory_space<vmem>>, vector<128x128xf32>
    %cst_7 = arith.constant dense<0.000000e+00> : vector<1x128xf32>
    %9 = tpu.matmul %4, %8, %cst_7 {dimension_numbers = #tpu.dot_dimension_numbers<[1], [0], [0], [1], [0, 0, 1, 1], [], []>} : vector<1x128xf32>, vector<128x128xf32>, vector<1x128xf32> -> vector<1x128xf32>
    %c0_8 = arith.constant 0 : index
    %c0_9 = arith.constant 0 : index
    %10 = vector.load %arg3[%c0_8, %c0_9] : memref<128x128xf32, #tpu.memory_space<vmem>>, vector<128x128xf32>
    %cst_10 = arith.constant dense<0.000000e+00> : vector<1x128xf32>
    %11 = tpu.matmul %7, %10, %cst_10 {dimension_numbers = #tpu.dot_dimension_numbers<[1], [0], [0], [1], [0, 0, 1, 1], [], []>} : vector<1x128xf32>, vector<128x128xf32>, vector<1x128xf32> -> vector<1x128xf32>
    %cst_11 = arith.constant 3.125000e-02 : f32
    %12 = vector.broadcast %cst_11 : f32 to vector<1x128xf32>
    %13 = arith.mulf %9, %12 : vector<1x128xf32>
    %cst_12 = arith.constant 3.125000e-02 : f32
    %14 = vector.broadcast %cst_12 : f32 to vector<1x128xf32>
    %15 = arith.mulf %11, %14 : vector<1x128xf32>
    %16 = arith.mulf %13, %13 : vector<1x128xf32>
    %17 = arith.subf %15, %16 : vector<1x128xf32>
    %cst_13 = arith.constant 0.000000e+00 : f32
    %18 = vector.broadcast %cst_13 : f32 to vector<1x128xf32>
    %19 = arith.maximumf %17, %18 : vector<1x128xf32>
    %c0_14 = arith.constant 0 : index
    %c0_15 = arith.constant 0 : index
    %20 = vector.load %arg4[%c0_14, %c0_15] : memref<1x128xf32, #tpu.memory_space<vmem>>, vector<1x128xf32>
    %cst_16 = arith.constant 9.99999974E-6 : f32
    %21 = vector.broadcast %cst_16 : f32 to vector<1x128xf32>
    %22 = arith.addf %19, %21 : vector<1x128xf32>
    %23 = math.rsqrt %22 : vector<1x128xf32>
    %24 = arith.mulf %20, %23 : vector<1x128xf32>
    %c0_17 = arith.constant 0 : index
    %c0_18 = arith.constant 0 : index
    %25 = vector.load %arg5[%c0_17, %c0_18] : memref<1x128xf32, #tpu.memory_space<vmem>>, vector<1x128xf32>
    %26 = arith.mulf %13, %24 : vector<1x128xf32>
    %27 = arith.subf %25, %26 : vector<1x128xf32>
    %28 = vector.broadcast %24 : vector<1x128xf32> to vector<8x128xf32>
    %29 = arith.mulf %2, %28 : vector<8x128xf32>
    %30 = vector.broadcast %27 : vector<1x128xf32> to vector<8x128xf32>
    %31 = arith.addf %29, %30 : vector<8x128xf32>
    %cst_19 = arith.constant 0.000000e+00 : f32
    %32 = vector.broadcast %cst_19 : f32 to vector<8x128xf32>
    %33 = arith.maximumf %31, %32 : vector<8x128xf32>
    %34 = arith.truncf %33 : vector<8x128xf32> to vector<8x128xbf16>
    %c0_20 = arith.constant 0 : index
    %c0_21 = arith.constant 0 : index
    %35 = vector.load %arg6[%c0_20, %c0_21] : memref<8x128xbf16, #tpu.memory_space<vmem>>, vector<8x128xbf16>
    tpu.vector_store %arg6[%c0_20, %c0_21], %34 {strides = array<i32>} : memref<8x128xbf16, #tpu.memory_space<vmem>>, vector<8x128xbf16>,
    return
  }
  func.func @transform_0(%arg0: i32) -> (i32, i32) {
    %c0_i32 = arith.constant 0 : i32
    %c0_i32_0 = arith.constant 0 : i32
    %c0_i32_1 = arith.constant 0 : i32
    return %c0_i32, %c0_i32_0 : i32, i32
  }
  func.func @transform_1(%arg0: i32) -> (i32, i32) {
    %c0_i32 = arith.constant 0 : i32
    %c0_i32_0 = arith.constant 0 : i32
    return %c0_i32, %arg0 : i32, i32
  }
  func.func @transform_2(%arg0: i32) -> (i32, i32) {
    %c0_i32 = arith.constant 0 : i32
    %c0_i32_0 = arith.constant 0 : i32
    %c0_i32_1 = arith.constant 0 : i32
    return %c0_i32, %c0_i32_0 : i32, i32
  }
  func.func @transform_3(%arg0: i32) -> (i32, i32) {
    %c0_i32 = arith.constant 0 : i32
    %c0_i32_0 = arith.constant 0 : i32
    return %c0_i32, %arg0 : i32, i32
  }
  func.func @transform_4(%arg0: i32) -> (i32, i32) {
    %c0_i32 = arith.constant 0 : i32
    %c0_i32_0 = arith.constant 0 : i32
    return %c0_i32, %arg0 : i32, i32
  }
  func.func @transform_5(%arg0: i32) -> (i32, i32) {
    %c0_i32 = arith.constant 0 : i32
    %c0_i32_0 = arith.constant 0 : i32
    return %c0_i32, %arg0 : i32, i32
  }
}

module attributes {stable_mosaic.version = 11 : i64} {
  func.func @_fused_layer_kernel(%arg0: i32, %arg1: memref<32x256xbf16, #tpu.memory_space<vmem>>, %arg2: memref<256x128xbf16, #tpu.memory_space<vmem>>, %arg3: memref<128x128xf32, #tpu.memory_space<vmem>>, %arg4: memref<1x128xf32, #tpu.memory_space<vmem>>, %arg5: memref<1x128xf32, #tpu.memory_space<vmem>>, %arg6: memref<32x128xbf16, #tpu.memory_space<vmem>>) attributes {dimension_semantics = [#tpu.dimension_semantics<parallel>], iteration_bounds = array<i64: 1>, scalar_prefetch = 0 : i64, scratch_operands = 0 : i64, tpu.core_type = #tpu.core_type<tc>, window_params = [{pipeline_mode = #tpu.pipeline_mode<synchronous>, transform_indices = @transform_0, window_bounds = array<i64: 32, 256>}, {transform_indices = @transform_1, window_bounds = array<i64: 256, 128>}, {pipeline_mode = #tpu.pipeline_mode<synchronous>, transform_indices = @transform_2, window_bounds = array<i64: 128, 128>}, {transform_indices = @transform_3, window_bounds = array<i64: 1, 128>}, {transform_indices = @transform_4, window_bounds = array<i64: 1, 128>}, {transform_indices = @transform_5, window_bounds = array<i64: 32, 128>}]} {
    %c0 = arith.constant 0 : index
    %c0_0 = arith.constant 0 : index
    %0 = vector.load %arg1[%c0, %c0_0] : memref<32x256xbf16, #tpu.memory_space<vmem>>, vector<32x256xbf16>
    %c0_1 = arith.constant 0 : index
    %c0_2 = arith.constant 0 : index
    %1 = vector.load %arg2[%c0_1, %c0_2] : memref<256x128xbf16, #tpu.memory_space<vmem>>, vector<256x128xbf16>
    %cst = arith.constant dense<0.000000e+00> : vector<32x128xf32>
    %2 = tpu.matmul %0, %1, %cst {dimension_numbers = #tpu.dot_dimension_numbers<[1], [0], [0], [1], [0, 0, 1, 1], [], []>} : vector<32x256xbf16>, vector<256x128xbf16>, vector<32x128xf32> -> vector<32x128xf32>
    %cst_3 = arith.constant dense<0.000000e+00> : vector<128xf32>
    %3 = vector.multi_reduction <add>, %2, %cst_3 [0] : vector<32x128xf32> to vector<128xf32>
    %4 = vector.shape_cast %3 : vector<128xf32> to vector<1x128xf32>
    %5 = arith.mulf %2, %2 : vector<32x128xf32>
    %cst_4 = arith.constant dense<0.000000e+00> : vector<128xf32>
    %6 = vector.multi_reduction <add>, %5, %cst_4 [0] : vector<32x128xf32> to vector<128xf32>
    %7 = vector.shape_cast %6 : vector<128xf32> to vector<1x128xf32>
    %c0_5 = arith.constant 0 : index
    %c0_6 = arith.constant 0 : index
    %8 = vector.load %arg3[%c0_5, %c0_6] : memref<128x128xf32, #tpu.memory_space<vmem>>, vector<128x128xf32>
    %cst_7 = arith.constant dense<0.000000e+00> : vector<1x128xf32>
    %9 = tpu.matmul %4, %8, %cst_7 {dimension_numbers = #tpu.dot_dimension_numbers<[1], [0], [0], [1], [0, 0, 1, 1], [], []>} : vector<1x128xf32>, vector<128x128xf32>, vector<1x128xf32> -> vector<1x128xf32>
    %c0_8 = arith.constant 0 : index
    %c0_9 = arith.constant 0 : index
    %10 = vector.load %arg3[%c0_8, %c0_9] : memref<128x128xf32, #tpu.memory_space<vmem>>, vector<128x128xf32>
    %cst_10 = arith.constant dense<0.000000e+00> : vector<1x128xf32>
    %11 = tpu.matmul %7, %10, %cst_10 {dimension_numbers = #tpu.dot_dimension_numbers<[1], [0], [0], [1], [0, 0, 1, 1], [], []>} : vector<1x128xf32>, vector<128x128xf32>, vector<1x128xf32> -> vector<1x128xf32>
    %cst_11 = arith.constant 7.812500e-03 : f32
    %12 = vector.broadcast %cst_11 : f32 to vector<1x128xf32>
    %13 = arith.mulf %9, %12 : vector<1x128xf32>
    %cst_12 = arith.constant 7.812500e-03 : f32
    %14 = vector.broadcast %cst_12 : f32 to vector<1x128xf32>
    %15 = arith.mulf %11, %14 : vector<1x128xf32>
    %16 = arith.mulf %13, %13 : vector<1x128xf32>
    %17 = arith.subf %15, %16 : vector<1x128xf32>
    %cst_13 = arith.constant 0.000000e+00 : f32
    %18 = vector.broadcast %cst_13 : f32 to vector<1x128xf32>
    %19 = arith.maximumf %17, %18 : vector<1x128xf32>
    %c0_14 = arith.constant 0 : index
    %c0_15 = arith.constant 0 : index
    %20 = vector.load %arg4[%c0_14, %c0_15] : memref<1x128xf32, #tpu.memory_space<vmem>>, vector<1x128xf32>
    %cst_16 = arith.constant 9.99999974E-6 : f32
    %21 = vector.broadcast %cst_16 : f32 to vector<1x128xf32>
    %22 = arith.addf %19, %21 : vector<1x128xf32>
    %23 = math.rsqrt %22 : vector<1x128xf32>
    %24 = arith.mulf %20, %23 : vector<1x128xf32>
    %c0_17 = arith.constant 0 : index
    %c0_18 = arith.constant 0 : index
    %25 = vector.load %arg5[%c0_17, %c0_18] : memref<1x128xf32, #tpu.memory_space<vmem>>, vector<1x128xf32>
    %26 = arith.mulf %13, %24 : vector<1x128xf32>
    %27 = arith.subf %25, %26 : vector<1x128xf32>
    %28 = vector.broadcast %24 : vector<1x128xf32> to vector<32x128xf32>
    %29 = arith.mulf %2, %28 : vector<32x128xf32>
    %30 = vector.broadcast %27 : vector<1x128xf32> to vector<32x128xf32>
    %31 = arith.addf %29, %30 : vector<32x128xf32>
    %cst_19 = arith.constant 0.000000e+00 : f32
    %32 = vector.broadcast %cst_19 : f32 to vector<32x128xf32>
    %33 = arith.maximumf %31, %32 : vector<32x128xf32>
    %34 = arith.truncf %33 : vector<32x128xf32> to vector<32x128xbf16>
    %c0_20 = arith.constant 0 : index
    %c0_21 = arith.constant 0 : index
    %35 = vector.load %arg6[%c0_20, %c0_21] : memref<32x128xbf16, #tpu.memory_space<vmem>>, vector<32x128xbf16>
    tpu.vector_store %arg6[%c0_20, %c0_21], %34 {strides = array<i32>} : memref<32x128xbf16, #tpu.memory_space<vmem>>, vector<32x128xbf16>,
    return
  }
  func.func @transform_0(%arg0: i32) -> (i32, i32) {
    %c0_i32 = arith.constant 0 : i32
    %c0_i32_0 = arith.constant 0 : i32
    %c0_i32_1 = arith.constant 0 : i32
    return %c0_i32, %c0_i32_0 : i32, i32
  }
  func.func @transform_1(%arg0: i32) -> (i32, i32) {
    %c0_i32 = arith.constant 0 : i32
    %c0_i32_0 = arith.constant 0 : i32
    return %c0_i32, %arg0 : i32, i32
  }
  func.func @transform_2(%arg0: i32) -> (i32, i32) {
    %c0_i32 = arith.constant 0 : i32
    %c0_i32_0 = arith.constant 0 : i32
    %c0_i32_1 = arith.constant 0 : i32
    return %c0_i32, %c0_i32_0 : i32, i32
  }
  func.func @transform_3(%arg0: i32) -> (i32, i32) {
    %c0_i32 = arith.constant 0 : i32
    %c0_i32_0 = arith.constant 0 : i32
    return %c0_i32, %arg0 : i32, i32
  }
  func.func @transform_4(%arg0: i32) -> (i32, i32) {
    %c0_i32 = arith.constant 0 : i32
    %c0_i32_0 = arith.constant 0 : i32
    return %c0_i32, %arg0 : i32, i32
  }
  func.func @transform_5(%arg0: i32) -> (i32, i32) {
    %c0_i32 = arith.constant 0 : i32
    %c0_i32_0 = arith.constant 0 : i32
    return %c0_i32, %arg0 : i32, i32
  }
}

module attributes {stable_mosaic.version = 11 : i64} {
  func.func @_fused_layer_kernel(%arg0: i32, %arg1: memref<128x128xbf16, #tpu.memory_space<vmem>>, %arg2: memref<128x128xbf16, #tpu.memory_space<vmem>>, %arg3: memref<128x128xf32, #tpu.memory_space<vmem>>, %arg4: memref<1x128xf32, #tpu.memory_space<vmem>>, %arg5: memref<1x128xf32, #tpu.memory_space<vmem>>, %arg6: memref<128x128xbf16, #tpu.memory_space<vmem>>) attributes {dimension_semantics = [#tpu.dimension_semantics<parallel>], iteration_bounds = array<i64: 1>, scalar_prefetch = 0 : i64, scratch_operands = 0 : i64, tpu.core_type = #tpu.core_type<tc>, window_params = [{pipeline_mode = #tpu.pipeline_mode<synchronous>, transform_indices = @transform_0, window_bounds = array<i64: 128, 128>}, {transform_indices = @transform_1, window_bounds = array<i64: 128, 128>}, {pipeline_mode = #tpu.pipeline_mode<synchronous>, transform_indices = @transform_2, window_bounds = array<i64: 128, 128>}, {transform_indices = @transform_3, window_bounds = array<i64: 1, 128>}, {transform_indices = @transform_4, window_bounds = array<i64: 1, 128>}, {transform_indices = @transform_5, window_bounds = array<i64: 128, 128>}]} {
    %c0 = arith.constant 0 : index
    %c0_0 = arith.constant 0 : index
    %0 = vector.load %arg1[%c0, %c0_0] : memref<128x128xbf16, #tpu.memory_space<vmem>>, vector<128x128xbf16>
    %c0_1 = arith.constant 0 : index
    %c0_2 = arith.constant 0 : index
    %1 = vector.load %arg2[%c0_1, %c0_2] : memref<128x128xbf16, #tpu.memory_space<vmem>>, vector<128x128xbf16>
    %cst = arith.constant dense<0.000000e+00> : vector<128x128xf32>
    %2 = tpu.matmul %0, %1, %cst {dimension_numbers = #tpu.dot_dimension_numbers<[1], [0], [0], [1], [0, 0, 1, 1], [], []>} : vector<128x128xbf16>, vector<128x128xbf16>, vector<128x128xf32> -> vector<128x128xf32>
    %cst_3 = arith.constant dense<0.000000e+00> : vector<128xf32>
    %3 = vector.multi_reduction <add>, %2, %cst_3 [0] : vector<128x128xf32> to vector<128xf32>
    %4 = vector.shape_cast %3 : vector<128xf32> to vector<1x128xf32>
    %5 = arith.mulf %2, %2 : vector<128x128xf32>
    %cst_4 = arith.constant dense<0.000000e+00> : vector<128xf32>
    %6 = vector.multi_reduction <add>, %5, %cst_4 [0] : vector<128x128xf32> to vector<128xf32>
    %7 = vector.shape_cast %6 : vector<128xf32> to vector<1x128xf32>
    %c0_5 = arith.constant 0 : index
    %c0_6 = arith.constant 0 : index
    %8 = vector.load %arg3[%c0_5, %c0_6] : memref<128x128xf32, #tpu.memory_space<vmem>>, vector<128x128xf32>
    %cst_7 = arith.constant dense<0.000000e+00> : vector<1x128xf32>
    %9 = tpu.matmul %4, %8, %cst_7 {dimension_numbers = #tpu.dot_dimension_numbers<[1], [0], [0], [1], [0, 0, 1, 1], [], []>} : vector<1x128xf32>, vector<128x128xf32>, vector<1x128xf32> -> vector<1x128xf32>
    %c0_8 = arith.constant 0 : index
    %c0_9 = arith.constant 0 : index
    %10 = vector.load %arg3[%c0_8, %c0_9] : memref<128x128xf32, #tpu.memory_space<vmem>>, vector<128x128xf32>
    %cst_10 = arith.constant dense<0.000000e+00> : vector<1x128xf32>
    %11 = tpu.matmul %7, %10, %cst_10 {dimension_numbers = #tpu.dot_dimension_numbers<[1], [0], [0], [1], [0, 0, 1, 1], [], []>} : vector<1x128xf32>, vector<128x128xf32>, vector<1x128xf32> -> vector<1x128xf32>
    %cst_11 = arith.constant 0.001953125 : f32
    %12 = vector.broadcast %cst_11 : f32 to vector<1x128xf32>
    %13 = arith.mulf %9, %12 : vector<1x128xf32>
    %cst_12 = arith.constant 0.001953125 : f32
    %14 = vector.broadcast %cst_12 : f32 to vector<1x128xf32>
    %15 = arith.mulf %11, %14 : vector<1x128xf32>
    %16 = arith.mulf %13, %13 : vector<1x128xf32>
    %17 = arith.subf %15, %16 : vector<1x128xf32>
    %cst_13 = arith.constant 0.000000e+00 : f32
    %18 = vector.broadcast %cst_13 : f32 to vector<1x128xf32>
    %19 = arith.maximumf %17, %18 : vector<1x128xf32>
    %c0_14 = arith.constant 0 : index
    %c0_15 = arith.constant 0 : index
    %20 = vector.load %arg4[%c0_14, %c0_15] : memref<1x128xf32, #tpu.memory_space<vmem>>, vector<1x128xf32>
    %cst_16 = arith.constant 9.99999974E-6 : f32
    %21 = vector.broadcast %cst_16 : f32 to vector<1x128xf32>
    %22 = arith.addf %19, %21 : vector<1x128xf32>
    %23 = math.rsqrt %22 : vector<1x128xf32>
    %24 = arith.mulf %20, %23 : vector<1x128xf32>
    %c0_17 = arith.constant 0 : index
    %c0_18 = arith.constant 0 : index
    %25 = vector.load %arg5[%c0_17, %c0_18] : memref<1x128xf32, #tpu.memory_space<vmem>>, vector<1x128xf32>
    %26 = arith.mulf %13, %24 : vector<1x128xf32>
    %27 = arith.subf %25, %26 : vector<1x128xf32>
    %28 = vector.broadcast %24 : vector<1x128xf32> to vector<128x128xf32>
    %29 = arith.mulf %2, %28 : vector<128x128xf32>
    %30 = vector.broadcast %27 : vector<1x128xf32> to vector<128x128xf32>
    %31 = arith.addf %29, %30 : vector<128x128xf32>
    %32 = arith.negf %31 : vector<128x128xf32>
    %33 = math.exp %32 : vector<128x128xf32>
    %cst_19 = arith.constant 1.000000e+00 : f32
    %34 = vector.broadcast %cst_19 : f32 to vector<128x128xf32>
    %35 = arith.addf %34, %33 : vector<128x128xf32>
    %36 = arith.divf %34, %35 : vector<128x128xf32>
    %37 = arith.truncf %36 : vector<128x128xf32> to vector<128x128xbf16>
    %c0_20 = arith.constant 0 : index
    %c0_21 = arith.constant 0 : index
    %38 = vector.load %arg6[%c0_20, %c0_21] : memref<128x128xbf16, #tpu.memory_space<vmem>>, vector<128x128xbf16>
    tpu.vector_store %arg6[%c0_20, %c0_21], %37 {strides = array<i32>} : memref<128x128xbf16, #tpu.memory_space<vmem>>, vector<128x128xbf16>,
    return
  }
  func.func @transform_0(%arg0: i32) -> (i32, i32) {
    %c0_i32 = arith.constant 0 : i32
    %c0_i32_0 = arith.constant 0 : i32
    %c0_i32_1 = arith.constant 0 : i32
    return %c0_i32, %c0_i32_0 : i32, i32
  }
  func.func @transform_1(%arg0: i32) -> (i32, i32) {
    %c0_i32 = arith.constant 0 : i32
    %c0_i32_0 = arith.constant 0 : i32
    return %c0_i32, %arg0 : i32, i32
  }
  func.func @transform_2(%arg0: i32) -> (i32, i32) {
    %c0_i32 = arith.constant 0 : i32
    %c0_i32_0 = arith.constant 0 : i32
    %c0_i32_1 = arith.constant 0 : i32
    return %c0_i32, %c0_i32_0 : i32, i32
  }
  func.func @transform_3(%arg0: i32) -> (i32, i32) {
    %c0_i32 = arith.constant 0 : i32
    %c0_i32_0 = arith.constant 0 : i32
    return %c0_i32, %arg0 : i32, i32
  }
  func.func @transform_4(%arg0: i32) -> (i32, i32) {
    %c0_i32 = arith.constant 0 : i32
    %c0_i32_0 = arith.constant 0 : i32
    return %c0_i32, %arg0 : i32, i32
  }
  func.func @transform_5(%arg0: i32) -> (i32, i32) {
    %c0_i32 = arith.constant 0 : i32
    %c0_i32_0 = arith.constant 0 : i32
    return %c0_i32, %arg0 : i32, i32
  }
}

</mosaic_0001>

<llo_original>
// kernel: encoder_decoder_forward.6
$region0: #{encoder_decoder_forward.6}
  #allocation0 [shape = 'u32[]', space=smem, size = 0x4, offset = 0x4, fixed_abs, tag = 'smem constant byte address 0x4 - core index']
  #allocation1 [shape = 'u32[144,128]{1,0:T(1,128)}', space=vmem, size = 0x12000, scoped, tag = 'internal scratch']
  %s0 = inlined_call_operand.vmem [shape: bf16[128,32], index: 0, kind: input, shape index: {}]
  %s1 = inlined_call_operand.vmem [shape: bf16[32,128], index: 1, kind: input, shape index: {}]
  %s2 = inlined_call_operand.vmem [shape: f32[128,128], index: 2, kind: input, shape index: {}]
  %s3 = inlined_call_operand.vmem [shape: f32[1,128], index: 3, kind: input, shape index: {}]
  %s4 = inlined_call_operand.vmem [shape: f32[1,128], index: 4, kind: input, shape index: {}]
  %s5 = inlined_call_operand.vmem [shape: bf16[128,128], index: 5, kind: output, shape index: {}]
  %s6 = sld [smem:[#allocation0]]
  $region30: #{encoder_decoder_forward.6} parent=0
    _
  %s8 = ssub.s32 1, %s6
  %s9 = scalar_select 0, %s8, %s6
  // Predicated region
  $region2: #{encoder_decoder_forward.6} parent=0 // pred_check
    _
  $region3: #{encoder_decoder_forward.6} parent=0 // pred_check_branch
    %11 = sbr.rel (0) target = $region5
  $region4: #{encoder_decoder_forward.6} parent=0 // pred_region
    _
  $region5: #{encoder_decoder_forward.6} parent=0 // pred_fallthru
    _
  // Predicated region
  $region6: #{encoder_decoder_forward.6} parent=0 // pred_check
    _
  $region7: #{encoder_decoder_forward.6} parent=0 // pred_check_branch
    %13 = sbr.rel (0) target = $region9
  $region8: #{encoder_decoder_forward.6} parent=0 // pred_region
    _
  $region9: #{encoder_decoder_forward.6} parent=0 // pred_fallthru
    _
  // Predicated region
  $region10: #{encoder_decoder_forward.6} parent=0 // pred_check
    _
  $region11: #{encoder_decoder_forward.6} parent=0 // pred_check_branch
    %15 = sbr.rel (0) target = $region13
  $region12: #{encoder_decoder_forward.6} parent=0 // pred_region
    _
  $region13: #{encoder_decoder_forward.6} parent=0 // pred_fallthru
    _
  // Predicated region
  $region14: #{encoder_decoder_forward.6} parent=0 // pred_check
    _
  $region15: #{encoder_decoder_forward.6} parent=0 // pred_check_branch
    %17 = sbr.rel (0) target = $region17
  $region16: #{encoder_decoder_forward.6} parent=0 // pred_region
    _
  $region17: #{encoder_decoder_forward.6} parent=0 // pred_fallthru
    _
  // Predicated region
  $region18: #{encoder_decoder_forward.6} parent=0 // pred_check
    _
  $region19: #{encoder_decoder_forward.6} parent=0 // pred_check_branch
    %19 = sbr.rel (0) target = $region21
  $region20: #{encoder_decoder_forward.6} parent=0 // pred_region
    _
  $region21: #{encoder_decoder_forward.6} parent=0 // pred_fallthru
    _
  %v21 = vld [vmem:[%s0] sm:$0xf]
  %v22 = vld [vmem:[%s0 + $0x4] sm:$0xf]
  %v23 = vld [vmem:[%s0 + $0x8] sm:$0xf]
  %v24 = vld [vmem:[%s0 + $0xc] sm:$0xf]
  %v25 = vld [vmem:[%s0 + $0x10] sm:$0xf]
  %v26 = vld [vmem:[%s0 + $0x14] sm:$0xf]
  %v27 = vld [vmem:[%s0 + $0x18] sm:$0xf]
  %v28 = vld [vmem:[%s0 + $0x1c] sm:$0xf]
  %v29 = vld [vmem:[%s0 + $0x20] sm:$0xf]
  %v30 = vld [vmem:[%s0 + $0x24] sm:$0xf]
  %v31 = vld [vmem:[%s0 + $0x28] sm:$0xf]
  %v32 = vld [vmem:[%s0 + $0x2c] sm:$0xf]
  %v33 = vld [vmem:[%s0 + $0x30] sm:$0xf]
  %v34 = vld [vmem:[%s0 + $0x34] sm:$0xf]
  %v35 = vld [vmem:[%s0 + $0x38] sm:$0xf]
  %v36 = vld [vmem:[%s0 + $0x3c] sm:$0xf]
  %v37 = vld [vmem:[%s1] sm:$0xf]
  %v38 = vld [vmem:[%s1 + $0x4] sm:$0xf]
  %v39 = vld [vmem:[%s1 + $0x8] sm:$0xf]
  %v40 = vld [vmem:[%s1 + $0xc] sm:$0xf]
  %v57 = vunpack.c.l.b16 %v21
  %v58 = vunpack.c.l.b16 %v22
  %v59 = vunpack.c.l.b16 %v23
  %v60 = vunpack.c.l.b16 %v24
  %v61 = vunpack.c.l.b16 %v25
  %v62 = vunpack.c.l.b16 %v26
  %v63 = vunpack.c.l.b16 %v27
  %v64 = vunpack.c.l.b16 %v28
  %v65 = vunpack.c.l.b16 %v29
  %v66 = vunpack.c.l.b16 %v30
  %v67 = vunpack.c.l.b16 %v31
  %v68 = vunpack.c.l.b16 %v32
  %v69 = vunpack.c.l.b16 %v33
  %v70 = vunpack.c.l.b16 %v34
  %v71 = vunpack.c.l.b16 %v35
  %v72 = vunpack.c.l.b16 %v36
  %v73 = vpack.c.b16 %v58, %v57
  %v74 = vpack.c.b16 %v60, %v59
  %v75 = vpack.c.b16 %v62, %v61
  %v76 = vpack.c.b16 %v64, %v63
  %v77 = vpack.c.b16 %v66, %v65
  %v78 = vpack.c.b16 %v68, %v67
  %v79 = vpack.c.b16 %v70, %v69
  %v80 = vpack.c.b16 %v72, %v71
  %v85 = vunpack.c.l.b16 %v37
  %v86 = vunpack.c.l.b16 %v38
  %v87 = vunpack.c.l.b16 %v39
  %v88 = vunpack.c.l.b16 %v40
  %v89 = vpack.c.b16 %v86, %v85
  %v90 = vpack.c.b16 %v88, %v87
  %vm93 = vcmask 261120
  %v95 = vsel %vm93, %v73, 0
  %v98 = vsel %vm93, %v74, 0
  %v101 = vsel %vm93, %v75, 0
  %v104 = vsel %vm93, %v76, 0
  %v107 = vsel %vm93, %v77, 0
  %v110 = vsel %vm93, %v78, 0
  %v113 = vsel %vm93, %v79, 0
  %v116 = vsel %vm93, %v80, 0
  %118 = vmatprep.subr.bf16.mxu0 0
  %119 = vmatpush1.bf16.msra.mxu0 %v89
  %120 = vmatprep.subr.bf16.mxu0 0
  %121 = vmatpush1.bf16.msra.mxu0 %v90
  %122 = vmatprep.subr.bf16.mxu0 0
  %123 = vmatpush1.bf16.msra.mxu0 0
  %124 = vmatprep.subr.bf16.mxu0 0
  %125 = vmatpush1.bf16.msra.mxu0 0
  %126 = vmatprep.subr.bf16.mxu0 0
  %127 = vmatpush1.bf16.msra.mxu0 0
  %128 = vmatprep.subr.bf16.mxu0 0
  %129 = vmatpush1.bf16.msra.mxu0 0
  %130 = vmatprep.subr.bf16.mxu0 0
  %131 = vmatpush1.bf16.msra.mxu0 0
  %132 = vmatprep.subr.bf16.mxu0 0
  %133 = vmatpush1.bf16.msra.mxu0 0
  %134 = vmatprep.subr.bf16.mxu0 0
  %135 = vmatpush1.bf16.msra.mxu0 0
  %136 = vmatprep.subr.bf16.mxu0 0
  %137 = vmatpush1.bf16.msra.mxu0 0
  %138 = vmatprep.subr.bf16.mxu0 0
  %139 = vmatpush1.bf16.msra.mxu0 0
  %140 = vmatprep.subr.bf16.mxu0 0
  %141 = vmatpush1.bf16.msra.mxu0 0
  %142 = vmatprep.subr.bf16.mxu0 0
  %143 = vmatpush1.bf16.msra.mxu0 0
  %144 = vmatprep.subr.bf16.mxu0 0
  %145 = vmatpush1.bf16.msra.mxu0 0
  %146 = vmatprep.subr.bf16.mxu0 0
  %147 = vmatpush1.bf16.msra.mxu0 0
  %148 = vmatprep.subr.bf16.mxu0 0
  %149 = vmatpush1.bf16.msra.mxu0 0
  %150 = vmatprep.mubr.bf16.mxu0 0
  %151 = vmatmul.mubr.bf16.gmra.mrb[0].mxu0 %v95
  %v152 = vpop.f32.mrb[0].mxu0
  %v153 = vadd.f32 0.0, %v152
  %v154 = vpop.f32.mrb[0].mxu0
  %v155 = vpop.f32.mrb[0].mxu0
  %v156 = vadd.f32 0.0, %v155
  %v157 = vpop.f32.mrb[0].mxu0
  %158 = vmatprep.mubr.bf16.mxu0 0
  %159 = vmatmul.mubr.bf16.gmra.mrb[0].mxu0 %v98
  %v160 = vpop.f32.mrb[0].mxu0
  %v161 = vadd.f32 0.0, %v160
  %v162 = vpop.f32.mrb[0].mxu0
  %v163 = vpop.f32.mrb[0].mxu0
  %v164 = vadd.f32 0.0, %v163
  %v165 = vpop.f32.mrb[0].mxu0
  %166 = vmatprep.mubr.bf16.mxu0 0
  %167 = vmatmul.mubr.bf16.gmra.mrb[0].mxu0 %v101
  %v168 = vpop.f32.mrb[0].mxu0
  %v169 = vadd.f32 0.0, %v168
  %v170 = vpop.f32.mrb[0].mxu0
  %v171 = vpop.f32.mrb[0].mxu0
  %v172 = vadd.f32 0.0, %v171
  %v173 = vpop.f32.mrb[0].mxu0
  %174 = vmatprep.mubr.bf16.mxu0 0
  %175 = vmatmul.mubr.bf16.gmra.mrb[0].mxu0 %v104
  %v176 = vpop.f32.mrb[0].mxu0
  %v177 = vadd.f32 0.0, %v176
  %v178 = vpop.f32.mrb[0].mxu0
  %v179 = vpop.f32.mrb[0].mxu0
  %v180 = vadd.f32 0.0, %v179
  %v181 = vpop.f32.mrb[0].mxu0
  %182 = vmatprep.mubr.bf16.mxu0 0
  %183 = vmatmul.mubr.bf16.gmra.mrb[0].mxu0 %v107
  %v184 = vpop.f32.mrb[0].mxu0
  %v185 = vadd.f32 0.0, %v184
  %v186 = vpop.f32.mrb[0].mxu0
  %v187 = vpop.f32.mrb[0].mxu0
  %v188 = vadd.f32 0.0, %v187
  %v189 = vpop.f32.mrb[0].mxu0
  %190 = vmatprep.mubr.bf16.mxu0 0
  %191 = vmatmul.mubr.bf16.gmra.mrb[0].mxu0 %v110
  %v192 = vpop.f32.mrb[0].mxu0
  %v193 = vadd.f32 0.0, %v192
  %v194 = vpop.f32.mrb[0].mxu0
  %v195 = vpop.f32.mrb[0].mxu0
  %v196 = vadd.f32 0.0, %v195
  %v197 = vpop.f32.mrb[0].mxu0
  %198 = vmatprep.mubr.bf16.mxu0 0
  %199 = vmatmul.mubr.bf16.gmra.mrb[0].mxu0 %v113
  %v200 = vpop.f32.mrb[0].mxu0
  %v201 = vadd.f32 0.0, %v200
  %v202 = vpop.f32.mrb[0].mxu0
  %v203 = vpop.f32.mrb[0].mxu0
  %v204 = vadd.f32 0.0, %v203
  %v205 = vpop.f32.mrb[0].mxu0
  %206 = vmatprep.mubr.bf16.mxu0 0
  %207 = vmatmul.mubr.bf16.gmra.mrb[0].mxu0 %v116
  %v208 = vpop.f32.mrb[0].mxu0
  %v209 = vadd.f32 0.0, %v208
  %v210 = vpop.f32.mrb[0].mxu0
  %v211 = vpop.f32.mrb[0].mxu0
  %v212 = vadd.f32 0.0, %v211
  %v213 = vpop.f32.mrb[0].mxu0
  %214 = vdwg.mxu0
  %v215 = vadd.f32 %v153, %v156
  %v216 = vadd.f32 %v215, %v161
  %v217 = vadd.f32 %v216, %v164
  %v218 = vadd.f32 %v217, %v169
  %v219 = vadd.f32 %v218, %v172
  %v220 = vadd.f32 %v219, %v177
  %v221 = vadd.f32 %v220, %v180
  %v222 = vadd.f32 %v221, %v185
  %v223 = vadd.f32 %v222, %v188
  %v224 = vadd.f32 %v223, %v193
  %v225 = vadd.f32 %v224, %v196
  %v226 = vadd.f32 %v225, %v201
  %v227 = vadd.f32 %v226, %v204
  %v228 = vadd.f32 %v227, %v209
  %v229 = vadd.f32 %v228, %v212
  %v230 = vrot.slane %v229, 4
  %v231 = vadd.f32 %v229, %v230
  %v232 = vrot.slane %v231, 2
  %v233 = vadd.f32 %v231, %v232
  %v234 = vrot.slane %v233, 1
  %v235 = vadd.f32 %v233, %v234
  %v236 = vmul.f32 %v153, %v153
  %v237 = vmul.f32 %v156, %v156
  %v238 = vmul.f32 %v161, %v161
  %v239 = vmul.f32 %v164, %v164
  %v240 = vmul.f32 %v169, %v169
  %v241 = vmul.f32 %v172, %v172
  %v242 = vmul.f32 %v177, %v177
  %v243 = vmul.f32 %v180, %v180
  %v244 = vmul.f32 %v185, %v185
  %v245 = vmul.f32 %v188, %v188
  %v246 = vmul.f32 %v193, %v193
  %v247 = vmul.f32 %v196, %v196
  %v248 = vmul.f32 %v201, %v201
  %v249 = vmul.f32 %v204, %v204
  %v250 = vmul.f32 %v209, %v209
  %v251 = vmul.f32 %v212, %v212
  %v252 = vadd.f32 %v236, %v237
  %v253 = vadd.f32 %v252, %v238
  %v254 = vadd.f32 %v253, %v239
  %v255 = vadd.f32 %v254, %v240
  %v256 = vadd.f32 %v255, %v241
  %v257 = vadd.f32 %v256, %v242
  %v258 = vadd.f32 %v257, %v243
  %v259 = vadd.f32 %v258, %v244
  %v260 = vadd.f32 %v259, %v245
  %v261 = vadd.f32 %v260, %v246
  %v262 = vadd.f32 %v261, %v247
  %v263 = vadd.f32 %v262, %v248
  %v264 = vadd.f32 %v263, %v249
  %v265 = vadd.f32 %v264, %v250
  %v266 = vadd.f32 %v265, %v251
  %v267 = vrot.slane %v266, 4
  %v268 = vadd.f32 %v266, %v267
  %v269 = vrot.slane %v268, 2
  %v270 = vadd.f32 %v268, %v269
  %v271 = vrot.slane %v270, 1
  %v272 = vadd.f32 %v270, %v271
  %v273 = vld [vmem:[%s2] sm:$0xff]
  %v274 = vld [vmem:[%s2 + $0x8] sm:$0xff]
  %v275 = vld [vmem:[%s2 + $0x10] sm:$0xff]
  %v276 = vld [vmem:[%s2 + $0x18] sm:$0xff]
  %v277 = vld [vmem:[%s2 + $0x20] sm:$0xff]
  %v278 = vld [vmem:[%s2 + $0x28] sm:$0xff]
  %v279 = vld [vmem:[%s2 + $0x30] sm:$0xff]
  %v280 = vld [vmem:[%s2 + $0x38] sm:$0xff]
  %v281 = vld [vmem:[%s2 + $0x40] sm:$0xff]
  %v282 = vld [vmem:[%s2 + $0x48] sm:$0xff]
  %v283 = vld [vmem:[%s2 + $0x50] sm:$0xff]
  %v284 = vld [vmem:[%s2 + $0x58] sm:$0xff]
  %v285 = vld [vmem:[%s2 + $0x60] sm:$0xff]
  %v286 = vld [vmem:[%s2 + $0x68] sm:$0xff]
  %v287 = vld [vmem:[%s2 + $0x70] sm:$0xff]
  %v288 = vld [vmem:[%s2 + $0x78] sm:$0xff]
  %289 = vmatprep.subr.mxu0 0.0
  %290 = vmatpush1.msra.mxu0 %v273
  %291 = vmatprep.subr.mxu0 0.0
  %292 = vmatpush1.msra.mxu0 %v274
  %293 = vmatprep.subr.mxu0 0.0
  %294 = vmatpush1.msra.mxu0 %v275
  %295 = vmatprep.subr.mxu0 0.0
  %296 = vmatpush1.msra.mxu0 %v276
  %297 = vmatprep.subr.mxu0 0.0
  %298 = vmatpush1.msra.mxu0 %v277
  %299 = vmatprep.subr.mxu0 0.0
  %300 = vmatpush1.msra.mxu0 %v278
  %301 = vmatprep.subr.mxu0 0.0
  %302 = vmatpush1.msra.mxu0 %v279
  %303 = vmatprep.subr.mxu0 0.0
  %304 = vmatpush1.msra.mxu0 %v280
  %305 = vmatprep.subr.mxu0 0.0
  %306 = vmatpush1.msra.mxu0 %v281
  %307 = vmatprep.subr.mxu0 0.0
  %308 = vmatpush1.msra.mxu0 %v282
  %309 = vmatprep.subr.mxu0 0.0
  %310 = vmatpush1.msra.mxu0 %v283
  %311 = vmatprep.subr.mxu0 0.0
  %312 = vmatpush1.msra.mxu0 %v284
  %313 = vmatprep.subr.mxu0 0.0
  %314 = vmatpush1.msra.mxu0 %v285
  %315 = vmatprep.subr.mxu0 0.0
  %316 = vmatpush1.msra.mxu0 %v286
  %317 = vmatprep.subr.mxu0 0.0
  %318 = vmatpush1.msra.mxu0 %v287
  %319 = vmatprep.subr.mxu0 0.0
  %320 = vmatpush1.msra.mxu0 %v288
  %321 = vmatprep.subr.mxu0 0.0
  %322 = vmatpush1.msra.mxu0 0.0
  %323 = vmatprep.subr.mxu0 0.0
  %324 = vmatpush1.msra.mxu0 0.0
  %325 = vmatprep.subr.mxu0 0.0
  %326 = vmatpush1.msra.mxu0 0.0
  %327 = vmatprep.subr.mxu0 0.0
  %328 = vmatpush1.msra.mxu0 0.0
  %329 = vmatprep.subr.mxu0 0.0
  %330 = vmatpush1.msra.mxu0 0.0
  %331 = vmatprep.subr.mxu0 0.0
  %332 = vmatpush1.msra.mxu0 0.0
  %333 = vmatprep.subr.mxu0 0.0
  %334 = vmatpush1.msra.mxu0 0.0
  %335 = vmatprep.subr.mxu0 0.0
  %336 = vmatpush1.msra.mxu0 0.0
  %337 = vmatprep.subr.mxu0 0.0
  %338 = vmatpush1.msra.mxu0 0.0
  %339 = vmatprep.subr.mxu0 0.0
  %340 = vmatpush1.msra.mxu0 0.0
  %341 = vmatprep.subr.mxu0 0.0
  %342 = vmatpush1.msra.mxu0 0.0
  %343 = vmatprep.subr.mxu0 0.0
  %344 = vmatpush1.msra.mxu0 0.0
  %345 = vmatprep.subr.mxu0 0.0
  %346 = vmatpush1.msra.mxu0 0.0
  %347 = vmatprep.subr.mxu0 0.0
  %348 = vmatpush1.msra.mxu0 0.0
  %349 = vmatprep.subr.mxu0 0.0
  %350 = vmatpush1.msra.mxu0 0.0
  %351 = vmatprep.subr.mxu0 0.0
  %352 = vmatpush1.msra.mxu0 0.0
  %353 = vmatprep.mubr.f32.mxu0 0.0
  %354 = vmatmul.mubr.f32.gmra.mrb[0].mxu0 %v235
  %v355 = vpop.f32.mrb[0].mxu0
  %v356 = vadd.f32 0.0, %v355
  %v357 = vpop.f32.mrb[0].mxu0
  %358 = vdwg.mxu0
  %359 = vmatprep.subr.mxu0 0.0
  %360 = vmatpush1.msra.mxu0 %v273
  %361 = vmatprep.subr.mxu0 0.0
  %362 = vmatpush1.msra.mxu0 %v274
  %363 = vmatprep.subr.mxu0 0.0
  %364 = vmatpush1.msra.mxu0 %v275
  %365 = vmatprep.subr.mxu0 0.0
  %366 = vmatpush1.msra.mxu0 %v276
  %367 = vmatprep.subr.mxu0 0.0
  %368 = vmatpush1.msra.mxu0 %v277
  %369 = vmatprep.subr.mxu0 0.0
  %370 = vmatpush1.msra.mxu0 %v278
  %371 = vmatprep.subr.mxu0 0.0
  %372 = vmatpush1.msra.mxu0 %v279
  %373 = vmatprep.subr.mxu0 0.0
  %374 = vmatpush1.msra.mxu0 %v280
  %375 = vmatprep.subr.mxu0 0.0
  %376 = vmatpush1.msra.mxu0 %v281
  %377 = vmatprep.subr.mxu0 0.0
  %378 = vmatpush1.msra.mxu0 %v282
  %379 = vmatprep.subr.mxu0 0.0
  %380 = vmatpush1.msra.mxu0 %v283
  %381 = vmatprep.subr.mxu0 0.0
  %382 = vmatpush1.msra.mxu0 %v284
  %383 = vmatprep.subr.mxu0 0.0
  %384 = vmatpush1.msra.mxu0 %v285
  %385 = vmatprep.subr.mxu0 0.0
  %386 = vmatpush1.msra.mxu0 %v286
  %387 = vmatprep.subr.mxu0 0.0
  %388 = vmatpush1.msra.mxu0 %v287
  %389 = vmatprep.subr.mxu0 0.0
  %390 = vmatpush1.msra.mxu0 %v288
  %391 = vmatprep.subr.mxu0 0.0
  %392 = vmatpush1.msra.mxu0 0.0
  %393 = vmatprep.subr.mxu0 0.0
  %394 = vmatpush1.msra.mxu0 0.0
  %395 = vmatprep.subr.mxu0 0.0
  %396 = vmatpush1.msra.mxu0 0.0
  %397 = vmatprep.subr.mxu0 0.0
  %398 = vmatpush1.msra.mxu0 0.0
  %399 = vmatprep.subr.mxu0 0.0
  %400 = vmatpush1.msra.mxu0 0.0
  %401 = vmatprep.subr.mxu0 0.0
  %402 = vmatpush1.msra.mxu0 0.0
  %403 = vmatprep.subr.mxu0 0.0
  %404 = vmatpush1.msra.mxu0 0.0
  %405 = vmatprep.subr.mxu0 0.0
  %406 = vmatpush1.msra.mxu0 0.0
  %407 = vmatprep.subr.mxu0 0.0
  %408 = vmatpush1.msra.mxu0 0.0
  %409 = vmatprep.subr.mxu0 0.0
  %410 = vmatpush1.msra.mxu0 0.0
  %411 = vmatprep.subr.mxu0 0.0
  %412 = vmatpush1.msra.mxu0 0.0
  %413 = vmatprep.subr.mxu0 0.0
  %414 = vmatpush1.msra.mxu0 0.0
  %415 = vmatprep.subr.mxu0 0.0
  %416 = vmatpush1.msra.mxu0 0.0
  %417 = vmatprep.subr.mxu0 0.0
  %418 = vmatpush1.msra.mxu0 0.0
  %419 = vmatprep.subr.mxu0 0.0
  %420 = vmatpush1.msra.mxu0 0.0
  %421 = vmatprep.subr.mxu0 0.0
  %422 = vmatpush1.msra.mxu0 0.0
  %423 = vmatprep.mubr.f32.mxu0 0.0
  %424 = vmatmul.mubr.f32.gmra.mrb[0].mxu0 %v272
  %v425 = vpop.f32.mrb[0].mxu0
  %v426 = vadd.f32 0.0, %v425
  %v427 = vpop.f32.mrb[0].mxu0
  %428 = vdwg.mxu0
  %v429 = vmul.f32 %v356, 0.0078125
  %v430 = vmul.f32 %v426, 0.0078125
  %v431 = vmul.f32 %v429, %v429
  %v432 = vsub.f32 %v430, %v431
  %v433 = vmax.f32 %v432, 0.0
  %v434 = vld [vmem:[%s3] sm:$0x1]
  %v435 = vadd.f32 %v433, 1e-05
  %v436 = vrsqrt.pop %v435
  %v437 = vmul.f32 %v434, %v436
  %v438 = vld [vmem:[%s4] sm:$0x1]
  %v439 = vmul.f32 %v429, %v437
  %v440 = vsub.f32 %v438, %v439
  %v442 = vlaneseq
  %v443 = vshrl.u32 %v442, 7
  %v444 = vsub.s32 0, %v443
  %v445 = vrot.slane %v437, %v444
  %v447 = vmul.f32 %v153, %v445
  %v448 = vmul.f32 %v156, %v445
  %v449 = vmul.f32 %v161, %v445
  %v450 = vmul.f32 %v164, %v445
  %v451 = vmul.f32 %v169, %v445
  %v452 = vmul.f32 %v172, %v445
  %v453 = vmul.f32 %v177, %v445
  %v454 = vmul.f32 %v180, %v445
  %v455 = vmul.f32 %v185, %v445
  %v456 = vmul.f32 %v188, %v445
  %v457 = vmul.f32 %v193, %v445
  %v458 = vmul.f32 %v196, %v445
  %v459 = vmul.f32 %v201, %v445
  %v460 = vmul.f32 %v204, %v445
  %v461 = vmul.f32 %v209, %v445
  %v462 = vmul.f32 %v212, %v445
  %v464 = vlaneseq
  %v465 = vshrl.u32 %v464, 7
  %v466 = vsub.s32 0, %v465
  %v467 = vrot.slane %v440, %v466
  %v469 = vadd.f32 %v447, %v467
  %v470 = vadd.f32 %v448, %v467
  %v471 = vadd.f32 %v449, %v467
  %v472 = vadd.f32 %v450, %v467
  %v473 = vadd.f32 %v451, %v467
  %v474 = vadd.f32 %v452, %v467
  %v475 = vadd.f32 %v453, %v467
  %v476 = vadd.f32 %v454, %v467
  %v477 = vadd.f32 %v455, %v467
  %v478 = vadd.f32 %v456, %v467
  %v479 = vadd.f32 %v457, %v467
  %v480 = vadd.f32 %v458, %v467
  %v481 = vadd.f32 %v459, %v467
  %v482 = vadd.f32 %v460, %v467
  %v483 = vadd.f32 %v461, %v467
  %v484 = vadd.f32 %v462, %v467
  %v485 = vmax.f32 %v469, 0.0
  %v486 = vmax.f32 %v470, 0.0
  %v487 = vmax.f32 %v471, 0.0
  %v488 = vmax.f32 %v472, 0.0
  %v489 = vmax.f32 %v473, 0.0
  %v490 = vmax.f32 %v474, 0.0
  %v491 = vmax.f32 %v475, 0.0
  %v492 = vmax.f32 %v476, 0.0
  %v493 = vmax.f32 %v477, 0.0
  %v494 = vmax.f32 %v478, 0.0
  %v495 = vmax.f32 %v479, 0.0
  %v496 = vmax.f32 %v480, 0.0
  %v497 = vmax.f32 %v481, 0.0
  %v498 = vmax.f32 %v482, 0.0
  %v499 = vmax.f32 %v483, 0.0
  %v500 = vmax.f32 %v484, 0.0
  %v501 = vpack.c.bf16 %v486, %v485
  %v502 = vpack.c.bf16 %v488, %v487
  %v503 = vpack.c.bf16 %v490, %v489
  %v504 = vpack.c.bf16 %v492, %v491
  %v505 = vpack.c.bf16 %v494, %v493
  %v506 = vpack.c.bf16 %v496, %v495
  %v507 = vpack.c.bf16 %v498, %v497
  %v508 = vpack.c.bf16 %v500, %v499
  %v517 = vunpack.c.l.b16 %v501
  %v518 = vunpack.c.h.b16 %v501
  %v519 = vunpack.c.l.b16 %v502
  %v520 = vunpack.c.h.b16 %v502
  %v521 = vunpack.c.l.b16 %v503
  %v522 = vunpack.c.h.b16 %v503
  %v523 = vunpack.c.l.b16 %v504
  %v524 = vunpack.c.h.b16 %v504
  %v525 = vunpack.c.l.b16 %v505
  %v526 = vunpack.c.h.b16 %v505
  %v527 = vunpack.c.l.b16 %v506
  %v528 = vunpack.c.h.b16 %v506
  %v529 = vunpack.c.l.b16 %v507
  %v530 = vunpack.c.h.b16 %v507
  %v531 = vunpack.c.l.b16 %v508
  %v532 = vunpack.c.h.b16 %v508
  %v533 = vpack.c.b16 %v517, %v517
  %v534 = vpack.c.b16 %v518, %v518
  %v535 = vpack.c.b16 %v519, %v519
  %v536 = vpack.c.b16 %v520, %v520
  %v537 = vpack.c.b16 %v521, %v521
  %v538 = vpack.c.b16 %v522, %v522
  %v539 = vpack.c.b16 %v523, %v523
  %v540 = vpack.c.b16 %v524, %v524
  %v541 = vpack.c.b16 %v525, %v525
  %v542 = vpack.c.b16 %v526, %v526
  %v543 = vpack.c.b16 %v527, %v527
  %v544 = vpack.c.b16 %v528, %v528
  %v545 = vpack.c.b16 %v529, %v529
  %v546 = vpack.c.b16 %v530, %v530
  %v547 = vpack.c.b16 %v531, %v531
  %v548 = vpack.c.b16 %v532, %v532
  %565 = vst [vmem:[%s5] sm:$0xf] %v533
  %566 = vst [vmem:[%s5 + $0x4] sm:$0xf] %v534
  %567 = vst [vmem:[%s5 + $0x8] sm:$0xf] %v535
  %568 = vst [vmem:[%s5 + $0xc] sm:$0xf] %v536
  %569 = vst [vmem:[%s5 + $0x10] sm:$0xf] %v537
  %570 = vst [vmem:[%s5 + $0x14] sm:$0xf] %v538
  %571 = vst [vmem:[%s5 + $0x18] sm:$0xf] %v539
  %572 = vst [vmem:[%s5 + $0x1c] sm:$0xf] %v540
  %573 = vst [vmem:[%s5 + $0x20] sm:$0xf] %v541
  %574 = vst [vmem:[%s5 + $0x24] sm:$0xf] %v542
  %575 = vst [vmem:[%s5 + $0x28] sm:$0xf] %v543
  %576 = vst [vmem:[%s5 + $0x2c] sm:$0xf] %v544
  %577 = vst [vmem:[%s5 + $0x30] sm:$0xf] %v545
  %578 = vst [vmem:[%s5 + $0x34] sm:$0xf] %v546
  %579 = vst [vmem:[%s5 + $0x38] sm:$0xf] %v547
  %580 = vst [vmem:[%s5 + $0x3c] sm:$0xf] %v548
  // Predicated region
  $region22: #{encoder_decoder_forward.6} parent=0 // pred_check
    _
  $region23: #{encoder_decoder_forward.6} parent=0 // pred_check_branch
    %582 = sbr.rel (0) target = $region25
  $region24: #{encoder_decoder_forward.6} parent=0 // pred_region
    _
  $region25: #{encoder_decoder_forward.6} parent=0 // pred_fallthru
    _
  // Predicated region
  $region26: #{encoder_decoder_forward.6} parent=0 // pred_check
    _
  $region27: #{encoder_decoder_forward.6} parent=0 // pred_check_branch
    %584 = sbr.rel (0) target = $region29
  $region28: #{encoder_decoder_forward.6} parent=0 // pred_region
    _
  $region29: #{encoder_decoder_forward.6} parent=0 // pred_fallthru
    _

// kernel: encoder_decoder_forward.7
$region0: #{encoder_decoder_forward.7}
  #allocation0 [shape = 'u32[]', space=smem, size = 0x4, offset = 0x4, fixed_abs, tag = 'smem constant byte address 0x4 - core index']
  #allocation1 [shape = 'u32[144,128]{1,0:T(1,128)}', space=vmem, size = 0x12000, scoped, tag = 'internal scratch']
  %s0 = inlined_call_operand.vmem [shape: bf16[32,288], index: 0, kind: input, shape index: {}]
  %s1 = inlined_call_operand.vmem [shape: bf16[288,128], index: 1, kind: input, shape index: {}]
  %s2 = inlined_call_operand.vmem [shape: f32[128,128], index: 2, kind: input, shape index: {}]
  %s3 = inlined_call_operand.vmem [shape: f32[1,128], index: 3, kind: input, shape index: {}]
  %s4 = inlined_call_operand.vmem [shape: f32[1,128], index: 4, kind: input, shape index: {}]
  %s5 = inlined_call_operand.vmem [shape: bf16[32,128], index: 5, kind: output, shape index: {}]
  %s6 = sld [smem:[#allocation0]]
  $region30: #{encoder_decoder_forward.7} parent=0
    _
  %s8 = ssub.s32 1, %s6
  %s9 = scalar_select 0, %s8, %s6
  // Predicated region
  $region2: #{encoder_decoder_forward.7} parent=0 // pred_check
    _
  $region3: #{encoder_decoder_forward.7} parent=0 // pred_check_branch
    %11 = sbr.rel (0) target = $region5
  $region4: #{encoder_decoder_forward.7} parent=0 // pred_region
    _
  $region5: #{encoder_decoder_forward.7} parent=0 // pred_fallthru
    _
  // Predicated region
  $region6: #{encoder_decoder_forward.7} parent=0 // pred_check
    _
  $region7: #{encoder_decoder_forward.7} parent=0 // pred_check_branch
    %13 = sbr.rel (0) target = $region9
  $region8: #{encoder_decoder_forward.7} parent=0 // pred_region
    _
  $region9: #{encoder_decoder_forward.7} parent=0 // pred_fallthru
    _
  // Predicated region
  $region10: #{encoder_decoder_forward.7} parent=0 // pred_check
    _
  $region11: #{encoder_decoder_forward.7} parent=0 // pred_check_branch
    %15 = sbr.rel (0) target = $region13
  $region12: #{encoder_decoder_forward.7} parent=0 // pred_region
    _
  $region13: #{encoder_decoder_forward.7} parent=0 // pred_fallthru
    _
  // Predicated region
  $region14: #{encoder_decoder_forward.7} parent=0 // pred_check
    _
  $region15: #{encoder_decoder_forward.7} parent=0 // pred_check_branch
    %17 = sbr.rel (0) target = $region17
  $region16: #{encoder_decoder_forward.7} parent=0 // pred_region
    _
  $region17: #{encoder_decoder_forward.7} parent=0 // pred_fallthru
    _
  // Predicated region
  $region18: #{encoder_decoder_forward.7} parent=0 // pred_check
    _
  $region19: #{encoder_decoder_forward.7} parent=0 // pred_check_branch
    %19 = sbr.rel (0) target = $region21
  $region20: #{encoder_decoder_forward.7} parent=0 // pred_region
    _
  $region21: #{encoder_decoder_forward.7} parent=0 // pred_fallthru
    _
  %v21 = vld [vmem:[%s0] sm:$0xff]
  %v22 = vld [vmem:[%s0 + $0x8] sm:$0xf]
  %v23 = vld [vmem:[%s0 + $0xc] sm:$0xff]
  %v24 = vld [vmem:[%s0 + $0x14] sm:$0xf]
  %v25 = vld [vmem:[%s0 + $0x18] sm:$0xff]
  %v26 = vld [vmem:[%s0 + $0x20] sm:$0xf]
  %v27 = vld [vmem:[%s0 + $0x24] sm:$0xff]
  %v28 = vld [vmem:[%s0 + $0x2c] sm:$0xf]
  %v29 = vld [vmem:[%s1] sm:$0xf]
  %v30 = vld [vmem:[%s1 + $0x4] sm:$0xf]
  %v31 = vld [vmem:[%s1 + $0x8] sm:$0xf]
  %v32 = vld [vmem:[%s1 + $0xc] sm:$0xf]
  %v33 = vld [vmem:[%s1 + $0x10] sm:$0xf]
  %v34 = vld [vmem:[%s1 + $0x14] sm:$0xf]
  %v35 = vld [vmem:[%s1 + $0x18] sm:$0xf]
  %v36 = vld [vmem:[%s1 + $0x1c] sm:$0xf]
  %v37 = vld [vmem:[%s1 + $0x20] sm:$0xf]
  %v38 = vld [vmem:[%s1 + $0x24] sm:$0xf]
  %v39 = vld [vmem:[%s1 + $0x28] sm:$0xf]
  %v40 = vld [vmem:[%s1 + $0x2c] sm:$0xf]
  %v41 = vld [vmem:[%s1 + $0x30] sm:$0xf]
  %v42 = vld [vmem:[%s1 + $0x34] sm:$0xf]
  %v43 = vld [vmem:[%s1 + $0x38] sm:$0xf]
  %v44 = vld [vmem:[%s1 + $0x3c] sm:$0xf]
  %v45 = vld [vmem:[%s1 + $0x40] sm:$0xf]
  %v46 = vld [vmem:[%s1 + $0x44] sm:$0xf]
  %v47 = vld [vmem:[%s1 + $0x48] sm:$0xf]
  %v48 = vld [vmem:[%s1 + $0x4c] sm:$0xf]
  %v49 = vld [vmem:[%s1 + $0x50] sm:$0xf]
  %v50 = vld [vmem:[%s1 + $0x54] sm:$0xf]
  %v51 = vld [vmem:[%s1 + $0x58] sm:$0xf]
  %v52 = vld [vmem:[%s1 + $0x5c] sm:$0xf]
  %v53 = vld [vmem:[%s1 + $0x60] sm:$0xf]
  %v54 = vld [vmem:[%s1 + $0x64] sm:$0xf]
  %v55 = vld [vmem:[%s1 + $0x68] sm:$0xf]
  %v56 = vld [vmem:[%s1 + $0x6c] sm:$0xf]
  %v57 = vld [vmem:[%s1 + $0x70] sm:$0xf]
  %v58 = vld [vmem:[%s1 + $0x74] sm:$0xf]
  %v59 = vld [vmem:[%s1 + $0x78] sm:$0xf]
  %v60 = vld [vmem:[%s1 + $0x7c] sm:$0xf]
  %v61 = vld [vmem:[%s1 + $0x80] sm:$0xf]
  %v62 = vld [vmem:[%s1 + $0x84] sm:$0xf]
  %v63 = vld [vmem:[%s1 + $0x88] sm:$0xf]
  %v64 = vld [vmem:[%s1 + $0x8c] sm:$0xf]
  %v73 = vunpack.c.l.b16 %v21
  %v74 = vunpack.c.h.b16 %v21
  %v75 = vunpack.c.l.b16 %v22
  %v76 = vunpack.c.l.b16 %v23
  %v77 = vunpack.c.h.b16 %v23
  %v78 = vunpack.c.l.b16 %v24
  %v79 = vunpack.c.l.b16 %v25
  %v80 = vunpack.c.h.b16 %v25
  %v81 = vunpack.c.l.b16 %v26
  %v82 = vunpack.c.l.b16 %v27
  %v83 = vunpack.c.h.b16 %v27
  %v84 = vunpack.c.l.b16 %v28
  %v85 = vpack.c.b16 %v76, %v73
  %v86 = vpack.c.b16 %v77, %v74
  %v87 = vpack.c.b16 %v78, %v75
  %v88 = vpack.c.b16 %v82, %v79
  %v89 = vpack.c.b16 %v83, %v80
  %v90 = vpack.c.b16 %v84, %v81
  %v131 = vunpack.c.l.b16 %v29
  %v132 = vunpack.c.l.b16 %v30
  %v133 = vunpack.c.l.b16 %v31
  %v134 = vunpack.c.l.b16 %v32
  %v135 = vunpack.c.l.b16 %v33
  %v136 = vunpack.c.l.b16 %v34
  %v137 = vunpack.c.l.b16 %v35
  %v138 = vunpack.c.l.b16 %v36
  %v139 = vunpack.c.l.b16 %v37
  %v140 = vunpack.c.l.b16 %v38
  %v141 = vunpack.c.l.b16 %v39
  %v142 = vunpack.c.l.b16 %v40
  %v143 = vunpack.c.l.b16 %v41
  %v144 = vunpack.c.l.b16 %v42
  %v145 = vunpack.c.l.b16 %v43
  %v146 = vunpack.c.l.b16 %v44
  %v147 = vunpack.c.l.b16 %v45
  %v148 = vunpack.c.l.b16 %v46
  %v149 = vunpack.c.l.b16 %v47
  %v150 = vunpack.c.l.b16 %v48
  %v151 = vunpack.c.l.b16 %v49
  %v152 = vunpack.c.l.b16 %v50
  %v153 = vunpack.c.l.b16 %v51
  %v154 = vunpack.c.l.b16 %v52
  %v155 = vunpack.c.l.b16 %v53
  %v156 = vunpack.c.l.b16 %v54
  %v157 = vunpack.c.l.b16 %v55
  %v158 = vunpack.c.l.b16 %v56
  %v159 = vunpack.c.l.b16 %v57
  %v160 = vunpack.c.l.b16 %v58
  %v161 = vunpack.c.l.b16 %v59
  %v162 = vunpack.c.l.b16 %v60
  %v163 = vunpack.c.l.b16 %v61
  %v164 = vunpack.c.l.b16 %v62
  %v165 = vunpack.c.l.b16 %v63
  %v166 = vunpack.c.l.b16 %v64
  %v167 = vpack.c.b16 %v132, %v131
  %v168 = vpack.c.b16 %v134, %v133
  %v169 = vpack.c.b16 %v136, %v135
  %v170 = vpack.c.b16 %v138, %v137
  %v171 = vpack.c.b16 %v140, %v139
  %v172 = vpack.c.b16 %v142, %v141
  %v173 = vpack.c.b16 %v144, %v143
  %v174 = vpack.c.b16 %v146, %v145
  %v175 = vpack.c.b16 %v148, %v147
  %v176 = vpack.c.b16 %v150, %v149
  %v177 = vpack.c.b16 %v152, %v151
  %v178 = vpack.c.b16 %v154, %v153
  %v179 = vpack.c.b16 %v156, %v155
  %v180 = vpack.c.b16 %v158, %v157
  %v181 = vpack.c.b16 %v160, %v159
  %v182 = vpack.c.b16 %v162, %v161
  %v183 = vpack.c.b16 %v164, %v163
  %v184 = vpack.c.b16 %v166, %v165
  %vm203 = vcmask 261120
  %v205 = vsel %vm203, %v87, 0
  %v208 = vsel %vm203, %v90, 0
  %210 = vmatprep.subr.bf16.mxu0 0
  %211 = vmatpush1.bf16.msra.mxu0 %v167
  %212 = vmatprep.subr.bf16.mxu0 0
  %213 = vmatpush1.bf16.msra.mxu0 %v168
  %214 = vmatprep.subr.bf16.mxu0 0
  %215 = vmatpush1.bf16.msra.mxu0 %v169
  %216 = vmatprep.subr.bf16.mxu0 0
  %217 = vmatpush1.bf16.msra.mxu0 %v170
  %218 = vmatprep.subr.bf16.mxu0 0
  %219 = vmatpush1.bf16.msra.mxu0 %v171
  %220 = vmatprep.subr.bf16.mxu0 0
  %221 = vmatpush1.bf16.msra.mxu0 %v172
  %222 = vmatprep.subr.bf16.mxu0 0
  %223 = vmatpush1.bf16.msra.mxu0 %v173
  %224 = vmatprep.subr.bf16.mxu0 0
  %225 = vmatpush1.bf16.msra.mxu0 %v174
  %226 = vmatprep.subr.bf16.mxu0 0
  %227 = vmatpush1.bf16.msra.mxu0 %v175
  %228 = vmatprep.subr.bf16.mxu0 0
  %229 = vmatpush1.bf16.msra.mxu0 %v176
  %230 = vmatprep.subr.bf16.mxu0 0
  %231 = vmatpush1.bf16.msra.mxu0 %v177
  %232 = vmatprep.subr.bf16.mxu0 0
  %233 = vmatpush1.bf16.msra.mxu0 %v178
  %234 = vmatprep.subr.bf16.mxu0 0
  %235 = vmatpush1.bf16.msra.mxu0 %v179
  %236 = vmatprep.subr.bf16.mxu0 0
  %237 = vmatpush1.bf16.msra.mxu0 %v180
  %238 = vmatprep.subr.bf16.mxu0 0
  %239 = vmatpush1.bf16.msra.mxu0 %v181
  %240 = vmatprep.subr.bf16.mxu0 0
  %241 = vmatpush1.bf16.msra.mxu0 %v182
  %242 = vmatprep.mubr.bf16.mxu0 %v86
  %243 = vmatmul.mubr.bf16.gmra.mrb[0].mxu0 %v85
  %v244 = vpop.f32.mrb[0].mxu0
  %v245 = vadd.f32 0.0, %v244
  %v246 = vpop.f32.mrb[0].mxu0
  %v247 = vpop.f32.mrb[0].mxu0
  %v248 = vadd.f32 0.0, %v247
  %v249 = vpop.f32.mrb[0].mxu0
  %250 = vmatprep.mubr.bf16.mxu0 %v89
  %251 = vmatmul.mubr.bf16.gmra.mrb[0].mxu0 %v88
  %v252 = vpop.f32.mrb[0].mxu0
  %v253 = vadd.f32 0.0, %v252
  %v254 = vpop.f32.mrb[0].mxu0
  %v255 = vpop.f32.mrb[0].mxu0
  %v256 = vadd.f32 0.0, %v255
  %v257 = vpop.f32.mrb[0].mxu0
  %258 = vdwg.mxu0
  %259 = vmatprep.subr.bf16.mxu0 0
  %260 = vmatpush1.bf16.msra.mxu0 %v183
  %261 = vmatprep.subr.bf16.mxu0 0
  %262 = vmatpush1.bf16.msra.mxu0 %v184
  %263 = vmatprep.subr.bf16.mxu0 0
  %264 = vmatpush1.bf16.msra.mxu0 0
  %265 = vmatprep.subr.bf16.mxu0 0
  %266 = vmatpush1.bf16.msra.mxu0 0
  %267 = vmatprep.subr.bf16.mxu0 0
  %268 = vmatpush1.bf16.msra.mxu0 0
  %269 = vmatprep.subr.bf16.mxu0 0
  %270 = vmatpush1.bf16.msra.mxu0 0
  %271 = vmatprep.subr.bf16.mxu0 0
  %272 = vmatpush1.bf16.msra.mxu0 0
  %273 = vmatprep.subr.bf16.mxu0 0
  %274 = vmatpush1.bf16.msra.mxu0 0
  %275 = vmatprep.subr.bf16.mxu0 0
  %276 = vmatpush1.bf16.msra.mxu0 0
  %277 = vmatprep.subr.bf16.mxu0 0
  %278 = vmatpush1.bf16.msra.mxu0 0
  %279 = vmatprep.subr.bf16.mxu0 0
  %280 = vmatpush1.bf16.msra.mxu0 0
  %281 = vmatprep.subr.bf16.mxu0 0
  %282 = vmatpush1.bf16.msra.mxu0 0
  %283 = vmatprep.subr.bf16.mxu0 0
  %284 = vmatpush1.bf16.msra.mxu0 0
  %285 = vmatprep.subr.bf16.mxu0 0
  %286 = vmatpush1.bf16.msra.mxu0 0
  %287 = vmatprep.subr.bf16.mxu0 0
  %288 = vmatpush1.bf16.msra.mxu0 0
  %289 = vmatprep.subr.bf16.mxu0 0
  %290 = vmatpush1.bf16.msra.mxu0 0
  %291 = vmatprep.mubr.bf16.mxu0 0
  %292 = vmatmul.mubr.bf16.gmra.mrb[0].mxu0 %v205
  %v293 = vpop.f32.mrb[0].mxu0
  %v294 = vadd.f32 %v245, %v293
  %v295 = vpop.f32.mrb[0].mxu0
  %v296 = vpop.f32.mrb[0].mxu0
  %v297 = vadd.f32 %v248, %v296
  %v298 = vpop.f32.mrb[0].mxu0
  %299 = vmatprep.mubr.bf16.mxu0 0
  %300 = vmatmul.mubr.bf16.gmra.mrb[0].mxu0 %v208
  %v301 = vpop.f32.mrb[0].mxu0
  %v302 = vadd.f32 %v253, %v301
  %v303 = vpop.f32.mrb[0].mxu0
  %v304 = vpop.f32.mrb[0].mxu0
  %v305 = vadd.f32 %v256, %v304
  %v306 = vpop.f32.mrb[0].mxu0
  %307 = vdwg.mxu0
  %v308 = vadd.f32 %v294, %v297
  %v309 = vadd.f32 %v308, %v302
  %v310 = vadd.f32 %v309, %v305
  %v311 = vrot.slane %v310, 4
  %v312 = vadd.f32 %v310, %v311
  %v313 = vrot.slane %v312, 2
  %v314 = vadd.f32 %v312, %v313
  %v315 = vrot.slane %v314, 1
  %v316 = vadd.f32 %v314, %v315
  %v317 = vmul.f32 %v294, %v294
  %v318 = vmul.f32 %v297, %v297
  %v319 = vmul.f32 %v302, %v302
  %v320 = vmul.f32 %v305, %v305
  %v321 = vadd.f32 %v317, %v318
  %v322 = vadd.f32 %v321, %v319
  %v323 = vadd.f32 %v322, %v320
  %v324 = vrot.slane %v323, 4
  %v325 = vadd.f32 %v323, %v324
  %v326 = vrot.slane %v325, 2
  %v327 = vadd.f32 %v325, %v326
  %v328 = vrot.slane %v327, 1
  %v329 = vadd.f32 %v327, %v328
  %v330 = vld [vmem:[%s2] sm:$0xff]
  %v331 = vld [vmem:[%s2 + $0x8] sm:$0xff]
  %v332 = vld [vmem:[%s2 + $0x10] sm:$0xff]
  %v333 = vld [vmem:[%s2 + $0x18] sm:$0xff]
  %v334 = vld [vmem:[%s2 + $0x20] sm:$0xff]
  %v335 = vld [vmem:[%s2 + $0x28] sm:$0xff]
  %v336 = vld [vmem:[%s2 + $0x30] sm:$0xff]
  %v337 = vld [vmem:[%s2 + $0x38] sm:$0xff]
  %v338 = vld [vmem:[%s2 + $0x40] sm:$0xff]
  %v339 = vld [vmem:[%s2 + $0x48] sm:$0xff]
  %v340 = vld [vmem:[%s2 + $0x50] sm:$0xff]
  %v341 = vld [vmem:[%s2 + $0x58] sm:$0xff]
  %v342 = vld [vmem:[%s2 + $0x60] sm:$0xff]
  %v343 = vld [vmem:[%s2 + $0x68] sm:$0xff]
  %v344 = vld [vmem:[%s2 + $0x70] sm:$0xff]
  %v345 = vld [vmem:[%s2 + $0x78] sm:$0xff]
  %346 = vmatprep.subr.mxu0 0.0
  %347 = vmatpush1.msra.mxu0 %v330
  %348 = vmatprep.subr.mxu0 0.0
  %349 = vmatpush1.msra.mxu0 %v331
  %350 = vmatprep.subr.mxu0 0.0
  %351 = vmatpush1.msra.mxu0 %v332
  %352 = vmatprep.subr.mxu0 0.0
  %353 = vmatpush1.msra.mxu0 %v333
  %354 = vmatprep.subr.mxu0 0.0
  %355 = vmatpush1.msra.mxu0 %v334
  %356 = vmatprep.subr.mxu0 0.0
  %357 = vmatpush1.msra.mxu0 %v335
  %358 = vmatprep.subr.mxu0 0.0
  %359 = vmatpush1.msra.mxu0 %v336
  %360 = vmatprep.subr.mxu0 0.0
  %361 = vmatpush1.msra.mxu0 %v337
  %362 = vmatprep.subr.mxu0 0.0
  %363 = vmatpush1.msra.mxu0 %v338
  %364 = vmatprep.subr.mxu0 0.0
  %365 = vmatpush1.msra.mxu0 %v339
  %366 = vmatprep.subr.mxu0 0.0
  %367 = vmatpush1.msra.mxu0 %v340
  %368 = vmatprep.subr.mxu0 0.0
  %369 = vmatpush1.msra.mxu0 %v341
  %370 = vmatprep.subr.mxu0 0.0
  %371 = vmatpush1.msra.mxu0 %v342
  %372 = vmatprep.subr.mxu0 0.0
  %373 = vmatpush1.msra.mxu0 %v343
  %374 = vmatprep.subr.mxu0 0.0
  %375 = vmatpush1.msra.mxu0 %v344
  %376 = vmatprep.subr.mxu0 0.0
  %377 = vmatpush1.msra.mxu0 %v345
  %378 = vmatprep.subr.mxu0 0.0
  %379 = vmatpush1.msra.mxu0 0.0
  %380 = vmatprep.subr.mxu0 0.0
  %381 = vmatpush1.msra.mxu0 0.0
  %382 = vmatprep.subr.mxu0 0.0
  %383 = vmatpush1.msra.mxu0 0.0
  %384 = vmatprep.subr.mxu0 0.0
  %385 = vmatpush1.msra.mxu0 0.0
  %386 = vmatprep.subr.mxu0 0.0
  %387 = vmatpush1.msra.mxu0 0.0
  %388 = vmatprep.subr.mxu0 0.0
  %389 = vmatpush1.msra.mxu0 0.0
  %390 = vmatprep.subr.mxu0 0.0
  %391 = vmatpush1.msra.mxu0 0.0
  %392 = vmatprep.subr.mxu0 0.0
  %393 = vmatpush1.msra.mxu0 0.0
  %394 = vmatprep.subr.mxu0 0.0
  %395 = vmatpush1.msra.mxu0 0.0
  %396 = vmatprep.subr.mxu0 0.0
  %397 = vmatpush1.msra.mxu0 0.0
  %398 = vmatprep.subr.mxu0 0.0
  %399 = vmatpush1.msra.mxu0 0.0
  %400 = vmatprep.subr.mxu0 0.0
  %401 = vmatpush1.msra.mxu0 0.0
  %402 = vmatprep.subr.mxu0 0.0
  %403 = vmatpush1.msra.mxu0 0.0
  %404 = vmatprep.subr.mxu0 0.0
  %405 = vmatpush1.msra.mxu0 0.0
  %406 = vmatprep.subr.mxu0 0.0
  %407 = vmatpush1.msra.mxu0 0.0
  %408 = vmatprep.subr.mxu0 0.0
  %409 = vmatpush1.msra.mxu0 0.0
  %410 = vmatprep.mubr.f32.mxu0 0.0
  %411 = vmatmul.mubr.f32.gmra.mrb[0].mxu0 %v316
  %v412 = vpop.f32.mrb[0].mxu0
  %v413 = vadd.f32 0.0, %v412
  %v414 = vpop.f32.mrb[0].mxu0
  %415 = vdwg.mxu0
  %416 = vmatprep.subr.mxu0 0.0
  %417 = vmatpush1.msra.mxu0 %v330
  %418 = vmatprep.subr.mxu0 0.0
  %419 = vmatpush1.msra.mxu0 %v331
  %420 = vmatprep.subr.mxu0 0.0
  %421 = vmatpush1.msra.mxu0 %v332
  %422 = vmatprep.subr.mxu0 0.0
  %423 = vmatpush1.msra.mxu0 %v333
  %424 = vmatprep.subr.mxu0 0.0
  %425 = vmatpush1.msra.mxu0 %v334
  %426 = vmatprep.subr.mxu0 0.0
  %427 = vmatpush1.msra.mxu0 %v335
  %428 = vmatprep.subr.mxu0 0.0
  %429 = vmatpush1.msra.mxu0 %v336
  %430 = vmatprep.subr.mxu0 0.0
  %431 = vmatpush1.msra.mxu0 %v337
  %432 = vmatprep.subr.mxu0 0.0
  %433 = vmatpush1.msra.mxu0 %v338
  %434 = vmatprep.subr.mxu0 0.0
  %435 = vmatpush1.msra.mxu0 %v339
  %436 = vmatprep.subr.mxu0 0.0
  %437 = vmatpush1.msra.mxu0 %v340
  %438 = vmatprep.subr.mxu0 0.0
  %439 = vmatpush1.msra.mxu0 %v341
  %440 = vmatprep.subr.mxu0 0.0
  %441 = vmatpush1.msra.mxu0 %v342
  %442 = vmatprep.subr.mxu0 0.0
  %443 = vmatpush1.msra.mxu0 %v343
  %444 = vmatprep.subr.mxu0 0.0
  %445 = vmatpush1.msra.mxu0 %v344
  %446 = vmatprep.subr.mxu0 0.0
  %447 = vmatpush1.msra.mxu0 %v345
  %448 = vmatprep.subr.mxu0 0.0
  %449 = vmatpush1.msra.mxu0 0.0
  %450 = vmatprep.subr.mxu0 0.0
  %451 = vmatpush1.msra.mxu0 0.0
  %452 = vmatprep.subr.mxu0 0.0
  %453 = vmatpush1.msra.mxu0 0.0
  %454 = vmatprep.subr.mxu0 0.0
  %455 = vmatpush1.msra.mxu0 0.0
  %456 = vmatprep.subr.mxu0 0.0
  %457 = vmatpush1.msra.mxu0 0.0
  %458 = vmatprep.subr.mxu0 0.0
  %459 = vmatpush1.msra.mxu0 0.0
  %460 = vmatprep.subr.mxu0 0.0
  %461 = vmatpush1.msra.mxu0 0.0
  %462 = vmatprep.subr.mxu0 0.0
  %463 = vmatpush1.msra.mxu0 0.0
  %464 = vmatprep.subr.mxu0 0.0
  %465 = vmatpush1.msra.mxu0 0.0
  %466 = vmatprep.subr.mxu0 0.0
  %467 = vmatpush1.msra.mxu0 0.0
  %468 = vmatprep.subr.mxu0 0.0
  %469 = vmatpush1.msra.mxu0 0.0
  %470 = vmatprep.subr.mxu0 0.0
  %471 = vmatpush1.msra.mxu0 0.0
  %472 = vmatprep.subr.mxu0 0.0
  %473 = vmatpush1.msra.mxu0 0.0
  %474 = vmatprep.subr.mxu0 0.0
  %475 = vmatpush1.msra.mxu0 0.0
  %476 = vmatprep.subr.mxu0 0.0
  %477 = vmatpush1.msra.mxu0 0.0
  %478 = vmatprep.subr.mxu0 0.0
  %479 = vmatpush1.msra.mxu0 0.0
  %480 = vmatprep.mubr.f32.mxu0 0.0
  %481 = vmatmul.mubr.f32.gmra.mrb[0].mxu0 %v329
  %v482 = vpop.f32.mrb[0].mxu0
  %v483 = vadd.f32 0.0, %v482
  %v484 = vpop.f32.mrb[0].mxu0
  %485 = vdwg.mxu0
  %v486 = vmul.f32 %v413, 0.03125
  %v487 = vmul.f32 %v483, 0.03125
  %v488 = vmul.f32 %v486, %v486
  %v489 = vsub.f32 %v487, %v488
  %v490 = vmax.f32 %v489, 0.0
  %v491 = vld [vmem:[%s3] sm:$0x1]
  %v492 = vadd.f32 %v490, 1e-05
  %v493 = vrsqrt.pop %v492
  %v494 = vmul.f32 %v491, %v493
  %v495 = vld [vmem:[%s4] sm:$0x1]
  %v496 = vmul.f32 %v486, %v494
  %v497 = vsub.f32 %v495, %v496
  %v499 = vlaneseq
  %v500 = vshrl.u32 %v499, 7
  %v501 = vsub.s32 0, %v500
  %v502 = vrot.slane %v494, %v501
  %v504 = vmul.f32 %v294, %v502
  %v505 = vmul.f32 %v297, %v502
  %v506 = vmul.f32 %v302, %v502
  %v507 = vmul.f32 %v305, %v502
  %v509 = vlaneseq
  %v510 = vshrl.u32 %v509, 7
  %v511 = vsub.s32 0, %v510
  %v512 = vrot.slane %v497, %v511
  %v514 = vadd.f32 %v504, %v512
  %v515 = vadd.f32 %v505, %v512
  %v516 = vadd.f32 %v506, %v512
  %v517 = vadd.f32 %v507, %v512
  %v518 = vmax.f32 %v514, 0.0
  %v519 = vmax.f32 %v515, 0.0
  %v520 = vmax.f32 %v516, 0.0
  %v521 = vmax.f32 %v517, 0.0
  %v522 = vpack.c.bf16 %v519, %v518
  %v523 = vpack.c.bf16 %v521, %v520
  %v526 = vunpack.c.l.b16 %v522
  %v527 = vunpack.c.h.b16 %v522
  %v528 = vunpack.c.l.b16 %v523
  %v529 = vunpack.c.h.b16 %v523
  %v530 = vpack.c.b16 %v526, %v526
  %v531 = vpack.c.b16 %v527, %v527
  %v532 = vpack.c.b16 %v528, %v528
  %v533 = vpack.c.b16 %v529, %v529
  %538 = vst [vmem:[%s5] sm:$0xf] %v530
  %539 = vst [vmem:[%s5 + $0x4] sm:$0xf] %v531
  %540 = vst [vmem:[%s5 + $0x8] sm:$0xf] %v532
  %541 = vst [vmem:[%s5 + $0xc] sm:$0xf] %v533
  // Predicated region
  $region22: #{encoder_decoder_forward.7} parent=0 // pred_check
    _
  $region23: #{encoder_decoder_forward.7} parent=0 // pred_check_branch
    %543 = sbr.rel (0) target = $region25
  $region24: #{encoder_decoder_forward.7} parent=0 // pred_region
    _
  $region25: #{encoder_decoder_forward.7} parent=0 // pred_fallthru
    _
  // Predicated region
  $region26: #{encoder_decoder_forward.7} parent=0 // pred_check
    _
  $region27: #{encoder_decoder_forward.7} parent=0 // pred_check_branch
    %545 = sbr.rel (0) target = $region29
  $region28: #{encoder_decoder_forward.7} parent=0 // pred_region
    _
  $region29: #{encoder_decoder_forward.7} parent=0 // pred_fallthru
    _

// kernel: encoder_decoder_forward.8
$region0: #{encoder_decoder_forward.8}
  #allocation0 [shape = 'u32[]', space=smem, size = 0x4, offset = 0x4, fixed_abs, tag = 'smem constant byte address 0x4 - core index']
  #allocation1 [shape = 'u32[144,128]{1,0:T(1,128)}', space=vmem, size = 0x12000, scoped, tag = 'internal scratch']
  %s0 = inlined_call_operand.vmem [shape: bf16[8,576], index: 0, kind: input, shape index: {}]
  %s1 = inlined_call_operand.vmem [shape: bf16[576,128], index: 1, kind: input, shape index: {}]
  %s2 = inlined_call_operand.vmem [shape: f32[128,128], index: 2, kind: input, shape index: {}]
  %s3 = inlined_call_operand.vmem [shape: f32[1,128], index: 3, kind: input, shape index: {}]
  %s4 = inlined_call_operand.vmem [shape: f32[1,128], index: 4, kind: input, shape index: {}]
  %s5 = inlined_call_operand.vmem [shape: bf16[8,128], index: 5, kind: output, shape index: {}]
  %s6 = sld [smem:[#allocation0]]
  $region30: #{encoder_decoder_forward.8} parent=0
    _
  %s8 = ssub.s32 1, %s6
  %s9 = scalar_select 0, %s8, %s6
  // Predicated region
  $region2: #{encoder_decoder_forward.8} parent=0 // pred_check
    _
  $region3: #{encoder_decoder_forward.8} parent=0 // pred_check_branch
    %11 = sbr.rel (0) target = $region5
  $region4: #{encoder_decoder_forward.8} parent=0 // pred_region
    _
  $region5: #{encoder_decoder_forward.8} parent=0 // pred_fallthru
    _
  // Predicated region
  $region6: #{encoder_decoder_forward.8} parent=0 // pred_check
    _
  $region7: #{encoder_decoder_forward.8} parent=0 // pred_check_branch
    %13 = sbr.rel (0) target = $region9
  $region8: #{encoder_decoder_forward.8} parent=0 // pred_region
    _
  $region9: #{encoder_decoder_forward.8} parent=0 // pred_fallthru
    _
  // Predicated region
  $region10: #{encoder_decoder_forward.8} parent=0 // pred_check
    _
  $region11: #{encoder_decoder_forward.8} parent=0 // pred_check_branch
    %15 = sbr.rel (0) target = $region13
  $region12: #{encoder_decoder_forward.8} parent=0 // pred_region
    _
  $region13: #{encoder_decoder_forward.8} parent=0 // pred_fallthru
    _
  // Predicated region
  $region14: #{encoder_decoder_forward.8} parent=0 // pred_check
    _
  $region15: #{encoder_decoder_forward.8} parent=0 // pred_check_branch
    %17 = sbr.rel (0) target = $region17
  $region16: #{encoder_decoder_forward.8} parent=0 // pred_region
    _
  $region17: #{encoder_decoder_forward.8} parent=0 // pred_fallthru
    _
  // Predicated region
  $region18: #{encoder_decoder_forward.8} parent=0 // pred_check
    _
  $region19: #{encoder_decoder_forward.8} parent=0 // pred_check_branch
    %19 = sbr.rel (0) target = $region21
  $region20: #{encoder_decoder_forward.8} parent=0 // pred_region
    _
  $region21: #{encoder_decoder_forward.8} parent=0 // pred_fallthru
    _
  %v21 = vld [vmem:[%s0] sm:$0xff]
  %v22 = vld [vmem:[%s0 + $0x8] sm:$0xff]
  %v23 = vld [vmem:[%s0 + $0x10] sm:$0xf]
  %v24 = vld [vmem:[%s1] sm:$0xf]
  %v25 = vld [vmem:[%s1 + $0x4] sm:$0xf]
  %v26 = vld [vmem:[%s1 + $0x8] sm:$0xf]
  %v27 = vld [vmem:[%s1 + $0xc] sm:$0xf]
  %v28 = vld [vmem:[%s1 + $0x10] sm:$0xf]
  %v29 = vld [vmem:[%s1 + $0x14] sm:$0xf]
  %v30 = vld [vmem:[%s1 + $0x18] sm:$0xf]
  %v31 = vld [vmem:[%s1 + $0x1c] sm:$0xf]
  %v32 = vld [vmem:[%s1 + $0x20] sm:$0xf]
  %v33 = vld [vmem:[%s1 + $0x24] sm:$0xf]
  %v34 = vld [vmem:[%s1 + $0x28] sm:$0xf]
  %v35 = vld [vmem:[%s1 + $0x2c] sm:$0xf]
  %v36 = vld [vmem:[%s1 + $0x30] sm:$0xf]
  %v37 = vld [vmem:[%s1 + $0x34] sm:$0xf]
  %v38 = vld [vmem:[%s1 + $0x38] sm:$0xf]
  %v39 = vld [vmem:[%s1 + $0x3c] sm:$0xf]
  %v40 = vld [vmem:[%s1 + $0x40] sm:$0xf]
  %v41 = vld [vmem:[%s1 + $0x44] sm:$0xf]
  %v42 = vld [vmem:[%s1 + $0x48] sm:$0xf]
  %v43 = vld [vmem:[%s1 + $0x4c] sm:$0xf]
  %v44 = vld [vmem:[%s1 + $0x50] sm:$0xf]
  %v45 = vld [vmem:[%s1 + $0x54] sm:$0xf]
  %v46 = vld [vmem:[%s1 + $0x58] sm:$0xf]
  %v47 = vld [vmem:[%s1 + $0x5c] sm:$0xf]
  %v48 = vld [vmem:[%s1 + $0x60] sm:$0xf]
  %v49 = vld [vmem:[%s1 + $0x64] sm:$0xf]
  %v50 = vld [vmem:[%s1 + $0x68] sm:$0xf]
  %v51 = vld [vmem:[%s1 + $0x6c] sm:$0xf]
  %v52 = vld [vmem:[%s1 + $0x70] sm:$0xf]
  %v53 = vld [vmem:[%s1 + $0x74] sm:$0xf]
  %v54 = vld [vmem:[%s1 + $0x78] sm:$0xf]
  %v55 = vld [vmem:[%s1 + $0x7c] sm:$0xf]
  %v56 = vld [vmem:[%s1 + $0x80] sm:$0xf]
  %v57 = vld [vmem:[%s1 + $0x84] sm:$0xf]
  %v58 = vld [vmem:[%s1 + $0x88] sm:$0xf]
  %v59 = vld [vmem:[%s1 + $0x8c] sm:$0xf]
  %v60 = vld [vmem:[%s1 + $0x90] sm:$0xf]
  %v61 = vld [vmem:[%s1 + $0x94] sm:$0xf]
  %v62 = vld [vmem:[%s1 + $0x98] sm:$0xf]
  %v63 = vld [vmem:[%s1 + $0x9c] sm:$0xf]
  %v64 = vld [vmem:[%s1 + $0xa0] sm:$0xf]
  %v65 = vld [vmem:[%s1 + $0xa4] sm:$0xf]
  %v66 = vld [vmem:[%s1 + $0xa8] sm:$0xf]
  %v67 = vld [vmem:[%s1 + $0xac] sm:$0xf]
  %v68 = vld [vmem:[%s1 + $0xb0] sm:$0xf]
  %v69 = vld [vmem:[%s1 + $0xb4] sm:$0xf]
  %v70 = vld [vmem:[%s1 + $0xb8] sm:$0xf]
  %v71 = vld [vmem:[%s1 + $0xbc] sm:$0xf]
  %v72 = vld [vmem:[%s1 + $0xc0] sm:$0xf]
  %v73 = vld [vmem:[%s1 + $0xc4] sm:$0xf]
  %v74 = vld [vmem:[%s1 + $0xc8] sm:$0xf]
  %v75 = vld [vmem:[%s1 + $0xcc] sm:$0xf]
  %v76 = vld [vmem:[%s1 + $0xd0] sm:$0xf]
  %v77 = vld [vmem:[%s1 + $0xd4] sm:$0xf]
  %v78 = vld [vmem:[%s1 + $0xd8] sm:$0xf]
  %v79 = vld [vmem:[%s1 + $0xdc] sm:$0xf]
  %v80 = vld [vmem:[%s1 + $0xe0] sm:$0xf]
  %v81 = vld [vmem:[%s1 + $0xe4] sm:$0xf]
  %v82 = vld [vmem:[%s1 + $0xe8] sm:$0xf]
  %v83 = vld [vmem:[%s1 + $0xec] sm:$0xf]
  %v84 = vld [vmem:[%s1 + $0xf0] sm:$0xf]
  %v85 = vld [vmem:[%s1 + $0xf4] sm:$0xf]
  %v86 = vld [vmem:[%s1 + $0xf8] sm:$0xf]
  %v87 = vld [vmem:[%s1 + $0xfc] sm:$0xf]
  %v88 = vld [vmem:[%s1 + $0x100] sm:$0xf]
  %v89 = vld [vmem:[%s1 + $0x104] sm:$0xf]
  %v90 = vld [vmem:[%s1 + $0x108] sm:$0xf]
  %v91 = vld [vmem:[%s1 + $0x10c] sm:$0xf]
  %v92 = vld [vmem:[%s1 + $0x110] sm:$0xf]
  %v93 = vld [vmem:[%s1 + $0x114] sm:$0xf]
  %v94 = vld [vmem:[%s1 + $0x118] sm:$0xf]
  %v95 = vld [vmem:[%s1 + $0x11c] sm:$0xf]
  %v99 = vunpack.c.l.b16 %v21
  %v100 = vunpack.c.h.b16 %v21
  %v101 = vunpack.c.l.b16 %v22
  %v102 = vunpack.c.h.b16 %v22
  %v103 = vunpack.c.l.b16 %v23
  %v104 = vpack.c.b16 %v99, %v99
  %v105 = vpack.c.b16 %v100, %v100
  %v106 = vpack.c.b16 %v101, %v101
  %v107 = vpack.c.b16 %v102, %v102
  %v108 = vpack.c.b16 %v103, %v103
  %v185 = vunpack.c.l.b16 %v24
  %v186 = vunpack.c.l.b16 %v25
  %v187 = vunpack.c.l.b16 %v26
  %v188 = vunpack.c.l.b16 %v27
  %v189 = vunpack.c.l.b16 %v28
  %v190 = vunpack.c.l.b16 %v29
  %v191 = vunpack.c.l.b16 %v30
  %v192 = vunpack.c.l.b16 %v31
  %v193 = vunpack.c.l.b16 %v32
  %v194 = vunpack.c.l.b16 %v33
  %v195 = vunpack.c.l.b16 %v34
  %v196 = vunpack.c.l.b16 %v35
  %v197 = vunpack.c.l.b16 %v36
  %v198 = vunpack.c.l.b16 %v37
  %v199 = vunpack.c.l.b16 %v38
  %v200 = vunpack.c.l.b16 %v39
  %v201 = vunpack.c.l.b16 %v40
  %v202 = vunpack.c.l.b16 %v41
  %v203 = vunpack.c.l.b16 %v42
  %v204 = vunpack.c.l.b16 %v43
  %v205 = vunpack.c.l.b16 %v44
  %v206 = vunpack.c.l.b16 %v45
  %v207 = vunpack.c.l.b16 %v46
  %v208 = vunpack.c.l.b16 %v47
  %v209 = vunpack.c.l.b16 %v48
  %v210 = vunpack.c.l.b16 %v49
  %v211 = vunpack.c.l.b16 %v50
  %v212 = vunpack.c.l.b16 %v51
  %v213 = vunpack.c.l.b16 %v52
  %v214 = vunpack.c.l.b16 %v53
  %v215 = vunpack.c.l.b16 %v54
  %v216 = vunpack.c.l.b16 %v55
  %v217 = vunpack.c.l.b16 %v56
  %v218 = vunpack.c.l.b16 %v57
  %v219 = vunpack.c.l.b16 %v58
  %v220 = vunpack.c.l.b16 %v59
  %v221 = vunpack.c.l.b16 %v60
  %v222 = vunpack.c.l.b16 %v61
  %v223 = vunpack.c.l.b16 %v62
  %v224 = vunpack.c.l.b16 %v63
  %v225 = vunpack.c.l.b16 %v64
  %v226 = vunpack.c.l.b16 %v65
  %v227 = vunpack.c.l.b16 %v66
  %v228 = vunpack.c.l.b16 %v67
  %v229 = vunpack.c.l.b16 %v68
  %v230 = vunpack.c.l.b16 %v69
  %v231 = vunpack.c.l.b16 %v70
  %v232 = vunpack.c.l.b16 %v71
  %v233 = vunpack.c.l.b16 %v72
  %v234 = vunpack.c.l.b16 %v73
  %v235 = vunpack.c.l.b16 %v74
  %v236 = vunpack.c.l.b16 %v75
  %v237 = vunpack.c.l.b16 %v76
  %v238 = vunpack.c.l.b16 %v77
  %v239 = vunpack.c.l.b16 %v78
  %v240 = vunpack.c.l.b16 %v79
  %v241 = vunpack.c.l.b16 %v80
  %v242 = vunpack.c.l.b16 %v81
  %v243 = vunpack.c.l.b16 %v82
  %v244 = vunpack.c.l.b16 %v83
  %v245 = vunpack.c.l.b16 %v84
  %v246 = vunpack.c.l.b16 %v85
  %v247 = vunpack.c.l.b16 %v86
  %v248 = vunpack.c.l.b16 %v87
  %v249 = vunpack.c.l.b16 %v88
  %v250 = vunpack.c.l.b16 %v89
  %v251 = vunpack.c.l.b16 %v90
  %v252 = vunpack.c.l.b16 %v91
  %v253 = vunpack.c.l.b16 %v92
  %v254 = vunpack.c.l.b16 %v93
  %v255 = vunpack.c.l.b16 %v94
  %v256 = vunpack.c.l.b16 %v95
  %v257 = vpack.c.b16 %v186, %v185
  %v258 = vpack.c.b16 %v188, %v187
  %v259 = vpack.c.b16 %v190, %v189
  %v260 = vpack.c.b16 %v192, %v191
  %v261 = vpack.c.b16 %v194, %v193
  %v262 = vpack.c.b16 %v196, %v195
  %v263 = vpack.c.b16 %v198, %v197
  %v264 = vpack.c.b16 %v200, %v199
  %v265 = vpack.c.b16 %v202, %v201
  %v266 = vpack.c.b16 %v204, %v203
  %v267 = vpack.c.b16 %v206, %v205
  %v268 = vpack.c.b16 %v208, %v207
  %v269 = vpack.c.b16 %v210, %v209
  %v270 = vpack.c.b16 %v212, %v211
  %v271 = vpack.c.b16 %v214, %v213
  %v272 = vpack.c.b16 %v216, %v215
  %v273 = vpack.c.b16 %v218, %v217
  %v274 = vpack.c.b16 %v220, %v219
  %v275 = vpack.c.b16 %v222, %v221
  %v276 = vpack.c.b16 %v224, %v223
  %v277 = vpack.c.b16 %v226, %v225
  %v278 = vpack.c.b16 %v228, %v227
  %v279 = vpack.c.b16 %v230, %v229
  %v280 = vpack.c.b16 %v232, %v231
  %v281 = vpack.c.b16 %v234, %v233
  %v282 = vpack.c.b16 %v236, %v235
  %v283 = vpack.c.b16 %v238, %v237
  %v284 = vpack.c.b16 %v240, %v239
  %v285 = vpack.c.b16 %v242, %v241
  %v286 = vpack.c.b16 %v244, %v243
  %v287 = vpack.c.b16 %v246, %v245
  %v288 = vpack.c.b16 %v248, %v247
  %v289 = vpack.c.b16 %v250, %v249
  %v290 = vpack.c.b16 %v252, %v251
  %v291 = vpack.c.b16 %v254, %v253
  %v292 = vpack.c.b16 %v256, %v255
  %vm329 = vcmask 523264
  %v331 = vsel %vm329, %v108, 0
  %333 = vmatprep.subr.bf16.mxu0 0
  %334 = vmatpush1.bf16.msra.mxu0 %v257
  %335 = vmatprep.subr.bf16.mxu0 0
  %336 = vmatpush1.bf16.msra.mxu0 %v258
  %337 = vmatprep.subr.bf16.mxu0 0
  %338 = vmatpush1.bf16.msra.mxu0 %v259
  %339 = vmatprep.subr.bf16.mxu0 0
  %340 = vmatpush1.bf16.msra.mxu0 %v260
  %341 = vmatprep.subr.bf16.mxu0 0
  %342 = vmatpush1.bf16.msra.mxu0 %v261
  %343 = vmatprep.subr.bf16.mxu0 0
  %344 = vmatpush1.bf16.msra.mxu0 %v262
  %345 = vmatprep.subr.bf16.mxu0 0
  %346 = vmatpush1.bf16.msra.mxu0 %v263
  %347 = vmatprep.subr.bf16.mxu0 0
  %348 = vmatpush1.bf16.msra.mxu0 %v264
  %349 = vmatprep.subr.bf16.mxu0 0
  %350 = vmatpush1.bf16.msra.mxu0 %v265
  %351 = vmatprep.subr.bf16.mxu0 0
  %352 = vmatpush1.bf16.msra.mxu0 %v266
  %353 = vmatprep.subr.bf16.mxu0 0
  %354 = vmatpush1.bf16.msra.mxu0 %v267
  %355 = vmatprep.subr.bf16.mxu0 0
  %356 = vmatpush1.bf16.msra.mxu0 %v268
  %357 = vmatprep.subr.bf16.mxu0 0
  %358 = vmatpush1.bf16.msra.mxu0 %v269
  %359 = vmatprep.subr.bf16.mxu0 0
  %360 = vmatpush1.bf16.msra.mxu0 %v270
  %361 = vmatprep.subr.bf16.mxu0 0
  %362 = vmatpush1.bf16.msra.mxu0 %v271
  %363 = vmatprep.subr.bf16.mxu0 0
  %364 = vmatpush1.bf16.msra.mxu0 %v272
  %365 = vmatprep.mubr.bf16.mxu0 %v105
  %366 = vmatmul.mubr.bf16.gmra.mrb[0].mxu0 %v104
  %v367 = vpop.f32.mrb[0].mxu0
  %v368 = vadd.f32 0.0, %v367
  %v369 = vpop.f32.mrb[0].mxu0
  %v370 = vpop.f32.mrb[0].mxu0
  %v371 = vpop.f32.mrb[0].mxu0
  %372 = vdwg.mxu0
  %373 = vmatprep.subr.bf16.mxu0 0
  %374 = vmatpush1.bf16.msra.mxu0 %v273
  %375 = vmatprep.subr.bf16.mxu0 0
  %376 = vmatpush1.bf16.msra.mxu0 %v274
  %377 = vmatprep.subr.bf16.mxu0 0
  %378 = vmatpush1.bf16.msra.mxu0 %v275
  %379 = vmatprep.subr.bf16.mxu0 0
  %380 = vmatpush1.bf16.msra.mxu0 %v276
  %381 = vmatprep.subr.bf16.mxu0 0
  %382 = vmatpush1.bf16.msra.mxu0 %v277
  %383 = vmatprep.subr.bf16.mxu0 0
  %384 = vmatpush1.bf16.msra.mxu0 %v278
  %385 = vmatprep.subr.bf16.mxu0 0
  %386 = vmatpush1.bf16.msra.mxu0 %v279
  %387 = vmatprep.subr.bf16.mxu0 0
  %388 = vmatpush1.bf16.msra.mxu0 %v280
  %389 = vmatprep.subr.bf16.mxu0 0
  %390 = vmatpush1.bf16.msra.mxu0 %v281
  %391 = vmatprep.subr.bf16.mxu0 0
  %392 = vmatpush1.bf16.msra.mxu0 %v282
  %393 = vmatprep.subr.bf16.mxu0 0
  %394 = vmatpush1.bf16.msra.mxu0 %v283
  %395 = vmatprep.subr.bf16.mxu0 0
  %396 = vmatpush1.bf16.msra.mxu0 %v284
  %397 = vmatprep.subr.bf16.mxu0 0
  %398 = vmatpush1.bf16.msra.mxu0 %v285
  %399 = vmatprep.subr.bf16.mxu0 0
  %400 = vmatpush1.bf16.msra.mxu0 %v286
  %401 = vmatprep.subr.bf16.mxu0 0
  %402 = vmatpush1.bf16.msra.mxu0 %v287
  %403 = vmatprep.subr.bf16.mxu0 0
  %404 = vmatpush1.bf16.msra.mxu0 %v288
  %405 = vmatprep.mubr.bf16.mxu0 %v107
  %406 = vmatmul.mubr.bf16.gmra.mrb[0].mxu0 %v106
  %v407 = vpop.f32.mrb[0].mxu0
  %v408 = vadd.f32 %v368, %v407
  %v409 = vpop.f32.mrb[0].mxu0
  %v410 = vpop.f32.mrb[0].mxu0
  %v411 = vpop.f32.mrb[0].mxu0
  %412 = vdwg.mxu0
  %413 = vmatprep.subr.bf16.mxu0 0
  %414 = vmatpush1.bf16.msra.mxu0 %v289
  %415 = vmatprep.subr.bf16.mxu0 0
  %416 = vmatpush1.bf16.msra.mxu0 %v290
  %417 = vmatprep.subr.bf16.mxu0 0
  %418 = vmatpush1.bf16.msra.mxu0 %v291
  %419 = vmatprep.subr.bf16.mxu0 0
  %420 = vmatpush1.bf16.msra.mxu0 %v292
  %421 = vmatprep.subr.bf16.mxu0 0
  %422 = vmatpush1.bf16.msra.mxu0 0
  %423 = vmatprep.subr.bf16.mxu0 0
  %424 = vmatpush1.bf16.msra.mxu0 0
  %425 = vmatprep.subr.bf16.mxu0 0
  %426 = vmatpush1.bf16.msra.mxu0 0
  %427 = vmatprep.subr.bf16.mxu0 0
  %428 = vmatpush1.bf16.msra.mxu0 0
  %429 = vmatprep.subr.bf16.mxu0 0
  %430 = vmatpush1.bf16.msra.mxu0 0
  %431 = vmatprep.subr.bf16.mxu0 0
  %432 = vmatpush1.bf16.msra.mxu0 0
  %433 = vmatprep.subr.bf16.mxu0 0
  %434 = vmatpush1.bf16.msra.mxu0 0
  %435 = vmatprep.subr.bf16.mxu0 0
  %436 = vmatpush1.bf16.msra.mxu0 0
  %437 = vmatprep.subr.bf16.mxu0 0
  %438 = vmatpush1.bf16.msra.mxu0 0
  %439 = vmatprep.subr.bf16.mxu0 0
  %440 = vmatpush1.bf16.msra.mxu0 0
  %441 = vmatprep.subr.bf16.mxu0 0
  %442 = vmatpush1.bf16.msra.mxu0 0
  %443 = vmatprep.subr.bf16.mxu0 0
  %444 = vmatpush1.bf16.msra.mxu0 0
  %445 = vmatprep.mubr.bf16.mxu0 0
  %446 = vmatmul.mubr.bf16.gmra.mrb[0].mxu0 %v331
  %v447 = vpop.f32.mrb[0].mxu0
  %v448 = vadd.f32 %v408, %v447
  %v449 = vpop.f32.mrb[0].mxu0
  %v450 = vpop.f32.mrb[0].mxu0
  %v451 = vpop.f32.mrb[0].mxu0
  %452 = vdwg.mxu0
  %v453 = vrot.slane %v448, 4
  %v454 = vadd.f32 %v448, %v453
  %v455 = vrot.slane %v454, 2
  %v456 = vadd.f32 %v454, %v455
  %v457 = vrot.slane %v456, 1
  %v458 = vadd.f32 %v456, %v457
  %v459 = vmul.f32 %v448, %v448
  %v460 = vrot.slane %v459, 4
  %v461 = vadd.f32 %v459, %v460
  %v462 = vrot.slane %v461, 2
  %v463 = vadd.f32 %v461, %v462
  %v464 = vrot.slane %v463, 1
  %v465 = vadd.f32 %v463, %v464
  %v466 = vld [vmem:[%s2] sm:$0xff]
  %v467 = vld [vmem:[%s2 + $0x8] sm:$0xff]
  %v468 = vld [vmem:[%s2 + $0x10] sm:$0xff]
  %v469 = vld [vmem:[%s2 + $0x18] sm:$0xff]
  %v470 = vld [vmem:[%s2 + $0x20] sm:$0xff]
  %v471 = vld [vmem:[%s2 + $0x28] sm:$0xff]
  %v472 = vld [vmem:[%s2 + $0x30] sm:$0xff]
  %v473 = vld [vmem:[%s2 + $0x38] sm:$0xff]
  %v474 = vld [vmem:[%s2 + $0x40] sm:$0xff]
  %v475 = vld [vmem:[%s2 + $0x48] sm:$0xff]
  %v476 = vld [vmem:[%s2 + $0x50] sm:$0xff]
  %v477 = vld [vmem:[%s2 + $0x58] sm:$0xff]
  %v478 = vld [vmem:[%s2 + $0x60] sm:$0xff]
  %v479 = vld [vmem:[%s2 + $0x68] sm:$0xff]
  %v480 = vld [vmem:[%s2 + $0x70] sm:$0xff]
  %v481 = vld [vmem:[%s2 + $0x78] sm:$0xff]
  %482 = vmatprep.subr.mxu0 0.0
  %483 = vmatpush1.msra.mxu0 %v466
  %484 = vmatprep.subr.mxu0 0.0
  %485 = vmatpush1.msra.mxu0 %v467
  %486 = vmatprep.subr.mxu0 0.0
  %487 = vmatpush1.msra.mxu0 %v468
  %488 = vmatprep.subr.mxu0 0.0
  %489 = vmatpush1.msra.mxu0 %v469
  %490 = vmatprep.subr.mxu0 0.0
  %491 = vmatpush1.msra.mxu0 %v470
  %492 = vmatprep.subr.mxu0 0.0
  %493 = vmatpush1.msra.mxu0 %v471
  %494 = vmatprep.subr.mxu0 0.0
  %495 = vmatpush1.msra.mxu0 %v472
  %496 = vmatprep.subr.mxu0 0.0
  %497 = vmatpush1.msra.mxu0 %v473
  %498 = vmatprep.subr.mxu0 0.0
  %499 = vmatpush1.msra.mxu0 %v474
  %500 = vmatprep.subr.mxu0 0.0
  %501 = vmatpush1.msra.mxu0 %v475
  %502 = vmatprep.subr.mxu0 0.0
  %503 = vmatpush1.msra.mxu0 %v476
  %504 = vmatprep.subr.mxu0 0.0
  %505 = vmatpush1.msra.mxu0 %v477
  %506 = vmatprep.subr.mxu0 0.0
  %507 = vmatpush1.msra.mxu0 %v478
  %508 = vmatprep.subr.mxu0 0.0
  %509 = vmatpush1.msra.mxu0 %v479
  %510 = vmatprep.subr.mxu0 0.0
  %511 = vmatpush1.msra.mxu0 %v480
  %512 = vmatprep.subr.mxu0 0.0
  %513 = vmatpush1.msra.mxu0 %v481
  %514 = vmatprep.subr.mxu0 0.0
  %515 = vmatpush1.msra.mxu0 0.0
  %516 = vmatprep.subr.mxu0 0.0
  %517 = vmatpush1.msra.mxu0 0.0
  %518 = vmatprep.subr.mxu0 0.0
  %519 = vmatpush1.msra.mxu0 0.0
  %520 = vmatprep.subr.mxu0 0.0
  %521 = vmatpush1.msra.mxu0 0.0
  %522 = vmatprep.subr.mxu0 0.0
  %523 = vmatpush1.msra.mxu0 0.0
  %524 = vmatprep.subr.mxu0 0.0
  %525 = vmatpush1.msra.mxu0 0.0
  %526 = vmatprep.subr.mxu0 0.0
  %527 = vmatpush1.msra.mxu0 0.0
  %528 = vmatprep.subr.mxu0 0.0
  %529 = vmatpush1.msra.mxu0 0.0
  %530 = vmatprep.subr.mxu0 0.0
  %531 = vmatpush1.msra.mxu0 0.0
  %532 = vmatprep.subr.mxu0 0.0
  %533 = vmatpush1.msra.mxu0 0.0
  %534 = vmatprep.subr.mxu0 0.0
  %535 = vmatpush1.msra.mxu0 0.0
  %536 = vmatprep.subr.mxu0 0.0
  %537 = vmatpush1.msra.mxu0 0.0
  %538 = vmatprep.subr.mxu0 0.0
  %539 = vmatpush1.msra.mxu0 0.0
  %540 = vmatprep.subr.mxu0 0.0
  %541 = vmatpush1.msra.mxu0 0.0
  %542 = vmatprep.subr.mxu0 0.0
  %543 = vmatpush1.msra.mxu0 0.0
  %544 = vmatprep.subr.mxu0 0.0
  %545 = vmatpush1.msra.mxu0 0.0
  %546 = vmatprep.mubr.f32.mxu0 0.0
  %547 = vmatmul.mubr.f32.gmra.mrb[0].mxu0 %v458
  %v548 = vpop.f32.mrb[0].mxu0
  %v549 = vadd.f32 0.0, %v548
  %v550 = vpop.f32.mrb[0].mxu0
  %551 = vdwg.mxu0
  %552 = vmatprep.subr.mxu0 0.0
  %553 = vmatpush1.msra.mxu0 %v466
  %554 = vmatprep.subr.mxu0 0.0
  %555 = vmatpush1.msra.mxu0 %v467
  %556 = vmatprep.subr.mxu0 0.0
  %557 = vmatpush1.msra.mxu0 %v468
  %558 = vmatprep.subr.mxu0 0.0
  %559 = vmatpush1.msra.mxu0 %v469
  %560 = vmatprep.subr.mxu0 0.0
  %561 = vmatpush1.msra.mxu0 %v470
  %562 = vmatprep.subr.mxu0 0.0
  %563 = vmatpush1.msra.mxu0 %v471
  %564 = vmatprep.subr.mxu0 0.0
  %565 = vmatpush1.msra.mxu0 %v472
  %566 = vmatprep.subr.mxu0 0.0
  %567 = vmatpush1.msra.mxu0 %v473
  %568 = vmatprep.subr.mxu0 0.0
  %569 = vmatpush1.msra.mxu0 %v474
  %570 = vmatprep.subr.mxu0 0.0
  %571 = vmatpush1.msra.mxu0 %v475
  %572 = vmatprep.subr.mxu0 0.0
  %573 = vmatpush1.msra.mxu0 %v476
  %574 = vmatprep.subr.mxu0 0.0
  %575 = vmatpush1.msra.mxu0 %v477
  %576 = vmatprep.subr.mxu0 0.0
  %577 = vmatpush1.msra.mxu0 %v478
  %578 = vmatprep.subr.mxu0 0.0
  %579 = vmatpush1.msra.mxu0 %v479
  %580 = vmatprep.subr.mxu0 0.0
  %581 = vmatpush1.msra.mxu0 %v480
  %582 = vmatprep.subr.mxu0 0.0
  %583 = vmatpush1.msra.mxu0 %v481
  %584 = vmatprep.subr.mxu0 0.0
  %585 = vmatpush1.msra.mxu0 0.0
  %586 = vmatprep.subr.mxu0 0.0
  %587 = vmatpush1.msra.mxu0 0.0
  %588 = vmatprep.subr.mxu0 0.0
  %589 = vmatpush1.msra.mxu0 0.0
  %590 = vmatprep.subr.mxu0 0.0
  %591 = vmatpush1.msra.mxu0 0.0
  %592 = vmatprep.subr.mxu0 0.0
  %593 = vmatpush1.msra.mxu0 0.0
  %594 = vmatprep.subr.mxu0 0.0
  %595 = vmatpush1.msra.mxu0 0.0
  %596 = vmatprep.subr.mxu0 0.0
  %597 = vmatpush1.msra.mxu0 0.0
  %598 = vmatprep.subr.mxu0 0.0
  %599 = vmatpush1.msra.mxu0 0.0
  %600 = vmatprep.subr.mxu0 0.0
  %601 = vmatpush1.msra.mxu0 0.0
  %602 = vmatprep.subr.mxu0 0.0
  %603 = vmatpush1.msra.mxu0 0.0
  %604 = vmatprep.subr.mxu0 0.0
  %605 = vmatpush1.msra.mxu0 0.0
  %606 = vmatprep.subr.mxu0 0.0
  %607 = vmatpush1.msra.mxu0 0.0
  %608 = vmatprep.subr.mxu0 0.0
  %609 = vmatpush1.msra.mxu0 0.0
  %610 = vmatprep.subr.mxu0 0.0
  %611 = vmatpush1.msra.mxu0 0.0
  %612 = vmatprep.subr.mxu0 0.0
  %613 = vmatpush1.msra.mxu0 0.0
  %614 = vmatprep.subr.mxu0 0.0
  %615 = vmatpush1.msra.mxu0 0.0
  %616 = vmatprep.mubr.f32.mxu0 0.0
  %617 = vmatmul.mubr.f32.gmra.mrb[0].mxu0 %v465
  %v618 = vpop.f32.mrb[0].mxu0
  %v619 = vadd.f32 0.0, %v618
  %v620 = vpop.f32.mrb[0].mxu0
  %621 = vdwg.mxu0
  %v622 = vmul.f32 %v549, 0.125
  %v623 = vmul.f32 %v619, 0.125
  %v624 = vmul.f32 %v622, %v622
  %v625 = vsub.f32 %v623, %v624
  %v626 = vmax.f32 %v625, 0.0
  %v627 = vld [vmem:[%s3] sm:$0x1]
  %v628 = vadd.f32 %v626, 1e-05
  %v629 = vrsqrt.pop %v628
  %v630 = vmul.f32 %v627, %v629
  %v631 = vld [vmem:[%s4] sm:$0x1]
  %v632 = vmul.f32 %v622, %v630
  %v633 = vsub.f32 %v631, %v632
  %v635 = vlaneseq
  %v636 = vshrl.u32 %v635, 7
  %v637 = vsub.s32 0, %v636
  %v638 = vrot.slane %v630, %v637
  %v640 = vmul.f32 %v448, %v638
  %v642 = vlaneseq
  %v643 = vshrl.u32 %v642, 7
  %v644 = vsub.s32 0, %v643
  %v645 = vrot.slane %v633, %v644
  %v647 = vadd.f32 %v640, %v645
  %v648 = vmax.f32 %v647, 0.0
  %v649 = vpack.c.bf16 %v648, %v648
  %650 = vst [vmem:[%s5] sm:$0xf] %v649
  // Predicated region
  $region22: #{encoder_decoder_forward.8} parent=0 // pred_check
    _
  $region23: #{encoder_decoder_forward.8} parent=0 // pred_check_branch
    %652 = sbr.rel (0) target = $region25
  $region24: #{encoder_decoder_forward.8} parent=0 // pred_region
    _
  $region25: #{encoder_decoder_forward.8} parent=0 // pred_fallthru
    _
  // Predicated region
  $region26: #{encoder_decoder_forward.8} parent=0 // pred_check
    _
  $region27: #{encoder_decoder_forward.8} parent=0 // pred_check_branch
    %654 = sbr.rel (0) target = $region29
  $region28: #{encoder_decoder_forward.8} parent=0 // pred_region
    _
  $region29: #{encoder_decoder_forward.8} parent=0 // pred_fallthru
    _

// kernel: encoder_decoder_forward.9
$region0: #{encoder_decoder_forward.9}
  #allocation0 [shape = 'u32[]', space=smem, size = 0x4, offset = 0x4, fixed_abs, tag = 'smem constant byte address 0x4 - core index']
  #allocation1 [shape = 'u32[144,128]{1,0:T(1,128)}', space=vmem, size = 0x12000, scoped, tag = 'internal scratch']
  %s0 = inlined_call_operand.vmem [shape: bf16[8,512], index: 0, kind: input, shape index: {}]
  %s1 = inlined_call_operand.vmem [shape: bf16[512,256], index: 1, kind: input, shape index: {}]
  %s2 = inlined_call_operand.vmem [shape: f32[128,128], index: 2, kind: input, shape index: {}]
  %s3 = inlined_call_operand.vmem [shape: f32[1,256], index: 3, kind: input, shape index: {}]
  %s4 = inlined_call_operand.vmem [shape: f32[1,256], index: 4, kind: input, shape index: {}]
  %s5 = inlined_call_operand.vmem [shape: bf16[8,256], index: 5, kind: output, shape index: {}]
  %s6 = sld [smem:[#allocation0]]
  $region94: #{encoder_decoder_forward.9} parent=0
    _
  %s8 = ssub.s32 1, %s6
  %s9 = scalar_select 0, %s8, %s6
  $region1: #{encoder_decoder_forward.9} parent=0
    #allocation2 [shape = 'u8[262144]{0}', space=vmem, size = 0x40000, scoped, tag = 'input window, operand 1']
    loop: start=0, step=1, limit=4
    $region2: #{encoder_decoder_forward.9} parent=1 // loop_pre_header
      _
    $region3: #{encoder_decoder_forward.9} parent=1 // loop_header
      %s11 = sphi 0, %s15
      %p12 = scmp.ge.s32.totalorder %s11, 4
      %s19 = sphi 0, %s19
      %s21 = sphi 0, %s19
      %s22 = sphi 0, %s21
      %s36 = sphi 0, %s22
      %s42 = sphi 0, %s44
      %s45 = sphi 0, %s42
      %s46 = sphi 0, %s45
      %s62 = sphi 0, %s46
      %s66 = sphi 0, %s66
      %s68 = sphi 0, %s66
      %s69 = sphi 0, %s68
      %s83 = sphi 0, %s69
      %s89 = sphi 0, %s91
      %s92 = sphi 0, %s89
      %s93 = sphi 0, %s92
      %s109 = sphi 0, %s93
      %s115 = sphi 0, %s117
      %s118 = sphi 0, %s115
      %s119 = sphi 0, %s118
      %s135 = sphi 0, %s119
      %s141 = sphi 0, %s143
      %s144 = sphi 0, %s141
      %s145 = sphi 0, %s144
      %s161 = sphi 0, %s145
    $region4: #{encoder_decoder_forward.9} parent=1 // loop_header_branch
      %14 = sbr.rel (%p12) target = $region8
    $region5: #{encoder_decoder_forward.9} parent=1 // loop_body
      %s16 = ssub.s32 %s11, 1
      %s17 = ssub.s32 %s11, 2
      %s18 = sadd.s32 %s11, 1
      %s20 = sadd.s32 %s19, 1
      %p23 = scmp.eq.s32.totalorder %s11, 1
      %p24 = scmp.ne.s32.totalorder %s19, %s21
      %p25 = scmp.eq.s32.totalorder %s11, 0
      %p26 = por %p24, %p25
      %p27 = scmp.ne.s32.totalorder %s19, %s21
      %p28 = scmp.eq.s32.totalorder %s16, 1
      %p29 = por %p27, %p28
      %p30 = scmp.ne.s32.totalorder %s21, %s22
      %p31 = scmp.eq.s32.totalorder %s16, 0
      %p32 = por %p30, %p31
      %p33 = scmp.ne.s32.totalorder %s21, %s22
      %p34 = scmp.eq.s32.totalorder %s17, 1
      %p35 = por %p33, %p34
      %p37 = scmp.ne.s32.totalorder %s22, %s36
      %p38 = scmp.eq.s32.totalorder %s17, 0
      %p39 = por %p37, %p38
      %s40 = ssub.s32 %s11, %s18
      %p41 = scmp.eq.s32.totalorder %s40, 0
      %s43 = sadd.s32 %s42, 1
      %s44 = scalar_select %p41, %s42, %s43
      %p47 = pneg %p41
      %p48 = scmp.eq.s32.totalorder %s11, 1
      %p49 = por %p47, %p48
      %p50 = scmp.ne.s32.totalorder %s42, %s45
      %p51 = scmp.eq.s32.totalorder %s11, 0
      %p52 = por %p50, %p51
      %p53 = scmp.ne.s32.totalorder %s42, %s45
      %p54 = scmp.eq.s32.totalorder %s16, 1
      %p55 = por %p53, %p54
      %p56 = scmp.ne.s32.totalorder %s45, %s46
      %p57 = scmp.eq.s32.totalorder %s16, 0
      %p58 = por %p56, %p57
      %p59 = scmp.ne.s32.totalorder %s45, %s46
      %p60 = scmp.eq.s32.totalorder %s17, 1
      %p61 = por %p59, %p60
      %p63 = scmp.ne.s32.totalorder %s46, %s62
      %p64 = scmp.eq.s32.totalorder %s17, 0
      %p65 = por %p63, %p64
      %s67 = sadd.s32 %s66, 1
      %p70 = scmp.eq.s32.totalorder %s11, 1
      %p71 = scmp.ne.s32.totalorder %s66, %s68
      %p72 = scmp.eq.s32.totalorder %s11, 0
      %p73 = por %p71, %p72
      %p74 = scmp.ne.s32.totalorder %s66, %s68
      %p75 = scmp.eq.s32.totalorder %s16, 1
      %p76 = por %p74, %p75
      %p77 = scmp.ne.s32.totalorder %s68, %s69
      %p78 = scmp.eq.s32.totalorder %s16, 0
      %p79 = por %p77, %p78
      %p80 = scmp.ne.s32.totalorder %s68, %s69
      %p81 = scmp.eq.s32.totalorder %s17, 1
      %p82 = por %p80, %p81
      %p84 = scmp.ne.s32.totalorder %s69, %s83
      %p85 = scmp.eq.s32.totalorder %s17, 0
      %p86 = por %p84, %p85
      %s87 = ssub.s32 %s11, %s18
      %p88 = scmp.eq.s32.totalorder %s87, 0
      %s90 = sadd.s32 %s89, 1
      %s91 = scalar_select %p88, %s89, %s90
      %p94 = pneg %p88
      %p95 = scmp.eq.s32.totalorder %s11, 1
      %p96 = por %p94, %p95
      %p97 = scmp.ne.s32.totalorder %s89, %s92
      %p98 = scmp.eq.s32.totalorder %s11, 0
      %p99 = por %p97, %p98
      %p100 = scmp.ne.s32.totalorder %s89, %s92
      %p101 = scmp.eq.s32.totalorder %s16, 1
      %p102 = por %p100, %p101
      %p103 = scmp.ne.s32.totalorder %s92, %s93
      %p104 = scmp.eq.s32.totalorder %s16, 0
      %p105 = por %p103, %p104
      %p106 = scmp.ne.s32.totalorder %s92, %s93
      %p107 = scmp.eq.s32.totalorder %s17, 1
      %p108 = por %p106, %p107
      %p110 = scmp.ne.s32.totalorder %s93, %s109
      %p111 = scmp.eq.s32.totalorder %s17, 0
      %p112 = por %p110, %p111
      %s113 = ssub.s32 %s11, %s18
      %p114 = scmp.eq.s32.totalorder %s113, 0
      %s116 = sadd.s32 %s115, 1
      %s117 = scalar_select %p114, %s115, %s116
      %p120 = pneg %p114
      %p121 = scmp.eq.s32.totalorder %s11, 1
      %p122 = por %p120, %p121
      %p123 = scmp.ne.s32.totalorder %s115, %s118
      %p124 = scmp.eq.s32.totalorder %s11, 0
      %p125 = por %p123, %p124
      %p126 = scmp.ne.s32.totalorder %s115, %s118
      %p127 = scmp.eq.s32.totalorder %s16, 1
      %p128 = por %p126, %p127
      %p129 = scmp.ne.s32.totalorder %s118, %s119
      %p130 = scmp.eq.s32.totalorder %s16, 0
      %p131 = por %p129, %p130
      %p132 = scmp.ne.s32.totalorder %s118, %s119
      %p133 = scmp.eq.s32.totalorder %s17, 1
      %p134 = por %p132, %p133
      %p136 = scmp.ne.s32.totalorder %s119, %s135
      %p137 = scmp.eq.s32.totalorder %s17, 0
      %p138 = por %p136, %p137
      %s139 = ssub.s32 %s11, %s18
      %p140 = scmp.eq.s32.totalorder %s139, 0
      %s142 = sadd.s32 %s141, 1
      %s143 = scalar_select %p140, %s141, %s142
      %p146 = pneg %p140
      %p147 = scmp.eq.s32.totalorder %s11, 1
      %p148 = por %p146, %p147
      %p149 = scmp.ne.s32.totalorder %s141, %s144
      %p150 = scmp.eq.s32.totalorder %s11, 0
      %p151 = por %p149, %p150
      %p152 = scmp.ne.s32.totalorder %s141, %s144
      %p153 = scmp.eq.s32.totalorder %s16, 1
      %p154 = por %p152, %p153
      %p155 = scmp.ne.s32.totalorder %s144, %s145
      %p156 = scmp.eq.s32.totalorder %s16, 0
      %p157 = por %p155, %p156
      %p158 = scmp.ne.s32.totalorder %s144, %s145
      %p159 = scmp.eq.s32.totalorder %s17, 1
      %p160 = por %p158, %p159
      %p162 = scmp.ne.s32.totalorder %s145, %s161
      %p163 = scmp.eq.s32.totalorder %s17, 0
      %p164 = por %p162, %p163
      %p165 = scmp.le.s32.totalorder 1, %s11
      %p166 = scmp.lt.s32.totalorder %s11, 3
      %p167 = pnand %p165, %p166
      %p168 = pneg %p167
      // Predicated region
      $region9: #{encoder_decoder_forward.9} parent=5 // pred_check
        _
      $region10: #{encoder_decoder_forward.9} parent=5 // pred_check_branch
        %170 = sbr.rel (%p167) target = $region12
      $region11: #{encoder_decoder_forward.9} parent=5 // pred_region
        %s171 = ssub.s32 %s11, 1
        // Predicated region
        $region13: #{encoder_decoder_forward.9} parent=11 // pred_check
          %p172 = pneg %p32
        $region14: #{encoder_decoder_forward.9} parent=11 // pred_check_branch
          %174 = sbr.rel (%p172) target = $region16
        $region15: #{encoder_decoder_forward.9} parent=11 // pred_region
          _
        $region16: #{encoder_decoder_forward.9} parent=11 // pred_fallthru
          _
        // Predicated region
        $region17: #{encoder_decoder_forward.9} parent=11 // pred_check
          %p175 = pneg %p79
        $region18: #{encoder_decoder_forward.9} parent=11 // pred_check_branch
          %177 = sbr.rel (%p175) target = $region20
        $region19: #{encoder_decoder_forward.9} parent=11 // pred_region
          _
        $region20: #{encoder_decoder_forward.9} parent=11 // pred_fallthru
          _
      $region12: #{encoder_decoder_forward.9} parent=5 // pred_fallthru
        _
      %p178 = scmp.lt.s32.totalorder %s11, 2
      // Predicated region
      $region21: #{encoder_decoder_forward.9} parent=5 // pred_check
        %p179 = pneg %p178
      $region22: #{encoder_decoder_forward.9} parent=5 // pred_check_branch
        %181 = sbr.rel (%p179) target = $region24
      $region23: #{encoder_decoder_forward.9} parent=5 // pred_region
        // Predicated region
        $region25: #{encoder_decoder_forward.9} parent=23 // pred_check
          %p182 = pneg %p52
        $region26: #{encoder_decoder_forward.9} parent=23 // pred_check_branch
          %184 = sbr.rel (%p182) target = $region28
        $region27: #{encoder_decoder_forward.9} parent=23 // pred_region
          %s185 = sand.u32 %s42, 1
          %s186 = sand.u32 %s42, 1
          %s187 = smul.addr %s186, 256
          %s188 = scalar_lea.vmem [#allocation2], %s187
          %s189 = smul.addr %s11, 4
          %s190 = scalar_lea.vmem %s1, %s189
          // Predicated region
          $region29: #{encoder_decoder_forward.9} parent=27 // pred_check
            _
          $region30: #{encoder_decoder_forward.9} parent=27 // pred_check_branch
            %192 = sbr.rel (0) target = $region32
          $region31: #{encoder_decoder_forward.9} parent=27 // pred_region
            // Predicated region
            $region33: #{encoder_decoder_forward.9} parent=31 // pred_check
              _
            $region34: #{encoder_decoder_forward.9} parent=31 // pred_check_branch
              %194 = sbr.rel target = $region36
            $region35: #{encoder_decoder_forward.9} parent=31 // pred_region
              // Predicated region
              $region48: #{encoder_decoder_forward.9} parent=35 // pred_check
                _
              $region49: #{encoder_decoder_forward.9} parent=35 // pred_check_branch
                %335 = sbr.rel (0) target = $region51
              $region50: #{encoder_decoder_forward.9} parent=35 // pred_region
                loop: start=0, step=1, limit=1
                $region52: #{encoder_decoder_forward.9} parent=50 // loop_pre_header
                  _
                $region53: #{encoder_decoder_forward.9} parent=50 // loop_header
                  %s337 = sphi 0, %s341
                  %p338 = scmp.ge.s32.totalorder %s337, 1
                  %s342 = sphi %s190, %s190
                  %s343 = sphi %s188, %s188
                $region54: #{encoder_decoder_forward.9} parent=50 // loop_header_branch
                  %340 = sbr.rel (%p338) target = $region58
                $region55: #{encoder_decoder_forward.9} parent=50 // loop_body
                  _
                $region56: #{encoder_decoder_forward.9} parent=50 // loop_footer
                  %s341 = sadd.s32 1, %s337
                $region57: #{encoder_decoder_forward.9} parent=50 // loop_footer_branch
                  %336 = sbr.rel target = $region53
                $region58: #{encoder_decoder_forward.9} parent=50 // loop_exit
                  _
                loop: start=0, step=1, limit=1
                $region59: #{encoder_decoder_forward.9} parent=50 // loop_pre_header
                  _
                $region60: #{encoder_decoder_forward.9} parent=50 // loop_header
                  %s346 = sphi 0, %s350
                  %p347 = scmp.ge.s32.totalorder %s346, 1
                  %s351 = sphi %s190, %s190
                  %s352 = sphi %s188, %s188
                $region61: #{encoder_decoder_forward.9} parent=50 // loop_header_branch
                  %349 = sbr.rel (%p347) target = $region65
                $region62: #{encoder_decoder_forward.9} parent=50 // loop_body
                  %v353 = vld [vmem:[%s351] sm:$0xf]
                  %354 = vst [vmem:[%s352] sm:$0xf] %v353
                  %v355 = vld [vmem:[%s351 + $0x8] sm:$0xf]
                  %356 = vst [vmem:[%s352 + $0x4] sm:$0xf] %v355
                  %v357 = vld [vmem:[%s351 + $0x10] sm:$0xf]
                  %358 = vst [vmem:[%s352 + $0x8] sm:$0xf] %v357
                  %v359 = vld [vmem:[%s351 + $0x18] sm:$0xf]
                  %360 = vst [vmem:[%s352 + $0xc] sm:$0xf] %v359
                  %v361 = vld [vmem:[%s351 + $0x20] sm:$0xf]
                  %362 = vst [vmem:[%s352 + $0x10] sm:$0xf] %v361
                  %v363 = vld [vmem:[%s351 + $0x28] sm:$0xf]
                  %364 = vst [vmem:[%s352 + $0x14] sm:$0xf] %v363
                  %v365 = vld [vmem:[%s351 + $0x30] sm:$0xf]
                  %366 = vst [vmem:[%s352 + $0x18] sm:$0xf] %v365
                  %v367 = vld [vmem:[%s351 + $0x38] sm:$0xf]
                  %368 = vst [vmem:[%s352 + $0x1c] sm:$0xf] %v367
                  %v369 = vld [vmem:[%s351 + $0x40] sm:$0xf]
                  %370 = vst [vmem:[%s352 + $0x20] sm:$0xf] %v369
                  %v371 = vld [vmem:[%s351 + $0x48] sm:$0xf]
                  %372 = vst [vmem:[%s352 + $0x24] sm:$0xf] %v371
                  %v373 = vld [vmem:[%s351 + $0x50] sm:$0xf]
                  %374 = vst [vmem:[%s352 + $0x28] sm:$0xf] %v373
                  %v375 = vld [vmem:[%s351 + $0x58] sm:$0xf]
                  %376 = vst [vmem:[%s352 + $0x2c] sm:$0xf] %v375
                  %v377 = vld [vmem:[%s351 + $0x60] sm:$0xf]
                  %378 = vst [vmem:[%s352 + $0x30] sm:$0xf] %v377
                  %v379 = vld [vmem:[%s351 + $0x68] sm:$0xf]
                  %380 = vst [vmem:[%s352 + $0x34] sm:$0xf] %v379
                  %v381 = vld [vmem:[%s351 + $0x70] sm:$0xf]
                  %382 = vst [vmem:[%s352 + $0x38] sm:$0xf] %v381
                  %v383 = vld [vmem:[%s351 + $0x78] sm:$0xf]
                  %384 = vst [vmem:[%s352 + $0x3c] sm:$0xf] %v383
                  %v385 = vld [vmem:[%s351 + $0x80] sm:$0xf]
                  %386 = vst [vmem:[%s352 + $0x40] sm:$0xf] %v385
                  %v387 = vld [vmem:[%s351 + $0x88] sm:$0xf]
                  %388 = vst [vmem:[%s352 + $0x44] sm:$0xf] %v387
                  %v389 = vld [vmem:[%s351 + $0x90] sm:$0xf]
                  %390 = vst [vmem:[%s352 + $0x48] sm:$0xf] %v389
                  %v391 = vld [vmem:[%s351 + $0x98] sm:$0xf]
                  %392 = vst [vmem:[%s352 + $0x4c] sm:$0xf] %v391
                  %v393 = vld [vmem:[%s351 + $0xa0] sm:$0xf]
                  %394 = vst [vmem:[%s352 + $0x50] sm:$0xf] %v393
                  %v395 = vld [vmem:[%s351 + $0xa8] sm:$0xf]
                  %396 = vst [vmem:[%s352 + $0x54] sm:$0xf] %v395
                  %v397 = vld [vmem:[%s351 + $0xb0] sm:$0xf]
                  %398 = vst [vmem:[%s352 + $0x58] sm:$0xf] %v397
                  %v399 = vld [vmem:[%s351 + $0xb8] sm:$0xf]
                  %400 = vst [vmem:[%s352 + $0x5c] sm:$0xf] %v399
                  %v401 = vld [vmem:[%s351 + $0xc0] sm:$0xf]
                  %402 = vst [vmem:[%s352 + $0x60] sm:$0xf] %v401
                  %v403 = vld [vmem:[%s351 + $0xc8] sm:$0xf]
                  %404 = vst [vmem:[%s352 + $0x64] sm:$0xf] %v403
                  %v405 = vld [vmem:[%s351 + $0xd0] sm:$0xf]
                  %406 = vst [vmem:[%s352 + $0x68] sm:$0xf] %v405
                  %v407 = vld [vmem:[%s351 + $0xd8] sm:$0xf]
                  %408 = vst [vmem:[%s352 + $0x6c] sm:$0xf] %v407
                  %v409 = vld [vmem:[%s351 + $0xe0] sm:$0xf]
                  %410 = vst [vmem:[%s352 + $0x70] sm:$0xf] %v409
                  %v411 = vld [vmem:[%s351 + $0xe8] sm:$0xf]
                  %412 = vst [vmem:[%s352 + $0x74] sm:$0xf] %v411
                  %v413 = vld [vmem:[%s351 + $0xf0] sm:$0xf]
                  %414 = vst [vmem:[%s352 + $0x78] sm:$0xf] %v413
                  %v415 = vld [vmem:[%s351 + $0xf8] sm:$0xf]
                  %416 = vst [vmem:[%s352 + $0x7c] sm:$0xf] %v415
                  %v417 = vld [vmem:[%s351 + $0x100] sm:$0xf]
                  %418 = vst [vmem:[%s352 + $0x80] sm:$0xf] %v417
                  %v419 = vld [vmem:[%s351 + $0x108] sm:$0xf]
                  %420 = vst [vmem:[%s352 + $0x84] sm:$0xf] %v419
                  %v421 = vld [vmem:[%s351 + $0x110] sm:$0xf]
                  %422 = vst [vmem:[%s352 + $0x88] sm:$0xf] %v421
                  %v423 = vld [vmem:[%s351 + $0x118] sm:$0xf]
                  %424 = vst [vmem:[%s352 + $0x8c] sm:$0xf] %v423
                  %v425 = vld [vmem:[%s351 + $0x120] sm:$0xf]
                  %426 = vst [vmem:[%s352 + $0x90] sm:$0xf] %v425
                  %v427 = vld [vmem:[%s351 + $0x128] sm:$0xf]
                  %428 = vst [vmem:[%s352 + $0x94] sm:$0xf] %v427
                  %v429 = vld [vmem:[%s351 + $0x130] sm:$0xf]
                  %430 = vst [vmem:[%s352 + $0x98] sm:$0xf] %v429
                  %v431 = vld [vmem:[%s351 + $0x138] sm:$0xf]
                  %432 = vst [vmem:[%s352 + $0x9c] sm:$0xf] %v431
                  %v433 = vld [vmem:[%s351 + $0x140] sm:$0xf]
                  %434 = vst [vmem:[%s352 + $0xa0] sm:$0xf] %v433
                  %v435 = vld [vmem:[%s351 + $0x148] sm:$0xf]
                  %436 = vst [vmem:[%s352 + $0xa4] sm:$0xf] %v435
                  %v437 = vld [vmem:[%s351 + $0x150] sm:$0xf]
                  %438 = vst [vmem:[%s352 + $0xa8] sm:$0xf] %v437
                  %v439 = vld [vmem:[%s351 + $0x158] sm:$0xf]
                  %440 = vst [vmem:[%s352 + $0xac] sm:$0xf] %v439
                  %v441 = vld [vmem:[%s351 + $0x160] sm:$0xf]
                  %442 = vst [vmem:[%s352 + $0xb0] sm:$0xf] %v441
                  %v443 = vld [vmem:[%s351 + $0x168] sm:$0xf]
                  %444 = vst [vmem:[%s352 + $0xb4] sm:$0xf] %v443
                  %v445 = vld [vmem:[%s351 + $0x170] sm:$0xf]
                  %446 = vst [vmem:[%s352 + $0xb8] sm:$0xf] %v445
                  %v447 = vld [vmem:[%s351 + $0x178] sm:$0xf]
                  %448 = vst [vmem:[%s352 + $0xbc] sm:$0xf] %v447
                  %v449 = vld [vmem:[%s351 + $0x180] sm:$0xf]
                  %450 = vst [vmem:[%s352 + $0xc0] sm:$0xf] %v449
                  %v451 = vld [vmem:[%s351 + $0x188] sm:$0xf]
                  %452 = vst [vmem:[%s352 + $0xc4] sm:$0xf] %v451
                  %v453 = vld [vmem:[%s351 + $0x190] sm:$0xf]
                  %454 = vst [vmem:[%s352 + $0xc8] sm:$0xf] %v453
                  %v455 = vld [vmem:[%s351 + $0x198] sm:$0xf]
                  %456 = vst [vmem:[%s352 + $0xcc] sm:$0xf] %v455
                  %v457 = vld [vmem:[%s351 + $0x1a0] sm:$0xf]
                  %458 = vst [vmem:[%s352 + $0xd0] sm:$0xf] %v457
                  %v459 = vld [vmem:[%s351 + $0x1a8] sm:$0xf]
                  %460 = vst [vmem:[%s352 + $0xd4] sm:$0xf] %v459
                  %v461 = vld [vmem:[%s351 + $0x1b0] sm:$0xf]
                  %462 = vst [vmem:[%s352 + $0xd8] sm:$0xf] %v461
                  %v463 = vld [vmem:[%s351 + $0x1b8] sm:$0xf]
                  %464 = vst [vmem:[%s352 + $0xdc] sm:$0xf] %v463
                  %v465 = vld [vmem:[%s351 + $0x1c0] sm:$0xf]
                  %466 = vst [vmem:[%s352 + $0xe0] sm:$0xf] %v465
                  %v467 = vld [vmem:[%s351 + $0x1c8] sm:$0xf]
                  %468 = vst [vmem:[%s352 + $0xe4] sm:$0xf] %v467
                  %v469 = vld [vmem:[%s351 + $0x1d0] sm:$0xf]
                  %470 = vst [vmem:[%s352 + $0xe8] sm:$0xf] %v469
                  %v471 = vld [vmem:[%s351 + $0x1d8] sm:$0xf]
                  %472 = vst [vmem:[%s352 + $0xec] sm:$0xf] %v471
                  %v473 = vld [vmem:[%s351 + $0x1e0] sm:$0xf]
                  %474 = vst [vmem:[%s352 + $0xf0] sm:$0xf] %v473
                  %v475 = vld [vmem:[%s351 + $0x1e8] sm:$0xf]
                  %476 = vst [vmem:[%s352 + $0xf4] sm:$0xf] %v475
                  %v477 = vld [vmem:[%s351 + $0x1f0] sm:$0xf]
                  %478 = vst [vmem:[%s352 + $0xf8] sm:$0xf] %v477
                  %v479 = vld [vmem:[%s351 + $0x1f8] sm:$0xf]
                  %480 = vst [vmem:[%s352 + $0xfc] sm:$0xf] %v479
                $region63: #{encoder_decoder_forward.9} parent=50 // loop_footer
                  %s350 = sadd.s32 1, %s346
                $region64: #{encoder_decoder_forward.9} parent=50 // loop_footer_branch
                  %345 = sbr.rel target = $region60
                $region65: #{encoder_decoder_forward.9} parent=50 // loop_exit
                  _
              $region51: #{encoder_decoder_forward.9} parent=35 // pred_fallthru
                _
            $region36: #{encoder_decoder_forward.9} parent=31 // pred_fallthru
              _
            // Predicated region
            $region37: #{encoder_decoder_forward.9} parent=31 // pred_check
              _
            $region38: #{encoder_decoder_forward.9} parent=31 // pred_check_branch
              %196 = sbr.rel (0) target = $region40
            $region39: #{encoder_decoder_forward.9} parent=31 // pred_region
              loop: start=0, step=1, limit=1
              $region41: #{encoder_decoder_forward.9} parent=39 // loop_pre_header
                _
              $region42: #{encoder_decoder_forward.9} parent=39 // loop_header
                %s199 = sphi 0, %s203
                %p200 = scmp.ge.s32.totalorder %s199, 1
                %s204 = sphi %s190, %s190
                %s205 = sphi %s188, %s188
              $region43: #{encoder_decoder_forward.9} parent=39 // loop_header_branch
                %202 = sbr.rel (%p200) target = $region47
              $region44: #{encoder_decoder_forward.9} parent=39 // loop_body
                %v206 = vld [vmem:[%s204] sm:$0xf]
                %207 = vst [vmem:[%s205] sm:$0xf] %v206
                %v208 = vld [vmem:[%s204 + $0x8] sm:$0xf]
                %209 = vst [vmem:[%s205 + $0x4] sm:$0xf] %v208
                %v210 = vld [vmem:[%s204 + $0x10] sm:$0xf]
                %211 = vst [vmem:[%s205 + $0x8] sm:$0xf] %v210
                %v212 = vld [vmem:[%s204 + $0x18] sm:$0xf]
                %213 = vst [vmem:[%s205 + $0xc] sm:$0xf] %v212
                %v214 = vld [vmem:[%s204 + $0x20] sm:$0xf]
                %215 = vst [vmem:[%s205 + $0x10] sm:$0xf] %v214
                %v216 = vld [vmem:[%s204 + $0x28] sm:$0xf]
                %217 = vst [vmem:[%s205 + $0x14] sm:$0xf] %v216
                %v218 = vld [vmem:[%s204 + $0x30] sm:$0xf]
                %219 = vst [vmem:[%s205 + $0x18] sm:$0xf] %v218
                %v220 = vld [vmem:[%s204 + $0x38] sm:$0xf]
                %221 = vst [vmem:[%s205 + $0x1c] sm:$0xf] %v220
                %v222 = vld [vmem:[%s204 + $0x40] sm:$0xf]
                %223 = vst [vmem:[%s205 + $0x20] sm:$0xf] %v222
                %v224 = vld [vmem:[%s204 + $0x48] sm:$0xf]
                %225 = vst [vmem:[%s205 + $0x24] sm:$0xf] %v224
                %v226 = vld [vmem:[%s204 + $0x50] sm:$0xf]
                %227 = vst [vmem:[%s205 + $0x28] sm:$0xf] %v226
                %v228 = vld [vmem:[%s204 + $0x58] sm:$0xf]
                %229 = vst [vmem:[%s205 + $0x2c] sm:$0xf] %v228
                %v230 = vld [vmem:[%s204 + $0x60] sm:$0xf]
                %231 = vst [vmem:[%s205 + $0x30] sm:$0xf] %v230
                %v232 = vld [vmem:[%s204 + $0x68] sm:$0xf]
                %233 = vst [vmem:[%s205 + $0x34] sm:$0xf] %v232
                %v234 = vld [vmem:[%s204 + $0x70] sm:$0xf]
                %235 = vst [vmem:[%s205 + $0x38] sm:$0xf] %v234
                %v236 = vld [vmem:[%s204 + $0x78] sm:$0xf]
                %237 = vst [vmem:[%s205 + $0x3c] sm:$0xf] %v236
                %v238 = vld [vmem:[%s204 + $0x80] sm:$0xf]
                %239 = vst [vmem:[%s205 + $0x40] sm:$0xf] %v238
                %v240 = vld [vmem:[%s204 + $0x88] sm:$0xf]
                %241 = vst [vmem:[%s205 + $0x44] sm:$0xf] %v240
                %v242 = vld [vmem:[%s204 + $0x90] sm:$0xf]
                %243 = vst [vmem:[%s205 + $0x48] sm:$0xf] %v242
                %v244 = vld [vmem:[%s204 + $0x98] sm:$0xf]
                %245 = vst [vmem:[%s205 + $0x4c] sm:$0xf] %v244
                %v246 = vld [vmem:[%s204 + $0xa0] sm:$0xf]
                %247 = vst [vmem:[%s205 + $0x50] sm:$0xf] %v246
                %v248 = vld [vmem:[%s204 + $0xa8] sm:$0xf]
                %249 = vst [vmem:[%s205 + $0x54] sm:$0xf] %v248
                %v250 = vld [vmem:[%s204 + $0xb0] sm:$0xf]
                %251 = vst [vmem:[%s205 + $0x58] sm:$0xf] %v250
                %v252 = vld [vmem:[%s204 + $0xb8] sm:$0xf]
                %253 = vst [vmem:[%s205 + $0x5c] sm:$0xf] %v252
                %v254 = vld [vmem:[%s204 + $0xc0] sm:$0xf]
                %255 = vst [vmem:[%s205 + $0x60] sm:$0xf] %v254
                %v256 = vld [vmem:[%s204 + $0xc8] sm:$0xf]
                %257 = vst [vmem:[%s205 + $0x64] sm:$0xf] %v256
                %v258 = vld [vmem:[%s204 + $0xd0] sm:$0xf]
                %259 = vst [vmem:[%s205 + $0x68] sm:$0xf] %v258
                %v260 = vld [vmem:[%s204 + $0xd8] sm:$0xf]
                %261 = vst [vmem:[%s205 + $0x6c] sm:$0xf] %v260
                %v262 = vld [vmem:[%s204 + $0xe0] sm:$0xf]
                %263 = vst [vmem:[%s205 + $0x70] sm:$0xf] %v262
                %v264 = vld [vmem:[%s204 + $0xe8] sm:$0xf]
                %265 = vst [vmem:[%s205 + $0x74] sm:$0xf] %v264
                %v266 = vld [vmem:[%s204 + $0xf0] sm:$0xf]
                %267 = vst [vmem:[%s205 + $0x78] sm:$0xf] %v266
                %v268 = vld [vmem:[%s204 + $0xf8] sm:$0xf]
                %269 = vst [vmem:[%s205 + $0x7c] sm:$0xf] %v268
                %v270 = vld [vmem:[%s204 + $0x100] sm:$0xf]
                %271 = vst [vmem:[%s205 + $0x80] sm:$0xf] %v270
                %v272 = vld [vmem:[%s204 + $0x108] sm:$0xf]
                %273 = vst [vmem:[%s205 + $0x84] sm:$0xf] %v272
                %v274 = vld [vmem:[%s204 + $0x110] sm:$0xf]
                %275 = vst [vmem:[%s205 + $0x88] sm:$0xf] %v274
                %v276 = vld [vmem:[%s204 + $0x118] sm:$0xf]
                %277 = vst [vmem:[%s205 + $0x8c] sm:$0xf] %v276
                %v278 = vld [vmem:[%s204 + $0x120] sm:$0xf]
                %279 = vst [vmem:[%s205 + $0x90] sm:$0xf] %v278
                %v280 = vld [vmem:[%s204 + $0x128] sm:$0xf]
                %281 = vst [vmem:[%s205 + $0x94] sm:$0xf] %v280
                %v282 = vld [vmem:[%s204 + $0x130] sm:$0xf]
                %283 = vst [vmem:[%s205 + $0x98] sm:$0xf] %v282
                %v284 = vld [vmem:[%s204 + $0x138] sm:$0xf]
                %285 = vst [vmem:[%s205 + $0x9c] sm:$0xf] %v284
                %v286 = vld [vmem:[%s204 + $0x140] sm:$0xf]
                %287 = vst [vmem:[%s205 + $0xa0] sm:$0xf] %v286
                %v288 = vld [vmem:[%s204 + $0x148] sm:$0xf]
                %289 = vst [vmem:[%s205 + $0xa4] sm:$0xf] %v288
                %v290 = vld [vmem:[%s204 + $0x150] sm:$0xf]
                %291 = vst [vmem:[%s205 + $0xa8] sm:$0xf] %v290
                %v292 = vld [vmem:[%s204 + $0x158] sm:$0xf]
                %293 = vst [vmem:[%s205 + $0xac] sm:$0xf] %v292
                %v294 = vld [vmem:[%s204 + $0x160] sm:$0xf]
                %295 = vst [vmem:[%s205 + $0xb0] sm:$0xf] %v294
                %v296 = vld [vmem:[%s204 + $0x168] sm:$0xf]
                %297 = vst [vmem:[%s205 + $0xb4] sm:$0xf] %v296
                %v298 = vld [vmem:[%s204 + $0x170] sm:$0xf]
                %299 = vst [vmem:[%s205 + $0xb8] sm:$0xf] %v298
                %v300 = vld [vmem:[%s204 + $0x178] sm:$0xf]
                %301 = vst [vmem:[%s205 + $0xbc] sm:$0xf] %v300
                %v302 = vld [vmem:[%s204 + $0x180] sm:$0xf]
                %303 = vst [vmem:[%s205 + $0xc0] sm:$0xf] %v302
                %v304 = vld [vmem:[%s204 + $0x188] sm:$0xf]
                %305 = vst [vmem:[%s205 + $0xc4] sm:$0xf] %v304
                %v306 = vld [vmem:[%s204 + $0x190] sm:$0xf]
                %307 = vst [vmem:[%s205 + $0xc8] sm:$0xf] %v306
                %v308 = vld [vmem:[%s204 + $0x198] sm:$0xf]
                %309 = vst [vmem:[%s205 + $0xcc] sm:$0xf] %v308
                %v310 = vld [vmem:[%s204 + $0x1a0] sm:$0xf]
                %311 = vst [vmem:[%s205 + $0xd0] sm:$0xf] %v310
                %v312 = vld [vmem:[%s204 + $0x1a8] sm:$0xf]
                %313 = vst [vmem:[%s205 + $0xd4] sm:$0xf] %v312
                %v314 = vld [vmem:[%s204 + $0x1b0] sm:$0xf]
                %315 = vst [vmem:[%s205 + $0xd8] sm:$0xf] %v314
                %v316 = vld [vmem:[%s204 + $0x1b8] sm:$0xf]
                %317 = vst [vmem:[%s205 + $0xdc] sm:$0xf] %v316
                %v318 = vld [vmem:[%s204 + $0x1c0] sm:$0xf]
                %319 = vst [vmem:[%s205 + $0xe0] sm:$0xf] %v318
                %v320 = vld [vmem:[%s204 + $0x1c8] sm:$0xf]
                %321 = vst [vmem:[%s205 + $0xe4] sm:$0xf] %v320
                %v322 = vld [vmem:[%s204 + $0x1d0] sm:$0xf]
                %323 = vst [vmem:[%s205 + $0xe8] sm:$0xf] %v322
                %v324 = vld [vmem:[%s204 + $0x1d8] sm:$0xf]
                %325 = vst [vmem:[%s205 + $0xec] sm:$0xf] %v324
                %v326 = vld [vmem:[%s204 + $0x1e0] sm:$0xf]
                %327 = vst [vmem:[%s205 + $0xf0] sm:$0xf] %v326
                %v328 = vld [vmem:[%s204 + $0x1e8] sm:$0xf]
                %329 = vst [vmem:[%s205 + $0xf4] sm:$0xf] %v328
                %v330 = vld [vmem:[%s204 + $0x1f0] sm:$0xf]
                %331 = vst [vmem:[%s205 + $0xf8] sm:$0xf] %v330
                %v332 = vld [vmem:[%s204 + $0x1f8] sm:$0xf]
                %333 = vst [vmem:[%s205 + $0xfc] sm:$0xf] %v332
              $region45: #{encoder_decoder_forward.9} parent=39 // loop_footer
                %s203 = sadd.s32 1, %s199
              $region46: #{encoder_decoder_forward.9} parent=39 // loop_footer_branch
                %198 = sbr.rel target = $region42
              $region47: #{encoder_decoder_forward.9} parent=39 // loop_exit
                _
            $region40: #{encoder_decoder_forward.9} parent=31 // pred_fallthru
              _
          $region32: #{encoder_decoder_forward.9} parent=27 // pred_fallthru
            _
          %481 = vnop
        $region28: #{encoder_decoder_forward.9} parent=23 // pred_fallthru
          _
        // Predicated region
        $region66: #{encoder_decoder_forward.9} parent=23 // pred_check
          %p482 = pneg %p99
        $region67: #{encoder_decoder_forward.9} parent=23 // pred_check_branch
          %484 = sbr.rel (%p482) target = $region69
        $region68: #{encoder_decoder_forward.9} parent=23 // pred_region
          %p485 = scmp.lt.s32.totalorder %s11, 1
          %s486 = scalar_select %p485, %s11, 1
          %s487 = scalar_lea.vmem %s3, %s486
        $region69: #{encoder_decoder_forward.9} parent=23 // pred_fallthru
          _
        // Predicated region
        $region70: #{encoder_decoder_forward.9} parent=23 // pred_check
          %p488 = pneg %p125
        $region71: #{encoder_decoder_forward.9} parent=23 // pred_check_branch
          %490 = sbr.rel (%p488) target = $region73
        $region72: #{encoder_decoder_forward.9} parent=23 // pred_region
          %p491 = scmp.lt.s32.totalorder %s11, 1
          %s492 = scalar_select %p491, %s11, 1
          %s493 = scalar_lea.vmem %s4, %s492
        $region73: #{encoder_decoder_forward.9} parent=23 // pred_fallthru
          _
      $region24: #{encoder_decoder_forward.9} parent=5 // pred_fallthru
        _
      %p494 = scmp.le.s32.totalorder 1, %s11
      %p495 = scmp.lt.s32.totalorder %s11, 3
      %p496 = pnand %p494, %p495
      %p497 = pneg %p496
      // Predicated region
      $region74: #{encoder_decoder_forward.9} parent=5 // pred_check
        _
      $region75: #{encoder_decoder_forward.9} parent=5 // pred_check_branch
        %499 = sbr.rel (%p496) target = $region77
      $region76: #{encoder_decoder_forward.9} parent=5 // pred_region
        %s500 = ssub.s32 %s11, 1
        %s501 = sand.u32 %s45, 1
        %s502 = sand.u32 %s45, 1
        %s503 = smul.addr %s502, 256
        %s504 = scalar_lea.vmem [#allocation2], %s503
        // Predicated region
        $region78: #{encoder_decoder_forward.9} parent=76 // pred_check
          %p505 = pneg %p58
        $region79: #{encoder_decoder_forward.9} parent=76 // pred_check_branch
          %507 = sbr.rel (%p505) target = $region81
        $region80: #{encoder_decoder_forward.9} parent=76 // pred_region
          _
        $region81: #{encoder_decoder_forward.9} parent=76 // pred_fallthru
          _
        %p508 = pneg %p32
        %p509 = pneg %p29
        %s510 = sand.u32 %s45, 1
        %s511 = sand.u32 %s45, 1
        %s512 = smul.addr %s511, 256
        %s513 = scalar_lea.vmem [#allocation2], %s512
        %p514 = pneg %p58
        %p515 = pneg %p55
        %p516 = pneg %p79
        %p517 = pneg %p76
        %p518 = scmp.lt.s32.totalorder %s16, 1
        %s519 = scalar_select %p518, %s16, 1
        %s520 = scalar_lea.vmem %s3, %s519
        %p521 = pneg %p105
        %p522 = pneg %p102
        %p523 = scmp.lt.s32.totalorder %s16, 1
        %s524 = scalar_select %p523, %s16, 1
        %s525 = scalar_lea.vmem %s4, %s524
        %p526 = pneg %p131
        %p527 = pneg %p128
        %p528 = pneg %p157
        %p529 = pneg %p154
        %p530 = scmp.lt.s32.totalorder %s16, 1
        %s531 = scalar_select %p530, %s16, 1
        %s532 = smul.addr %s531, 4
        %s533 = scalar_lea.vmem %s5, %s532
        %p534 = scmp.lt.s32.totalorder %s16, 1
        %s535 = scalar_select %p534, %s16, 1
        %s536 = scalar_lea.vmem %s3, %s535
        %p537 = scmp.lt.s32.totalorder %s16, 1
        %s538 = scalar_select %p537, %s16, 1
        %s539 = scalar_lea.vmem %s4, %s538
        %p540 = scmp.lt.s32.totalorder %s16, 1
        %s541 = scalar_select %p540, %s16, 1
        %s542 = smul.addr %s541, 4
        %s543 = scalar_lea.vmem %s5, %s542
        %v545 = vld [vmem:[%s0] sm:$0xff]
        %v546 = vld [vmem:[%s0 + $0x8] sm:$0xff]
        %v547 = vld [vmem:[%s504] sm:$0xf]
        %v548 = vld [vmem:[%s504 + $0x4] sm:$0xf]
        %v549 = vld [vmem:[%s504 + $0x8] sm:$0xf]
        %v550 = vld [vmem:[%s504 + $0xc] sm:$0xf]
        %v551 = vld [vmem:[%s504 + $0x10] sm:$0xf]
        %v552 = vld [vmem:[%s504 + $0x14] sm:$0xf]
        %v553 = vld [vmem:[%s504 + $0x18] sm:$0xf]
        %v554 = vld [vmem:[%s504 + $0x1c] sm:$0xf]
        %v555 = vld [vmem:[%s504 + $0x20] sm:$0xf]
        %v556 = vld [vmem:[%s504 + $0x24] sm:$0xf]
        %v557 = vld [vmem:[%s504 + $0x28] sm:$0xf]
        %v558 = vld [vmem:[%s504 + $0x2c] sm:$0xf]
        %v559 = vld [vmem:[%s504 + $0x30] sm:$0xf]
        %v560 = vld [vmem:[%s504 + $0x34] sm:$0xf]
        %v561 = vld [vmem:[%s504 + $0x38] sm:$0xf]
        %v562 = vld [vmem:[%s504 + $0x3c] sm:$0xf]
        %v563 = vld [vmem:[%s504 + $0x40] sm:$0xf]
        %v564 = vld [vmem:[%s504 + $0x44] sm:$0xf]
        %v565 = vld [vmem:[%s504 + $0x48] sm:$0xf]
        %v566 = vld [vmem:[%s504 + $0x4c] sm:$0xf]
        %v567 = vld [vmem:[%s504 + $0x50] sm:$0xf]
        %v568 = vld [vmem:[%s504 + $0x54] sm:$0xf]
        %v569 = vld [vmem:[%s504 + $0x58] sm:$0xf]
        %v570 = vld [vmem:[%s504 + $0x5c] sm:$0xf]
        %v571 = vld [vmem:[%s504 + $0x60] sm:$0xf]
        %v572 = vld [vmem:[%s504 + $0x64] sm:$0xf]
        %v573 = vld [vmem:[%s504 + $0x68] sm:$0xf]
        %v574 = vld [vmem:[%s504 + $0x6c] sm:$0xf]
        %v575 = vld [vmem:[%s504 + $0x70] sm:$0xf]
        %v576 = vld [vmem:[%s504 + $0x74] sm:$0xf]
        %v577 = vld [vmem:[%s504 + $0x78] sm:$0xf]
        %v578 = vld [vmem:[%s504 + $0x7c] sm:$0xf]
        %v579 = vld [vmem:[%s504 + $0x80] sm:$0xf]
        %v580 = vld [vmem:[%s504 + $0x84] sm:$0xf]
        %v581 = vld [vmem:[%s504 + $0x88] sm:$0xf]
        %v582 = vld [vmem:[%s504 + $0x8c] sm:$0xf]
        %v583 = vld [vmem:[%s504 + $0x90] sm:$0xf]
        %v584 = vld [vmem:[%s504 + $0x94] sm:$0xf]
        %v585 = vld [vmem:[%s504 + $0x98] sm:$0xf]
        %v586 = vld [vmem:[%s504 + $0x9c] sm:$0xf]
        %v587 = vld [vmem:[%s504 + $0xa0] sm:$0xf]
        %v588 = vld [vmem:[%s504 + $0xa4] sm:$0xf]
        %v589 = vld [vmem:[%s504 + $0xa8] sm:$0xf]
        %v590 = vld [vmem:[%s504 + $0xac] sm:$0xf]
        %v591 = vld [vmem:[%s504 + $0xb0] sm:$0xf]
        %v592 = vld [vmem:[%s504 + $0xb4] sm:$0xf]
        %v593 = vld [vmem:[%s504 + $0xb8] sm:$0xf]
        %v594 = vld [vmem:[%s504 + $0xbc] sm:$0xf]
        %v595 = vld [vmem:[%s504 + $0xc0] sm:$0xf]
        %v596 = vld [vmem:[%s504 + $0xc4] sm:$0xf]
        %v597 = vld [vmem:[%s504 + $0xc8] sm:$0xf]
        %v598 = vld [vmem:[%s504 + $0xcc] sm:$0xf]
        %v599 = vld [vmem:[%s504 + $0xd0] sm:$0xf]
        %v600 = vld [vmem:[%s504 + $0xd4] sm:$0xf]
        %v601 = vld [vmem:[%s504 + $0xd8] sm:$0xf]
        %v602 = vld [vmem:[%s504 + $0xdc] sm:$0xf]
        %v603 = vld [vmem:[%s504 + $0xe0] sm:$0xf]
        %v604 = vld [vmem:[%s504 + $0xe4] sm:$0xf]
        %v605 = vld [vmem:[%s504 + $0xe8] sm:$0xf]
        %v606 = vld [vmem:[%s504 + $0xec] sm:$0xf]
        %v607 = vld [vmem:[%s504 + $0xf0] sm:$0xf]
        %v608 = vld [vmem:[%s504 + $0xf4] sm:$0xf]
        %v609 = vld [vmem:[%s504 + $0xf8] sm:$0xf]
        %v610 = vld [vmem:[%s504 + $0xfc] sm:$0xf]
        %v613 = vunpack.c.l.b16 %v545
        %v614 = vunpack.c.h.b16 %v545
        %v615 = vunpack.c.l.b16 %v546
        %v616 = vunpack.c.h.b16 %v546
        %v617 = vpack.c.b16 %v613, %v613
        %v618 = vpack.c.b16 %v614, %v614
        %v619 = vpack.c.b16 %v615, %v615
        %v620 = vpack.c.b16 %v616, %v616
        %v689 = vunpack.c.l.b16 %v547
        %v690 = vunpack.c.l.b16 %v548
        %v691 = vunpack.c.l.b16 %v549
        %v692 = vunpack.c.l.b16 %v550
        %v693 = vunpack.c.l.b16 %v551
        %v694 = vunpack.c.l.b16 %v552
        %v695 = vunpack.c.l.b16 %v553
        %v696 = vunpack.c.l.b16 %v554
        %v697 = vunpack.c.l.b16 %v555
        %v698 = vunpack.c.l.b16 %v556
        %v699 = vunpack.c.l.b16 %v557
        %v700 = vunpack.c.l.b16 %v558
        %v701 = vunpack.c.l.b16 %v559
        %v702 = vunpack.c.l.b16 %v560
        %v703 = vunpack.c.l.b16 %v561
        %v704 = vunpack.c.l.b16 %v562
        %v705 = vunpack.c.l.b16 %v563
        %v706 = vunpack.c.l.b16 %v564
        %v707 = vunpack.c.l.b16 %v565
        %v708 = vunpack.c.l.b16 %v566
        %v709 = vunpack.c.l.b16 %v567
        %v710 = vunpack.c.l.b16 %v568
        %v711 = vunpack.c.l.b16 %v569
        %v712 = vunpack.c.l.b16 %v570
        %v713 = vunpack.c.l.b16 %v571
        %v714 = vunpack.c.l.b16 %v572
        %v715 = vunpack.c.l.b16 %v573
        %v716 = vunpack.c.l.b16 %v574
        %v717 = vunpack.c.l.b16 %v575
        %v718 = vunpack.c.l.b16 %v576
        %v719 = vunpack.c.l.b16 %v577
        %v720 = vunpack.c.l.b16 %v578
        %v721 = vunpack.c.l.b16 %v579
        %v722 = vunpack.c.l.b16 %v580
        %v723 = vunpack.c.l.b16 %v581
        %v724 = vunpack.c.l.b16 %v582
        %v725 = vunpack.c.l.b16 %v583
        %v726 = vunpack.c.l.b16 %v584
        %v727 = vunpack.c.l.b16 %v585
        %v728 = vunpack.c.l.b16 %v586
        %v729 = vunpack.c.l.b16 %v587
        %v730 = vunpack.c.l.b16 %v588
        %v731 = vunpack.c.l.b16 %v589
        %v732 = vunpack.c.l.b16 %v590
        %v733 = vunpack.c.l.b16 %v591
        %v734 = vunpack.c.l.b16 %v592
        %v735 = vunpack.c.l.b16 %v593
        %v736 = vunpack.c.l.b16 %v594
        %v737 = vunpack.c.l.b16 %v595
        %v738 = vunpack.c.l.b16 %v596
        %v739 = vunpack.c.l.b16 %v597
        %v740 = vunpack.c.l.b16 %v598
        %v741 = vunpack.c.l.b16 %v599
        %v742 = vunpack.c.l.b16 %v600
        %v743 = vunpack.c.l.b16 %v601
        %v744 = vunpack.c.l.b16 %v602
        %v745 = vunpack.c.l.b16 %v603
        %v746 = vunpack.c.l.b16 %v604
        %v747 = vunpack.c.l.b16 %v605
        %v748 = vunpack.c.l.b16 %v606
        %v749 = vunpack.c.l.b16 %v607
        %v750 = vunpack.c.l.b16 %v608
        %v751 = vunpack.c.l.b16 %v609
        %v752 = vunpack.c.l.b16 %v610
        %v753 = vpack.c.b16 %v690, %v689
        %v754 = vpack.c.b16 %v692, %v691
        %v755 = vpack.c.b16 %v694, %v693
        %v756 = vpack.c.b16 %v696, %v695
        %v757 = vpack.c.b16 %v698, %v697
        %v758 = vpack.c.b16 %v700, %v699
        %v759 = vpack.c.b16 %v702, %v701
        %v760 = vpack.c.b16 %v704, %v703
        %v761 = vpack.c.b16 %v706, %v705
        %v762 = vpack.c.b16 %v708, %v707
        %v763 = vpack.c.b16 %v710, %v709
        %v764 = vpack.c.b16 %v712, %v711
        %v765 = vpack.c.b16 %v714, %v713
        %v766 = vpack.c.b16 %v716, %v715
        %v767 = vpack.c.b16 %v718, %v717
        %v768 = vpack.c.b16 %v720, %v719
        %v769 = vpack.c.b16 %v722, %v721
        %v770 = vpack.c.b16 %v724, %v723
        %v771 = vpack.c.b16 %v726, %v725
        %v772 = vpack.c.b16 %v728, %v727
        %v773 = vpack.c.b16 %v730, %v729
        %v774 = vpack.c.b16 %v732, %v731
        %v775 = vpack.c.b16 %v734, %v733
        %v776 = vpack.c.b16 %v736, %v735
        %v777 = vpack.c.b16 %v738, %v737
        %v778 = vpack.c.b16 %v740, %v739
        %v779 = vpack.c.b16 %v742, %v741
        %v780 = vpack.c.b16 %v744, %v743
        %v781 = vpack.c.b16 %v746, %v745
        %v782 = vpack.c.b16 %v748, %v747
        %v783 = vpack.c.b16 %v750, %v749
        %v784 = vpack.c.b16 %v752, %v751
        %817 = vmatprep.subr.bf16.mxu0 0
        %818 = vmatpush1.bf16.msra.mxu0 %v753
        %819 = vmatprep.subr.bf16.mxu0 0
        %820 = vmatpush1.bf16.msra.mxu0 %v754
        %821 = vmatprep.subr.bf16.mxu0 0
        %822 = vmatpush1.bf16.msra.mxu0 %v755
        %823 = vmatprep.subr.bf16.mxu0 0
        %824 = vmatpush1.bf16.msra.mxu0 %v756
        %825 = vmatprep.subr.bf16.mxu0 0
        %826 = vmatpush1.bf16.msra.mxu0 %v757
        %827 = vmatprep.subr.bf16.mxu0 0
        %828 = vmatpush1.bf16.msra.mxu0 %v758
        %829 = vmatprep.subr.bf16.mxu0 0
        %830 = vmatpush1.bf16.msra.mxu0 %v759
        %831 = vmatprep.subr.bf16.mxu0 0
        %832 = vmatpush1.bf16.msra.mxu0 %v760
        %833 = vmatprep.subr.bf16.mxu0 0
        %834 = vmatpush1.bf16.msra.mxu0 %v761
        %835 = vmatprep.subr.bf16.mxu0 0
        %836 = vmatpush1.bf16.msra.mxu0 %v762
        %837 = vmatprep.subr.bf16.mxu0 0
        %838 = vmatpush1.bf16.msra.mxu0 %v763
        %839 = vmatprep.subr.bf16.mxu0 0
        %840 = vmatpush1.bf16.msra.mxu0 %v764
        %841 = vmatprep.subr.bf16.mxu0 0
        %842 = vmatpush1.bf16.msra.mxu0 %v765
        %843 = vmatprep.subr.bf16.mxu0 0
        %844 = vmatpush1.bf16.msra.mxu0 %v766
        %845 = vmatprep.subr.bf16.mxu0 0
        %846 = vmatpush1.bf16.msra.mxu0 %v767
        %847 = vmatprep.subr.bf16.mxu0 0
        %848 = vmatpush1.bf16.msra.mxu0 %v768
        %849 = vmatprep.mubr.bf16.mxu0 %v618
        %850 = vmatmul.mubr.bf16.gmra.mrb[0].mxu0 %v617
        %v851 = vpop.f32.mrb[0].mxu0
        %v852 = vadd.f32 0.0, %v851
        %v853 = vpop.f32.mrb[0].mxu0
        %v854 = vpop.f32.mrb[0].mxu0
        %v855 = vpop.f32.mrb[0].mxu0
        %856 = vdwg.mxu0
        %857 = vmatprep.subr.bf16.mxu0 0
        %858 = vmatpush1.bf16.msra.mxu0 %v769
        %859 = vmatprep.subr.bf16.mxu0 0
        %860 = vmatpush1.bf16.msra.mxu0 %v770
        %861 = vmatprep.subr.bf16.mxu0 0
        %862 = vmatpush1.bf16.msra.mxu0 %v771
        %863 = vmatprep.subr.bf16.mxu0 0
        %864 = vmatpush1.bf16.msra.mxu0 %v772
        %865 = vmatprep.subr.bf16.mxu0 0
        %866 = vmatpush1.bf16.msra.mxu0 %v773
        %867 = vmatprep.subr.bf16.mxu0 0
        %868 = vmatpush1.bf16.msra.mxu0 %v774
        %869 = vmatprep.subr.bf16.mxu0 0
        %870 = vmatpush1.bf16.msra.mxu0 %v775
        %871 = vmatprep.subr.bf16.mxu0 0
        %872 = vmatpush1.bf16.msra.mxu0 %v776
        %873 = vmatprep.subr.bf16.mxu0 0
        %874 = vmatpush1.bf16.msra.mxu0 %v777
        %875 = vmatprep.subr.bf16.mxu0 0
        %876 = vmatpush1.bf16.msra.mxu0 %v778
        %877 = vmatprep.subr.bf16.mxu0 0
        %878 = vmatpush1.bf16.msra.mxu0 %v779
        %879 = vmatprep.subr.bf16.mxu0 0
        %880 = vmatpush1.bf16.msra.mxu0 %v780
        %881 = vmatprep.subr.bf16.mxu0 0
        %882 = vmatpush1.bf16.msra.mxu0 %v781
        %883 = vmatprep.subr.bf16.mxu0 0
        %884 = vmatpush1.bf16.msra.mxu0 %v782
        %885 = vmatprep.subr.bf16.mxu0 0
        %886 = vmatpush1.bf16.msra.mxu0 %v783
        %887 = vmatprep.subr.bf16.mxu0 0
        %888 = vmatpush1.bf16.msra.mxu0 %v784
        %889 = vmatprep.mubr.bf16.mxu0 %v620
        %890 = vmatmul.mubr.bf16.gmra.mrb[0].mxu0 %v619
        %v891 = vpop.f32.mrb[0].mxu0
        %v892 = vadd.f32 %v852, %v891
        %v893 = vpop.f32.mrb[0].mxu0
        %v894 = vpop.f32.mrb[0].mxu0
        %v895 = vpop.f32.mrb[0].mxu0
        %896 = vdwg.mxu0
        %v897 = vrot.slane %v892, 4
        %v898 = vadd.f32 %v892, %v897
        %v899 = vrot.slane %v898, 2
        %v900 = vadd.f32 %v898, %v899
        %v901 = vrot.slane %v900, 1
        %v902 = vadd.f32 %v900, %v901
        %v903 = vmul.f32 %v892, %v892
        %v904 = vrot.slane %v903, 4
        %v905 = vadd.f32 %v903, %v904
        %v906 = vrot.slane %v905, 2
        %v907 = vadd.f32 %v905, %v906
        %v908 = vrot.slane %v907, 1
        %v909 = vadd.f32 %v907, %v908
        %v910 = vld [vmem:[%s2] sm:$0xff]
        %v911 = vld [vmem:[%s2 + $0x8] sm:$0xff]
        %v912 = vld [vmem:[%s2 + $0x10] sm:$0xff]
        %v913 = vld [vmem:[%s2 + $0x18] sm:$0xff]
        %v914 = vld [vmem:[%s2 + $0x20] sm:$0xff]
        %v915 = vld [vmem:[%s2 + $0x28] sm:$0xff]
        %v916 = vld [vmem:[%s2 + $0x30] sm:$0xff]
        %v917 = vld [vmem:[%s2 + $0x38] sm:$0xff]
        %v918 = vld [vmem:[%s2 + $0x40] sm:$0xff]
        %v919 = vld [vmem:[%s2 + $0x48] sm:$0xff]
        %v920 = vld [vmem:[%s2 + $0x50] sm:$0xff]
        %v921 = vld [vmem:[%s2 + $0x58] sm:$0xff]
        %v922 = vld [vmem:[%s2 + $0x60] sm:$0xff]
        %v923 = vld [vmem:[%s2 + $0x68] sm:$0xff]
        %v924 = vld [vmem:[%s2 + $0x70] sm:$0xff]
        %v925 = vld [vmem:[%s2 + $0x78] sm:$0xff]
        %926 = vmatprep.subr.mxu0 0.0
        %927 = vmatpush1.msra.mxu0 %v910
        %928 = vmatprep.subr.mxu0 0.0
        %929 = vmatpush1.msra.mxu0 %v911
        %930 = vmatprep.subr.mxu0 0.0
        %931 = vmatpush1.msra.mxu0 %v912
        %932 = vmatprep.subr.mxu0 0.0
        %933 = vmatpush1.msra.mxu0 %v913
        %934 = vmatprep.subr.mxu0 0.0
        %935 = vmatpush1.msra.mxu0 %v914
        %936 = vmatprep.subr.mxu0 0.0
        %937 = vmatpush1.msra.mxu0 %v915
        %938 = vmatprep.subr.mxu0 0.0
        %939 = vmatpush1.msra.mxu0 %v916
        %940 = vmatprep.subr.mxu0 0.0
        %941 = vmatpush1.msra.mxu0 %v917
        %942 = vmatprep.subr.mxu0 0.0
        %943 = vmatpush1.msra.mxu0 %v918
        %944 = vmatprep.subr.mxu0 0.0
        %945 = vmatpush1.msra.mxu0 %v919
        %946 = vmatprep.subr.mxu0 0.0
        %947 = vmatpush1.msra.mxu0 %v920
        %948 = vmatprep.subr.mxu0 0.0
        %949 = vmatpush1.msra.mxu0 %v921
        %950 = vmatprep.subr.mxu0 0.0
        %951 = vmatpush1.msra.mxu0 %v922
        %952 = vmatprep.subr.mxu0 0.0
        %953 = vmatpush1.msra.mxu0 %v923
        %954 = vmatprep.subr.mxu0 0.0
        %955 = vmatpush1.msra.mxu0 %v924
        %956 = vmatprep.subr.mxu0 0.0
        %957 = vmatpush1.msra.mxu0 %v925
        %958 = vmatprep.subr.mxu0 0.0
        %959 = vmatpush1.msra.mxu0 0.0
        %960 = vmatprep.subr.mxu0 0.0
        %961 = vmatpush1.msra.mxu0 0.0
        %962 = vmatprep.subr.mxu0 0.0
        %963 = vmatpush1.msra.mxu0 0.0
        %964 = vmatprep.subr.mxu0 0.0
        %965 = vmatpush1.msra.mxu0 0.0
        %966 = vmatprep.subr.mxu0 0.0
        %967 = vmatpush1.msra.mxu0 0.0
        %968 = vmatprep.subr.mxu0 0.0
        %969 = vmatpush1.msra.mxu0 0.0
        %970 = vmatprep.subr.mxu0 0.0
        %971 = vmatpush1.msra.mxu0 0.0
        %972 = vmatprep.subr.mxu0 0.0
        %973 = vmatpush1.msra.mxu0 0.0
        %974 = vmatprep.subr.mxu0 0.0
        %975 = vmatpush1.msra.mxu0 0.0
        %976 = vmatprep.subr.mxu0 0.0
        %977 = vmatpush1.msra.mxu0 0.0
        %978 = vmatprep.subr.mxu0 0.0
        %979 = vmatpush1.msra.mxu0 0.0
        %980 = vmatprep.subr.mxu0 0.0
        %981 = vmatpush1.msra.mxu0 0.0
        %982 = vmatprep.subr.mxu0 0.0
        %983 = vmatpush1.msra.mxu0 0.0
        %984 = vmatprep.subr.mxu0 0.0
        %985 = vmatpush1.msra.mxu0 0.0
        %986 = vmatprep.subr.mxu0 0.0
        %987 = vmatpush1.msra.mxu0 0.0
        %988 = vmatprep.subr.mxu0 0.0
        %989 = vmatpush1.msra.mxu0 0.0
        %990 = vmatprep.mubr.f32.mxu0 0.0
        %991 = vmatmul.mubr.f32.gmra.mrb[0].mxu0 %v902
        %v992 = vpop.f32.mrb[0].mxu0
        %v993 = vadd.f32 0.0, %v992
        %v994 = vpop.f32.mrb[0].mxu0
        %995 = vdwg.mxu0
        %996 = vmatprep.subr.mxu0 0.0
        %997 = vmatpush1.msra.mxu0 %v910
        %998 = vmatprep.subr.mxu0 0.0
        %999 = vmatpush1.msra.mxu0 %v911
        %1000 = vmatprep.subr.mxu0 0.0
        %1001 = vmatpush1.msra.mxu0 %v912
        %1002 = vmatprep.subr.mxu0 0.0
        %1003 = vmatpush1.msra.mxu0 %v913
        %1004 = vmatprep.subr.mxu0 0.0
        %1005 = vmatpush1.msra.mxu0 %v914
        %1006 = vmatprep.subr.mxu0 0.0
        %1007 = vmatpush1.msra.mxu0 %v915
        %1008 = vmatprep.subr.mxu0 0.0
        %1009 = vmatpush1.msra.mxu0 %v916
        %1010 = vmatprep.subr.mxu0 0.0
        %1011 = vmatpush1.msra.mxu0 %v917
        %1012 = vmatprep.subr.mxu0 0.0
        %1013 = vmatpush1.msra.mxu0 %v918
        %1014 = vmatprep.subr.mxu0 0.0
        %1015 = vmatpush1.msra.mxu0 %v919
        %1016 = vmatprep.subr.mxu0 0.0
        %1017 = vmatpush1.msra.mxu0 %v920
        %1018 = vmatprep.subr.mxu0 0.0
        %1019 = vmatpush1.msra.mxu0 %v921
        %1020 = vmatprep.subr.mxu0 0.0
        %1021 = vmatpush1.msra.mxu0 %v922
        %1022 = vmatprep.subr.mxu0 0.0
        %1023 = vmatpush1.msra.mxu0 %v923
        %1024 = vmatprep.subr.mxu0 0.0
        %1025 = vmatpush1.msra.mxu0 %v924
        %1026 = vmatprep.subr.mxu0 0.0
        %1027 = vmatpush1.msra.mxu0 %v925
        %1028 = vmatprep.subr.mxu0 0.0
        %1029 = vmatpush1.msra.mxu0 0.0
        %1030 = vmatprep.subr.mxu0 0.0
        %1031 = vmatpush1.msra.mxu0 0.0
        %1032 = vmatprep.subr.mxu0 0.0
        %1033 = vmatpush1.msra.mxu0 0.0
        %1034 = vmatprep.subr.mxu0 0.0
        %1035 = vmatpush1.msra.mxu0 0.0
        %1036 = vmatprep.subr.mxu0 0.0
        %1037 = vmatpush1.msra.mxu0 0.0
        %1038 = vmatprep.subr.mxu0 0.0
        %1039 = vmatpush1.msra.mxu0 0.0
        %1040 = vmatprep.subr.mxu0 0.0
        %1041 = vmatpush1.msra.mxu0 0.0
        %1042 = vmatprep.subr.mxu0 0.0
        %1043 = vmatpush1.msra.mxu0 0.0
        %1044 = vmatprep.subr.mxu0 0.0
        %1045 = vmatpush1.msra.mxu0 0.0
        %1046 = vmatprep.subr.mxu0 0.0
        %1047 = vmatpush1.msra.mxu0 0.0
        %1048 = vmatprep.subr.mxu0 0.0
        %1049 = vmatpush1.msra.mxu0 0.0
        %1050 = vmatprep.subr.mxu0 0.0
        %1051 = vmatpush1.msra.mxu0 0.0
        %1052 = vmatprep.subr.mxu0 0.0
        %1053 = vmatpush1.msra.mxu0 0.0
        %1054 = vmatprep.subr.mxu0 0.0
        %1055 = vmatpush1.msra.mxu0 0.0
        %1056 = vmatprep.subr.mxu0 0.0
        %1057 = vmatpush1.msra.mxu0 0.0
        %1058 = vmatprep.subr.mxu0 0.0
        %1059 = vmatpush1.msra.mxu0 0.0
        %1060 = vmatprep.mubr.f32.mxu0 0.0
        %1061 = vmatmul.mubr.f32.gmra.mrb[0].mxu0 %v909
        %v1062 = vpop.f32.mrb[0].mxu0
        %v1063 = vadd.f32 0.0, %v1062
        %v1064 = vpop.f32.mrb[0].mxu0
        %1065 = vdwg.mxu0
        %v1066 = vmul.f32 %v993, 0.03125
        %v1067 = vmul.f32 %v1063, 0.03125
        %v1068 = vmul.f32 %v1066, %v1066
        %v1069 = vsub.f32 %v1067, %v1068
        %v1070 = vmax.f32 %v1069, 0.0
        %v1071 = vld [vmem:[%s536] sm:$0x1]
        %v1072 = vadd.f32 %v1070, 1e-05
        %v1073 = vrsqrt.pop %v1072
        %v1074 = vmul.f32 %v1071, %v1073
        %v1075 = vld [vmem:[%s539] sm:$0x1]
        %v1076 = vmul.f32 %v1066, %v1074
        %v1077 = vsub.f32 %v1075, %v1076
        %v1079 = vlaneseq
        %v1080 = vshrl.u32 %v1079, 7
        %v1081 = vsub.s32 0, %v1080
        %v1082 = vrot.slane %v1074, %v1081
        %v1084 = vmul.f32 %v892, %v1082
        %v1086 = vlaneseq
        %v1087 = vshrl.u32 %v1086, 7
        %v1088 = vsub.s32 0, %v1087
        %v1089 = vrot.slane %v1077, %v1088
        %v1091 = vadd.f32 %v1084, %v1089
        %v1092 = vmax.f32 %v1091, 0.0
        %v1093 = vpack.c.bf16 %v1092, %v1092
        %1094 = vst [vmem:[%s543] sm:$0xf] %v1093
        %p1095 = scmp.lt.s32.totalorder %s16, 1
        %s1096 = scalar_select %p1095, %s16, 1
        %s1097 = smul.addr %s1096, 4
        %s1098 = scalar_lea.vmem %s5, %s1097
        // Predicated region
        $region82: #{encoder_decoder_forward.9} parent=76 // pred_check
          %p1099 = pneg %p154
        $region83: #{encoder_decoder_forward.9} parent=76 // pred_check_branch
          %1101 = sbr.rel (%p1099) target = $region85
        $region84: #{encoder_decoder_forward.9} parent=76 // pred_region
          _
        $region85: #{encoder_decoder_forward.9} parent=76 // pred_fallthru
          _
      $region77: #{encoder_decoder_forward.9} parent=5 // pred_fallthru
        _
      %p1102 = scmp.le.s32.totalorder 2, %s11
      // Predicated region
      $region86: #{encoder_decoder_forward.9} parent=5 // pred_check
        %p1103 = pneg %p1102
      $region87: #{encoder_decoder_forward.9} parent=5 // pred_check_branch
        %1105 = sbr.rel (%p1103) target = $region89
      $region88: #{encoder_decoder_forward.9} parent=5 // pred_region
        %s1106 = ssub.s32 %s11, 2
        // Predicated region
        $region90: #{encoder_decoder_forward.9} parent=88 // pred_check
          %p1107 = pneg %p160
        $region91: #{encoder_decoder_forward.9} parent=88 // pred_check_branch
          %1109 = sbr.rel (%p1107) target = $region93
        $region92: #{encoder_decoder_forward.9} parent=88 // pred_region
          %p1110 = scmp.lt.s32.totalorder %s17, 1
          %s1111 = scalar_select %p1110, %s17, 1
          %s1112 = smul.addr %s1111, 4
          %s1113 = scalar_lea.vmem %s5, %s1112
        $region93: #{encoder_decoder_forward.9} parent=88 // pred_fallthru
          _
      $region89: #{encoder_decoder_forward.9} parent=5 // pred_fallthru
        _
    $region6: #{encoder_decoder_forward.9} parent=1 // loop_footer
      %s15 = sadd.s32 1, %s11
    $region7: #{encoder_decoder_forward.9} parent=1 // loop_footer_branch
      %10 = sbr.rel target = $region3
    $region8: #{encoder_decoder_forward.9} parent=1 // loop_exit
      _

// kernel: encoder_decoder_forward.10
$region0: #{encoder_decoder_forward.10}
  #allocation0 [shape = 'u32[]', space=smem, size = 0x4, offset = 0x4, fixed_abs, tag = 'smem constant byte address 0x4 - core index']
  #allocation1 [shape = 'u32[144,128]{1,0:T(1,128)}', space=vmem, size = 0x12000, scoped, tag = 'internal scratch']
  %s0 = inlined_call_operand.vmem [shape: bf16[32,256], index: 0, kind: input, shape index: {}]
  %s1 = inlined_call_operand.vmem [shape: bf16[256,128], index: 1, kind: input, shape index: {}]
  %s2 = inlined_call_operand.vmem [shape: f32[128,128], index: 2, kind: input, shape index: {}]
  %s3 = inlined_call_operand.vmem [shape: f32[1,128], index: 3, kind: input, shape index: {}]
  %s4 = inlined_call_operand.vmem [shape: f32[1,128], index: 4, kind: input, shape index: {}]
  %s5 = inlined_call_operand.vmem [shape: bf16[32,128], index: 5, kind: output, shape index: {}]
  %s6 = sld [smem:[#allocation0]]
  $region30: #{encoder_decoder_forward.10} parent=0
    _
  %s8 = ssub.s32 1, %s6
  %s9 = scalar_select 0, %s8, %s6
  // Predicated region
  $region2: #{encoder_decoder_forward.10} parent=0 // pred_check
    _
  $region3: #{encoder_decoder_forward.10} parent=0 // pred_check_branch
    %11 = sbr.rel (0) target = $region5
  $region4: #{encoder_decoder_forward.10} parent=0 // pred_region
    _
  $region5: #{encoder_decoder_forward.10} parent=0 // pred_fallthru
    _
  // Predicated region
  $region6: #{encoder_decoder_forward.10} parent=0 // pred_check
    _
  $region7: #{encoder_decoder_forward.10} parent=0 // pred_check_branch
    %13 = sbr.rel (0) target = $region9
  $region8: #{encoder_decoder_forward.10} parent=0 // pred_region
    _
  $region9: #{encoder_decoder_forward.10} parent=0 // pred_fallthru
    _
  // Predicated region
  $region10: #{encoder_decoder_forward.10} parent=0 // pred_check
    _
  $region11: #{encoder_decoder_forward.10} parent=0 // pred_check_branch
    %15 = sbr.rel (0) target = $region13
  $region12: #{encoder_decoder_forward.10} parent=0 // pred_region
    _
  $region13: #{encoder_decoder_forward.10} parent=0 // pred_fallthru
    _
  // Predicated region
  $region14: #{encoder_decoder_forward.10} parent=0 // pred_check
    _
  $region15: #{encoder_decoder_forward.10} parent=0 // pred_check_branch
    %17 = sbr.rel (0) target = $region17
  $region16: #{encoder_decoder_forward.10} parent=0 // pred_region
    _
  $region17: #{encoder_decoder_forward.10} parent=0 // pred_fallthru
    _
  // Predicated region
  $region18: #{encoder_decoder_forward.10} parent=0 // pred_check
    _
  $region19: #{encoder_decoder_forward.10} parent=0 // pred_check_branch
    %19 = sbr.rel (0) target = $region21
  $region20: #{encoder_decoder_forward.10} parent=0 // pred_region
    _
  $region21: #{encoder_decoder_forward.10} parent=0 // pred_fallthru
    _
  %v21 = vld [vmem:[%s0] sm:$0xff]
  %v22 = vld [vmem:[%s0 + $0x8] sm:$0xff]
  %v23 = vld [vmem:[%s0 + $0x10] sm:$0xff]
  %v24 = vld [vmem:[%s0 + $0x18] sm:$0xff]
  %v25 = vld [vmem:[%s1] sm:$0xf]
  %v26 = vld [vmem:[%s1 + $0x4] sm:$0xf]
  %v27 = vld [vmem:[%s1 + $0x8] sm:$0xf]
  %v28 = vld [vmem:[%s1 + $0xc] sm:$0xf]
  %v29 = vld [vmem:[%s1 + $0x10] sm:$0xf]
  %v30 = vld [vmem:[%s1 + $0x14] sm:$0xf]
  %v31 = vld [vmem:[%s1 + $0x18] sm:$0xf]
  %v32 = vld [vmem:[%s1 + $0x1c] sm:$0xf]
  %v33 = vld [vmem:[%s1 + $0x20] sm:$0xf]
  %v34 = vld [vmem:[%s1 + $0x24] sm:$0xf]
  %v35 = vld [vmem:[%s1 + $0x28] sm:$0xf]
  %v36 = vld [vmem:[%s1 + $0x2c] sm:$0xf]
  %v37 = vld [vmem:[%s1 + $0x30] sm:$0xf]
  %v38 = vld [vmem:[%s1 + $0x34] sm:$0xf]
  %v39 = vld [vmem:[%s1 + $0x38] sm:$0xf]
  %v40 = vld [vmem:[%s1 + $0x3c] sm:$0xf]
  %v41 = vld [vmem:[%s1 + $0x40] sm:$0xf]
  %v42 = vld [vmem:[%s1 + $0x44] sm:$0xf]
  %v43 = vld [vmem:[%s1 + $0x48] sm:$0xf]
  %v44 = vld [vmem:[%s1 + $0x4c] sm:$0xf]
  %v45 = vld [vmem:[%s1 + $0x50] sm:$0xf]
  %v46 = vld [vmem:[%s1 + $0x54] sm:$0xf]
  %v47 = vld [vmem:[%s1 + $0x58] sm:$0xf]
  %v48 = vld [vmem:[%s1 + $0x5c] sm:$0xf]
  %v49 = vld [vmem:[%s1 + $0x60] sm:$0xf]
  %v50 = vld [vmem:[%s1 + $0x64] sm:$0xf]
  %v51 = vld [vmem:[%s1 + $0x68] sm:$0xf]
  %v52 = vld [vmem:[%s1 + $0x6c] sm:$0xf]
  %v53 = vld [vmem:[%s1 + $0x70] sm:$0xf]
  %v54 = vld [vmem:[%s1 + $0x74] sm:$0xf]
  %v55 = vld [vmem:[%s1 + $0x78] sm:$0xf]
  %v56 = vld [vmem:[%s1 + $0x7c] sm:$0xf]
  %v61 = vunpack.c.l.b16 %v21
  %v62 = vunpack.c.h.b16 %v21
  %v63 = vunpack.c.l.b16 %v22
  %v64 = vunpack.c.h.b16 %v22
  %v65 = vunpack.c.l.b16 %v23
  %v66 = vunpack.c.h.b16 %v23
  %v67 = vunpack.c.l.b16 %v24
  %v68 = vunpack.c.h.b16 %v24
  %v69 = vpack.c.b16 %v63, %v61
  %v70 = vpack.c.b16 %v64, %v62
  %v71 = vpack.c.b16 %v67, %v65
  %v72 = vpack.c.b16 %v68, %v66
  %v109 = vunpack.c.l.b16 %v25
  %v110 = vunpack.c.l.b16 %v26
  %v111 = vunpack.c.l.b16 %v27
  %v112 = vunpack.c.l.b16 %v28
  %v113 = vunpack.c.l.b16 %v29
  %v114 = vunpack.c.l.b16 %v30
  %v115 = vunpack.c.l.b16 %v31
  %v116 = vunpack.c.l.b16 %v32
  %v117 = vunpack.c.l.b16 %v33
  %v118 = vunpack.c.l.b16 %v34
  %v119 = vunpack.c.l.b16 %v35
  %v120 = vunpack.c.l.b16 %v36
  %v121 = vunpack.c.l.b16 %v37
  %v122 = vunpack.c.l.b16 %v38
  %v123 = vunpack.c.l.b16 %v39
  %v124 = vunpack.c.l.b16 %v40
  %v125 = vunpack.c.l.b16 %v41
  %v126 = vunpack.c.l.b16 %v42
  %v127 = vunpack.c.l.b16 %v43
  %v128 = vunpack.c.l.b16 %v44
  %v129 = vunpack.c.l.b16 %v45
  %v130 = vunpack.c.l.b16 %v46
  %v131 = vunpack.c.l.b16 %v47
  %v132 = vunpack.c.l.b16 %v48
  %v133 = vunpack.c.l.b16 %v49
  %v134 = vunpack.c.l.b16 %v50
  %v135 = vunpack.c.l.b16 %v51
  %v136 = vunpack.c.l.b16 %v52
  %v137 = vunpack.c.l.b16 %v53
  %v138 = vunpack.c.l.b16 %v54
  %v139 = vunpack.c.l.b16 %v55
  %v140 = vunpack.c.l.b16 %v56
  %v141 = vpack.c.b16 %v110, %v109
  %v142 = vpack.c.b16 %v112, %v111
  %v143 = vpack.c.b16 %v114, %v113
  %v144 = vpack.c.b16 %v116, %v115
  %v145 = vpack.c.b16 %v118, %v117
  %v146 = vpack.c.b16 %v120, %v119
  %v147 = vpack.c.b16 %v122, %v121
  %v148 = vpack.c.b16 %v124, %v123
  %v149 = vpack.c.b16 %v126, %v125
  %v150 = vpack.c.b16 %v128, %v127
  %v151 = vpack.c.b16 %v130, %v129
  %v152 = vpack.c.b16 %v132, %v131
  %v153 = vpack.c.b16 %v134, %v133
  %v154 = vpack.c.b16 %v136, %v135
  %v155 = vpack.c.b16 %v138, %v137
  %v156 = vpack.c.b16 %v140, %v139
  %173 = vmatprep.subr.bf16.mxu0 0
  %174 = vmatpush1.bf16.msra.mxu0 %v141
  %175 = vmatprep.subr.bf16.mxu0 0
  %176 = vmatpush1.bf16.msra.mxu0 %v142
  %177 = vmatprep.subr.bf16.mxu0 0
  %178 = vmatpush1.bf16.msra.mxu0 %v143
  %179 = vmatprep.subr.bf16.mxu0 0
  %180 = vmatpush1.bf16.msra.mxu0 %v144
  %181 = vmatprep.subr.bf16.mxu0 0
  %182 = vmatpush1.bf16.msra.mxu0 %v145
  %183 = vmatprep.subr.bf16.mxu0 0
  %184 = vmatpush1.bf16.msra.mxu0 %v146
  %185 = vmatprep.subr.bf16.mxu0 0
  %186 = vmatpush1.bf16.msra.mxu0 %v147
  %187 = vmatprep.subr.bf16.mxu0 0
  %188 = vmatpush1.bf16.msra.mxu0 %v148
  %189 = vmatprep.subr.bf16.mxu0 0
  %190 = vmatpush1.bf16.msra.mxu0 %v149
  %191 = vmatprep.subr.bf16.mxu0 0
  %192 = vmatpush1.bf16.msra.mxu0 %v150
  %193 = vmatprep.subr.bf16.mxu0 0
  %194 = vmatpush1.bf16.msra.mxu0 %v151
  %195 = vmatprep.subr.bf16.mxu0 0
  %196 = vmatpush1.bf16.msra.mxu0 %v152
  %197 = vmatprep.subr.bf16.mxu0 0
  %198 = vmatpush1.bf16.msra.mxu0 %v153
  %199 = vmatprep.subr.bf16.mxu0 0
  %200 = vmatpush1.bf16.msra.mxu0 %v154
  %201 = vmatprep.subr.bf16.mxu0 0
  %202 = vmatpush1.bf16.msra.mxu0 %v155
  %203 = vmatprep.subr.bf16.mxu0 0
  %204 = vmatpush1.bf16.msra.mxu0 %v156
  %205 = vmatprep.mubr.bf16.mxu0 %v70
  %206 = vmatmul.mubr.bf16.gmra.mrb[0].mxu0 %v69
  %v207 = vpop.f32.mrb[0].mxu0
  %v208 = vadd.f32 0.0, %v207
  %v209 = vpop.f32.mrb[0].mxu0
  %v210 = vpop.f32.mrb[0].mxu0
  %v211 = vadd.f32 0.0, %v210
  %v212 = vpop.f32.mrb[0].mxu0
  %213 = vmatprep.mubr.bf16.mxu0 %v72
  %214 = vmatmul.mubr.bf16.gmra.mrb[0].mxu0 %v71
  %v215 = vpop.f32.mrb[0].mxu0
  %v216 = vadd.f32 0.0, %v215
  %v217 = vpop.f32.mrb[0].mxu0
  %v218 = vpop.f32.mrb[0].mxu0
  %v219 = vadd.f32 0.0, %v218
  %v220 = vpop.f32.mrb[0].mxu0
  %221 = vdwg.mxu0
  %v222 = vadd.f32 %v208, %v211
  %v223 = vadd.f32 %v222, %v216
  %v224 = vadd.f32 %v223, %v219
  %v225 = vrot.slane %v224, 4
  %v226 = vadd.f32 %v224, %v225
  %v227 = vrot.slane %v226, 2
  %v228 = vadd.f32 %v226, %v227
  %v229 = vrot.slane %v228, 1
  %v230 = vadd.f32 %v228, %v229
  %v231 = vmul.f32 %v208, %v208
  %v232 = vmul.f32 %v211, %v211
  %v233 = vmul.f32 %v216, %v216
  %v234 = vmul.f32 %v219, %v219
  %v235 = vadd.f32 %v231, %v232
  %v236 = vadd.f32 %v235, %v233
  %v237 = vadd.f32 %v236, %v234
  %v238 = vrot.slane %v237, 4
  %v239 = vadd.f32 %v237, %v238
  %v240 = vrot.slane %v239, 2
  %v241 = vadd.f32 %v239, %v240
  %v242 = vrot.slane %v241, 1
  %v243 = vadd.f32 %v241, %v242
  %v244 = vld [vmem:[%s2] sm:$0xff]
  %v245 = vld [vmem:[%s2 + $0x8] sm:$0xff]
  %v246 = vld [vmem:[%s2 + $0x10] sm:$0xff]
  %v247 = vld [vmem:[%s2 + $0x18] sm:$0xff]
  %v248 = vld [vmem:[%s2 + $0x20] sm:$0xff]
  %v249 = vld [vmem:[%s2 + $0x28] sm:$0xff]
  %v250 = vld [vmem:[%s2 + $0x30] sm:$0xff]
  %v251 = vld [vmem:[%s2 + $0x38] sm:$0xff]
  %v252 = vld [vmem:[%s2 + $0x40] sm:$0xff]
  %v253 = vld [vmem:[%s2 + $0x48] sm:$0xff]
  %v254 = vld [vmem:[%s2 + $0x50] sm:$0xff]
  %v255 = vld [vmem:[%s2 + $0x58] sm:$0xff]
  %v256 = vld [vmem:[%s2 + $0x60] sm:$0xff]
  %v257 = vld [vmem:[%s2 + $0x68] sm:$0xff]
  %v258 = vld [vmem:[%s2 + $0x70] sm:$0xff]
  %v259 = vld [vmem:[%s2 + $0x78] sm:$0xff]
  %260 = vmatprep.subr.mxu0 0.0
  %261 = vmatpush1.msra.mxu0 %v244
  %262 = vmatprep.subr.mxu0 0.0
  %263 = vmatpush1.msra.mxu0 %v245
  %264 = vmatprep.subr.mxu0 0.0
  %265 = vmatpush1.msra.mxu0 %v246
  %266 = vmatprep.subr.mxu0 0.0
  %267 = vmatpush1.msra.mxu0 %v247
  %268 = vmatprep.subr.mxu0 0.0
  %269 = vmatpush1.msra.mxu0 %v248
  %270 = vmatprep.subr.mxu0 0.0
  %271 = vmatpush1.msra.mxu0 %v249
  %272 = vmatprep.subr.mxu0 0.0
  %273 = vmatpush1.msra.mxu0 %v250
  %274 = vmatprep.subr.mxu0 0.0
  %275 = vmatpush1.msra.mxu0 %v251
  %276 = vmatprep.subr.mxu0 0.0
  %277 = vmatpush1.msra.mxu0 %v252
  %278 = vmatprep.subr.mxu0 0.0
  %279 = vmatpush1.msra.mxu0 %v253
  %280 = vmatprep.subr.mxu0 0.0
  %281 = vmatpush1.msra.mxu0 %v254
  %282 = vmatprep.subr.mxu0 0.0
  %283 = vmatpush1.msra.mxu0 %v255
  %284 = vmatprep.subr.mxu0 0.0
  %285 = vmatpush1.msra.mxu0 %v256
  %286 = vmatprep.subr.mxu0 0.0
  %287 = vmatpush1.msra.mxu0 %v257
  %288 = vmatprep.subr.mxu0 0.0
  %289 = vmatpush1.msra.mxu0 %v258
  %290 = vmatprep.subr.mxu0 0.0
  %291 = vmatpush1.msra.mxu0 %v259
  %292 = vmatprep.subr.mxu0 0.0
  %293 = vmatpush1.msra.mxu0 0.0
  %294 = vmatprep.subr.mxu0 0.0
  %295 = vmatpush1.msra.mxu0 0.0
  %296 = vmatprep.subr.mxu0 0.0
  %297 = vmatpush1.msra.mxu0 0.0
  %298 = vmatprep.subr.mxu0 0.0
  %299 = vmatpush1.msra.mxu0 0.0
  %300 = vmatprep.subr.mxu0 0.0
  %301 = vmatpush1.msra.mxu0 0.0
  %302 = vmatprep.subr.mxu0 0.0
  %303 = vmatpush1.msra.mxu0 0.0
  %304 = vmatprep.subr.mxu0 0.0
  %305 = vmatpush1.msra.mxu0 0.0
  %306 = vmatprep.subr.mxu0 0.0
  %307 = vmatpush1.msra.mxu0 0.0
  %308 = vmatprep.subr.mxu0 0.0
  %309 = vmatpush1.msra.mxu0 0.0
  %310 = vmatprep.subr.mxu0 0.0
  %311 = vmatpush1.msra.mxu0 0.0
  %312 = vmatprep.subr.mxu0 0.0
  %313 = vmatpush1.msra.mxu0 0.0
  %314 = vmatprep.subr.mxu0 0.0
  %315 = vmatpush1.msra.mxu0 0.0
  %316 = vmatprep.subr.mxu0 0.0
  %317 = vmatpush1.msra.mxu0 0.0
  %318 = vmatprep.subr.mxu0 0.0
  %319 = vmatpush1.msra.mxu0 0.0
  %320 = vmatprep.subr.mxu0 0.0
  %321 = vmatpush1.msra.mxu0 0.0
  %322 = vmatprep.subr.mxu0 0.0
  %323 = vmatpush1.msra.mxu0 0.0
  %324 = vmatprep.mubr.f32.mxu0 0.0
  %325 = vmatmul.mubr.f32.gmra.mrb[0].mxu0 %v230
  %v326 = vpop.f32.mrb[0].mxu0
  %v327 = vadd.f32 0.0, %v326
  %v328 = vpop.f32.mrb[0].mxu0
  %329 = vdwg.mxu0
  %330 = vmatprep.subr.mxu0 0.0
  %331 = vmatpush1.msra.mxu0 %v244
  %332 = vmatprep.subr.mxu0 0.0
  %333 = vmatpush1.msra.mxu0 %v245
  %334 = vmatprep.subr.mxu0 0.0
  %335 = vmatpush1.msra.mxu0 %v246
  %336 = vmatprep.subr.mxu0 0.0
  %337 = vmatpush1.msra.mxu0 %v247
  %338 = vmatprep.subr.mxu0 0.0
  %339 = vmatpush1.msra.mxu0 %v248
  %340 = vmatprep.subr.mxu0 0.0
  %341 = vmatpush1.msra.mxu0 %v249
  %342 = vmatprep.subr.mxu0 0.0
  %343 = vmatpush1.msra.mxu0 %v250
  %344 = vmatprep.subr.mxu0 0.0
  %345 = vmatpush1.msra.mxu0 %v251
  %346 = vmatprep.subr.mxu0 0.0
  %347 = vmatpush1.msra.mxu0 %v252
  %348 = vmatprep.subr.mxu0 0.0
  %349 = vmatpush1.msra.mxu0 %v253
  %350 = vmatprep.subr.mxu0 0.0
  %351 = vmatpush1.msra.mxu0 %v254
  %352 = vmatprep.subr.mxu0 0.0
  %353 = vmatpush1.msra.mxu0 %v255
  %354 = vmatprep.subr.mxu0 0.0
  %355 = vmatpush1.msra.mxu0 %v256
  %356 = vmatprep.subr.mxu0 0.0
  %357 = vmatpush1.msra.mxu0 %v257
  %358 = vmatprep.subr.mxu0 0.0
  %359 = vmatpush1.msra.mxu0 %v258
  %360 = vmatprep.subr.mxu0 0.0
  %361 = vmatpush1.msra.mxu0 %v259
  %362 = vmatprep.subr.mxu0 0.0
  %363 = vmatpush1.msra.mxu0 0.0
  %364 = vmatprep.subr.mxu0 0.0
  %365 = vmatpush1.msra.mxu0 0.0
  %366 = vmatprep.subr.mxu0 0.0
  %367 = vmatpush1.msra.mxu0 0.0
  %368 = vmatprep.subr.mxu0 0.0
  %369 = vmatpush1.msra.mxu0 0.0
  %370 = vmatprep.subr.mxu0 0.0
  %371 = vmatpush1.msra.mxu0 0.0
  %372 = vmatprep.subr.mxu0 0.0
  %373 = vmatpush1.msra.mxu0 0.0
  %374 = vmatprep.subr.mxu0 0.0
  %375 = vmatpush1.msra.mxu0 0.0
  %376 = vmatprep.subr.mxu0 0.0
  %377 = vmatpush1.msra.mxu0 0.0
  %378 = vmatprep.subr.mxu0 0.0
  %379 = vmatpush1.msra.mxu0 0.0
  %380 = vmatprep.subr.mxu0 0.0
  %381 = vmatpush1.msra.mxu0 0.0
  %382 = vmatprep.subr.mxu0 0.0
  %383 = vmatpush1.msra.mxu0 0.0
  %384 = vmatprep.subr.mxu0 0.0
  %385 = vmatpush1.msra.mxu0 0.0
  %386 = vmatprep.subr.mxu0 0.0
  %387 = vmatpush1.msra.mxu0 0.0
  %388 = vmatprep.subr.mxu0 0.0
  %389 = vmatpush1.msra.mxu0 0.0
  %390 = vmatprep.subr.mxu0 0.0
  %391 = vmatpush1.msra.mxu0 0.0
  %392 = vmatprep.subr.mxu0 0.0
  %393 = vmatpush1.msra.mxu0 0.0
  %394 = vmatprep.mubr.f32.mxu0 0.0
  %395 = vmatmul.mubr.f32.gmra.mrb[0].mxu0 %v243
  %v396 = vpop.f32.mrb[0].mxu0
  %v397 = vadd.f32 0.0, %v396
  %v398 = vpop.f32.mrb[0].mxu0
  %399 = vdwg.mxu0
  %v400 = vmul.f32 %v327, 0.0078125
  %v401 = vmul.f32 %v397, 0.0078125
  %v402 = vmul.f32 %v400, %v400
  %v403 = vsub.f32 %v401, %v402
  %v404 = vmax.f32 %v403, 0.0
  %v405 = vld [vmem:[%s3] sm:$0x1]
  %v406 = vadd.f32 %v404, 1e-05
  %v407 = vrsqrt.pop %v406
  %v408 = vmul.f32 %v405, %v407
  %v409 = vld [vmem:[%s4] sm:$0x1]
  %v410 = vmul.f32 %v400, %v408
  %v411 = vsub.f32 %v409, %v410
  %v413 = vlaneseq
  %v414 = vshrl.u32 %v413, 7
  %v415 = vsub.s32 0, %v414
  %v416 = vrot.slane %v408, %v415
  %v418 = vmul.f32 %v208, %v416
  %v419 = vmul.f32 %v211, %v416
  %v420 = vmul.f32 %v216, %v416
  %v421 = vmul.f32 %v219, %v416
  %v423 = vlaneseq
  %v424 = vshrl.u32 %v423, 7
  %v425 = vsub.s32 0, %v424
  %v426 = vrot.slane %v411, %v425
  %v428 = vadd.f32 %v418, %v426
  %v429 = vadd.f32 %v419, %v426
  %v430 = vadd.f32 %v420, %v426
  %v431 = vadd.f32 %v421, %v426
  %v432 = vmax.f32 %v428, 0.0
  %v433 = vmax.f32 %v429, 0.0
  %v434 = vmax.f32 %v430, 0.0
  %v435 = vmax.f32 %v431, 0.0
  %v436 = vpack.c.bf16 %v433, %v432
  %v437 = vpack.c.bf16 %v435, %v434
  %v440 = vunpack.c.l.b16 %v436
  %v441 = vunpack.c.h.b16 %v436
  %v442 = vunpack.c.l.b16 %v437
  %v443 = vunpack.c.h.b16 %v437
  %v444 = vpack.c.b16 %v440, %v440
  %v445 = vpack.c.b16 %v441, %v441
  %v446 = vpack.c.b16 %v442, %v442
  %v447 = vpack.c.b16 %v443, %v443
  %452 = vst [vmem:[%s5] sm:$0xf] %v444
  %453 = vst [vmem:[%s5 + $0x4] sm:$0xf] %v445
  %454 = vst [vmem:[%s5 + $0x8] sm:$0xf] %v446
  %455 = vst [vmem:[%s5 + $0xc] sm:$0xf] %v447
  // Predicated region
  $region22: #{encoder_decoder_forward.10} parent=0 // pred_check
    _
  $region23: #{encoder_decoder_forward.10} parent=0 // pred_check_branch
    %457 = sbr.rel (0) target = $region25
  $region24: #{encoder_decoder_forward.10} parent=0 // pred_region
    _
  $region25: #{encoder_decoder_forward.10} parent=0 // pred_fallthru
    _
  // Predicated region
  $region26: #{encoder_decoder_forward.10} parent=0 // pred_check
    _
  $region27: #{encoder_decoder_forward.10} parent=0 // pred_check_branch
    %459 = sbr.rel (0) target = $region29
  $region28: #{encoder_decoder_forward.10} parent=0 // pred_region
    _
  $region29: #{encoder_decoder_forward.10} parent=0 // pred_fallthru
    _

// kernel: encoder_decoder_forward.11
$region0: #{encoder_decoder_forward.11}
  #allocation0 [shape = 'u32[]', space=smem, size = 0x4, offset = 0x4, fixed_abs, tag = 'smem constant byte address 0x4 - core index']
  #allocation1 [shape = 'u32[144,128]{1,0:T(1,128)}', space=vmem, size = 0x12000, scoped, tag = 'internal scratch']
  %s0 = inlined_call_operand.vmem [shape: bf16[128,128], index: 0, kind: input, shape index: {}]
  %s1 = inlined_call_operand.vmem [shape: bf16[128,128], index: 1, kind: input, shape index: {}]
  %s2 = inlined_call_operand.vmem [shape: f32[128,128], index: 2, kind: input, shape index: {}]
  %s3 = inlined_call_operand.vmem [shape: f32[1,128], index: 3, kind: input, shape index: {}]
  %s4 = inlined_call_operand.vmem [shape: f32[1,128], index: 4, kind: input, shape index: {}]
  %s5 = inlined_call_operand.vmem [shape: bf16[128,128], index: 5, kind: output, shape index: {}]
  %s6 = sld [smem:[#allocation0]]
  $region30: #{encoder_decoder_forward.11} parent=0
    _
  %s8 = ssub.s32 1, %s6
  %s9 = scalar_select 0, %s8, %s6
  // Predicated region
  $region2: #{encoder_decoder_forward.11} parent=0 // pred_check
    _
  $region3: #{encoder_decoder_forward.11} parent=0 // pred_check_branch
    %11 = sbr.rel (0) target = $region5
  $region4: #{encoder_decoder_forward.11} parent=0 // pred_region
    _
  $region5: #{encoder_decoder_forward.11} parent=0 // pred_fallthru
    _
  // Predicated region
  $region6: #{encoder_decoder_forward.11} parent=0 // pred_check
    _
  $region7: #{encoder_decoder_forward.11} parent=0 // pred_check_branch
    %13 = sbr.rel (0) target = $region9
  $region8: #{encoder_decoder_forward.11} parent=0 // pred_region
    _
  $region9: #{encoder_decoder_forward.11} parent=0 // pred_fallthru
    _
  // Predicated region
  $region10: #{encoder_decoder_forward.11} parent=0 // pred_check
    _
  $region11: #{encoder_decoder_forward.11} parent=0 // pred_check_branch
    %15 = sbr.rel (0) target = $region13
  $region12: #{encoder_decoder_forward.11} parent=0 // pred_region
    _
  $region13: #{encoder_decoder_forward.11} parent=0 // pred_fallthru
    _
  // Predicated region
  $region14: #{encoder_decoder_forward.11} parent=0 // pred_check
    _
  $region15: #{encoder_decoder_forward.11} parent=0 // pred_check_branch
    %17 = sbr.rel (0) target = $region17
  $region16: #{encoder_decoder_forward.11} parent=0 // pred_region
    _
  $region17: #{encoder_decoder_forward.11} parent=0 // pred_fallthru
    _
  // Predicated region
  $region18: #{encoder_decoder_forward.11} parent=0 // pred_check
    _
  $region19: #{encoder_decoder_forward.11} parent=0 // pred_check_branch
    %19 = sbr.rel (0) target = $region21
  $region20: #{encoder_decoder_forward.11} parent=0 // pred_region
    _
  $region21: #{encoder_decoder_forward.11} parent=0 // pred_fallthru
    _
  %v21 = vld [vmem:[%s0] sm:$0xf]
  %v22 = vld [vmem:[%s0 + $0x4] sm:$0xf]
  %v23 = vld [vmem:[%s0 + $0x8] sm:$0xf]
  %v24 = vld [vmem:[%s0 + $0xc] sm:$0xf]
  %v25 = vld [vmem:[%s0 + $0x10] sm:$0xf]
  %v26 = vld [vmem:[%s0 + $0x14] sm:$0xf]
  %v27 = vld [vmem:[%s0 + $0x18] sm:$0xf]
  %v28 = vld [vmem:[%s0 + $0x1c] sm:$0xf]
  %v29 = vld [vmem:[%s0 + $0x20] sm:$0xf]
  %v30 = vld [vmem:[%s0 + $0x24] sm:$0xf]
  %v31 = vld [vmem:[%s0 + $0x28] sm:$0xf]
  %v32 = vld [vmem:[%s0 + $0x2c] sm:$0xf]
  %v33 = vld [vmem:[%s0 + $0x30] sm:$0xf]
  %v34 = vld [vmem:[%s0 + $0x34] sm:$0xf]
  %v35 = vld [vmem:[%s0 + $0x38] sm:$0xf]
  %v36 = vld [vmem:[%s0 + $0x3c] sm:$0xf]
  %v37 = vld [vmem:[%s1] sm:$0xf]
  %v38 = vld [vmem:[%s1 + $0x4] sm:$0xf]
  %v39 = vld [vmem:[%s1 + $0x8] sm:$0xf]
  %v40 = vld [vmem:[%s1 + $0xc] sm:$0xf]
  %v41 = vld [vmem:[%s1 + $0x10] sm:$0xf]
  %v42 = vld [vmem:[%s1 + $0x14] sm:$0xf]
  %v43 = vld [vmem:[%s1 + $0x18] sm:$0xf]
  %v44 = vld [vmem:[%s1 + $0x1c] sm:$0xf]
  %v45 = vld [vmem:[%s1 + $0x20] sm:$0xf]
  %v46 = vld [vmem:[%s1 + $0x24] sm:$0xf]
  %v47 = vld [vmem:[%s1 + $0x28] sm:$0xf]
  %v48 = vld [vmem:[%s1 + $0x2c] sm:$0xf]
  %v49 = vld [vmem:[%s1 + $0x30] sm:$0xf]
  %v50 = vld [vmem:[%s1 + $0x34] sm:$0xf]
  %v51 = vld [vmem:[%s1 + $0x38] sm:$0xf]
  %v52 = vld [vmem:[%s1 + $0x3c] sm:$0xf]
  %v69 = vunpack.c.l.b16 %v21
  %v70 = vunpack.c.l.b16 %v22
  %v71 = vunpack.c.l.b16 %v23
  %v72 = vunpack.c.l.b16 %v24
  %v73 = vunpack.c.l.b16 %v25
  %v74 = vunpack.c.l.b16 %v26
  %v75 = vunpack.c.l.b16 %v27
  %v76 = vunpack.c.l.b16 %v28
  %v77 = vunpack.c.l.b16 %v29
  %v78 = vunpack.c.l.b16 %v30
  %v79 = vunpack.c.l.b16 %v31
  %v80 = vunpack.c.l.b16 %v32
  %v81 = vunpack.c.l.b16 %v33
  %v82 = vunpack.c.l.b16 %v34
  %v83 = vunpack.c.l.b16 %v35
  %v84 = vunpack.c.l.b16 %v36
  %v85 = vpack.c.b16 %v70, %v69
  %v86 = vpack.c.b16 %v72, %v71
  %v87 = vpack.c.b16 %v74, %v73
  %v88 = vpack.c.b16 %v76, %v75
  %v89 = vpack.c.b16 %v78, %v77
  %v90 = vpack.c.b16 %v80, %v79
  %v91 = vpack.c.b16 %v82, %v81
  %v92 = vpack.c.b16 %v84, %v83
  %v117 = vunpack.c.l.b16 %v37
  %v118 = vunpack.c.l.b16 %v38
  %v119 = vunpack.c.l.b16 %v39
  %v120 = vunpack.c.l.b16 %v40
  %v121 = vunpack.c.l.b16 %v41
  %v122 = vunpack.c.l.b16 %v42
  %v123 = vunpack.c.l.b16 %v43
  %v124 = vunpack.c.l.b16 %v44
  %v125 = vunpack.c.l.b16 %v45
  %v126 = vunpack.c.l.b16 %v46
  %v127 = vunpack.c.l.b16 %v47
  %v128 = vunpack.c.l.b16 %v48
  %v129 = vunpack.c.l.b16 %v49
  %v130 = vunpack.c.l.b16 %v50
  %v131 = vunpack.c.l.b16 %v51
  %v132 = vunpack.c.l.b16 %v52
  %v133 = vpack.c.b16 %v118, %v117
  %v134 = vpack.c.b16 %v120, %v119
  %v135 = vpack.c.b16 %v122, %v121
  %v136 = vpack.c.b16 %v124, %v123
  %v137 = vpack.c.b16 %v126, %v125
  %v138 = vpack.c.b16 %v128, %v127
  %v139 = vpack.c.b16 %v130, %v129
  %v140 = vpack.c.b16 %v132, %v131
  %149 = vmatprep.subr.bf16.mxu0 0
  %150 = vmatpush1.bf16.msra.mxu0 %v133
  %151 = vmatprep.subr.bf16.mxu0 0
  %152 = vmatpush1.bf16.msra.mxu0 %v134
  %153 = vmatprep.subr.bf16.mxu0 0
  %154 = vmatpush1.bf16.msra.mxu0 %v135
  %155 = vmatprep.subr.bf16.mxu0 0
  %156 = vmatpush1.bf16.msra.mxu0 %v136
  %157 = vmatprep.subr.bf16.mxu0 0
  %158 = vmatpush1.bf16.msra.mxu0 %v137
  %159 = vmatprep.subr.bf16.mxu0 0
  %160 = vmatpush1.bf16.msra.mxu0 %v138
  %161 = vmatprep.subr.bf16.mxu0 0
  %162 = vmatpush1.bf16.msra.mxu0 %v139
  %163 = vmatprep.subr.bf16.mxu0 0
  %164 = vmatpush1.bf16.msra.mxu0 %v140
  %165 = vmatprep.subr.bf16.mxu0 0
  %166 = vmatpush1.bf16.msra.mxu0 0
  %167 = vmatprep.subr.bf16.mxu0 0
  %168 = vmatpush1.bf16.msra.mxu0 0
  %169 = vmatprep.subr.bf16.mxu0 0
  %170 = vmatpush1.bf16.msra.mxu0 0
  %171 = vmatprep.subr.bf16.mxu0 0
  %172 = vmatpush1.bf16.msra.mxu0 0
  %173 = vmatprep.subr.bf16.mxu0 0
  %174 = vmatpush1.bf16.msra.mxu0 0
  %175 = vmatprep.subr.bf16.mxu0 0
  %176 = vmatpush1.bf16.msra.mxu0 0
  %177 = vmatprep.subr.bf16.mxu0 0
  %178 = vmatpush1.bf16.msra.mxu0 0
  %179 = vmatprep.subr.bf16.mxu0 0
  %180 = vmatpush1.bf16.msra.mxu0 0
  %181 = vmatprep.mubr.bf16.mxu0 0
  %182 = vmatmul.mubr.bf16.gmra.mrb[0].mxu0 %v85
  %v183 = vpop.f32.mrb[0].mxu0
  %v184 = vadd.f32 0.0, %v183
  %v185 = vpop.f32.mrb[0].mxu0
  %v186 = vpop.f32.mrb[0].mxu0
  %v187 = vadd.f32 0.0, %v186
  %v188 = vpop.f32.mrb[0].mxu0
  %189 = vmatprep.mubr.bf16.mxu0 0
  %190 = vmatmul.mubr.bf16.gmra.mrb[0].mxu0 %v86
  %v191 = vpop.f32.mrb[0].mxu0
  %v192 = vadd.f32 0.0, %v191
  %v193 = vpop.f32.mrb[0].mxu0
  %v194 = vpop.f32.mrb[0].mxu0
  %v195 = vadd.f32 0.0, %v194
  %v196 = vpop.f32.mrb[0].mxu0
  %197 = vmatprep.mubr.bf16.mxu0 0
  %198 = vmatmul.mubr.bf16.gmra.mrb[0].mxu0 %v87
  %v199 = vpop.f32.mrb[0].mxu0
  %v200 = vadd.f32 0.0, %v199
  %v201 = vpop.f32.mrb[0].mxu0
  %v202 = vpop.f32.mrb[0].mxu0
  %v203 = vadd.f32 0.0, %v202
  %v204 = vpop.f32.mrb[0].mxu0
  %205 = vmatprep.mubr.bf16.mxu0 0
  %206 = vmatmul.mubr.bf16.gmra.mrb[0].mxu0 %v88
  %v207 = vpop.f32.mrb[0].mxu0
  %v208 = vadd.f32 0.0, %v207
  %v209 = vpop.f32.mrb[0].mxu0
  %v210 = vpop.f32.mrb[0].mxu0
  %v211 = vadd.f32 0.0, %v210
  %v212 = vpop.f32.mrb[0].mxu0
  %213 = vmatprep.mubr.bf16.mxu0 0
  %214 = vmatmul.mubr.bf16.gmra.mrb[0].mxu0 %v89
  %v215 = vpop.f32.mrb[0].mxu0
  %v216 = vadd.f32 0.0, %v215
  %v217 = vpop.f32.mrb[0].mxu0
  %v218 = vpop.f32.mrb[0].mxu0
  %v219 = vadd.f32 0.0, %v218
  %v220 = vpop.f32.mrb[0].mxu0
  %221 = vmatprep.mubr.bf16.mxu0 0
  %222 = vmatmul.mubr.bf16.gmra.mrb[0].mxu0 %v90
  %v223 = vpop.f32.mrb[0].mxu0
  %v224 = vadd.f32 0.0, %v223
  %v225 = vpop.f32.mrb[0].mxu0
  %v226 = vpop.f32.mrb[0].mxu0
  %v227 = vadd.f32 0.0, %v226
  %v228 = vpop.f32.mrb[0].mxu0
  %229 = vmatprep.mubr.bf16.mxu0 0
  %230 = vmatmul.mubr.bf16.gmra.mrb[0].mxu0 %v91
  %v231 = vpop.f32.mrb[0].mxu0
  %v232 = vadd.f32 0.0, %v231
  %v233 = vpop.f32.mrb[0].mxu0
  %v234 = vpop.f32.mrb[0].mxu0
  %v235 = vadd.f32 0.0, %v234
  %v236 = vpop.f32.mrb[0].mxu0
  %237 = vmatprep.mubr.bf16.mxu0 0
  %238 = vmatmul.mubr.bf16.gmra.mrb[0].mxu0 %v92
  %v239 = vpop.f32.mrb[0].mxu0
  %v240 = vadd.f32 0.0, %v239
  %v241 = vpop.f32.mrb[0].mxu0
  %v242 = vpop.f32.mrb[0].mxu0
  %v243 = vadd.f32 0.0, %v242
  %v244 = vpop.f32.mrb[0].mxu0
  %245 = vdwg.mxu0
  %v246 = vadd.f32 %v184, %v187
  %v247 = vadd.f32 %v246, %v192
  %v248 = vadd.f32 %v247, %v195
  %v249 = vadd.f32 %v248, %v200
  %v250 = vadd.f32 %v249, %v203
  %v251 = vadd.f32 %v250, %v208
  %v252 = vadd.f32 %v251, %v211
  %v253 = vadd.f32 %v252, %v216
  %v254 = vadd.f32 %v253, %v219
  %v255 = vadd.f32 %v254, %v224
  %v256 = vadd.f32 %v255, %v227
  %v257 = vadd.f32 %v256, %v232
  %v258 = vadd.f32 %v257, %v235
  %v259 = vadd.f32 %v258, %v240
  %v260 = vadd.f32 %v259, %v243
  %v261 = vrot.slane %v260, 4
  %v262 = vadd.f32 %v260, %v261
  %v263 = vrot.slane %v262, 2
  %v264 = vadd.f32 %v262, %v263
  %v265 = vrot.slane %v264, 1
  %v266 = vadd.f32 %v264, %v265
  %v267 = vmul.f32 %v184, %v184
  %v268 = vmul.f32 %v187, %v187
  %v269 = vmul.f32 %v192, %v192
  %v270 = vmul.f32 %v195, %v195
  %v271 = vmul.f32 %v200, %v200
  %v272 = vmul.f32 %v203, %v203
  %v273 = vmul.f32 %v208, %v208
  %v274 = vmul.f32 %v211, %v211
  %v275 = vmul.f32 %v216, %v216
  %v276 = vmul.f32 %v219, %v219
  %v277 = vmul.f32 %v224, %v224
  %v278 = vmul.f32 %v227, %v227
  %v279 = vmul.f32 %v232, %v232
  %v280 = vmul.f32 %v235, %v235
  %v281 = vmul.f32 %v240, %v240
  %v282 = vmul.f32 %v243, %v243
  %v283 = vadd.f32 %v267, %v268
  %v284 = vadd.f32 %v283, %v269
  %v285 = vadd.f32 %v284, %v270
  %v286 = vadd.f32 %v285, %v271
  %v287 = vadd.f32 %v286, %v272
  %v288 = vadd.f32 %v287, %v273
  %v289 = vadd.f32 %v288, %v274
  %v290 = vadd.f32 %v289, %v275
  %v291 = vadd.f32 %v290, %v276
  %v292 = vadd.f32 %v291, %v277
  %v293 = vadd.f32 %v292, %v278
  %v294 = vadd.f32 %v293, %v279
  %v295 = vadd.f32 %v294, %v280
  %v296 = vadd.f32 %v295, %v281
  %v297 = vadd.f32 %v296, %v282
  %v298 = vrot.slane %v297, 4
  %v299 = vadd.f32 %v297, %v298
  %v300 = vrot.slane %v299, 2
  %v301 = vadd.f32 %v299, %v300
  %v302 = vrot.slane %v301, 1
  %v303 = vadd.f32 %v301, %v302
  %v304 = vld [vmem:[%s2] sm:$0xff]
  %v305 = vld [vmem:[%s2 + $0x8] sm:$0xff]
  %v306 = vld [vmem:[%s2 + $0x10] sm:$0xff]
  %v307 = vld [vmem:[%s2 + $0x18] sm:$0xff]
  %v308 = vld [vmem:[%s2 + $0x20] sm:$0xff]
  %v309 = vld [vmem:[%s2 + $0x28] sm:$0xff]
  %v310 = vld [vmem:[%s2 + $0x30] sm:$0xff]
  %v311 = vld [vmem:[%s2 + $0x38] sm:$0xff]
  %v312 = vld [vmem:[%s2 + $0x40] sm:$0xff]
  %v313 = vld [vmem:[%s2 + $0x48] sm:$0xff]
  %v314 = vld [vmem:[%s2 + $0x50] sm:$0xff]
  %v315 = vld [vmem:[%s2 + $0x58] sm:$0xff]
  %v316 = vld [vmem:[%s2 + $0x60] sm:$0xff]
  %v317 = vld [vmem:[%s2 + $0x68] sm:$0xff]
  %v318 = vld [vmem:[%s2 + $0x70] sm:$0xff]
  %v319 = vld [vmem:[%s2 + $0x78] sm:$0xff]
  %320 = vmatprep.subr.mxu0 0.0
  %321 = vmatpush1.msra.mxu0 %v304
  %322 = vmatprep.subr.mxu0 0.0
  %323 = vmatpush1.msra.mxu0 %v305
  %324 = vmatprep.subr.mxu0 0.0
  %325 = vmatpush1.msra.mxu0 %v306
  %326 = vmatprep.subr.mxu0 0.0
  %327 = vmatpush1.msra.mxu0 %v307
  %328 = vmatprep.subr.mxu0 0.0
  %329 = vmatpush1.msra.mxu0 %v308
  %330 = vmatprep.subr.mxu0 0.0
  %331 = vmatpush1.msra.mxu0 %v309
  %332 = vmatprep.subr.mxu0 0.0
  %333 = vmatpush1.msra.mxu0 %v310
  %334 = vmatprep.subr.mxu0 0.0
  %335 = vmatpush1.msra.mxu0 %v311
  %336 = vmatprep.subr.mxu0 0.0
  %337 = vmatpush1.msra.mxu0 %v312
  %338 = vmatprep.subr.mxu0 0.0
  %339 = vmatpush1.msra.mxu0 %v313
  %340 = vmatprep.subr.mxu0 0.0
  %341 = vmatpush1.msra.mxu0 %v314
  %342 = vmatprep.subr.mxu0 0.0
  %343 = vmatpush1.msra.mxu0 %v315
  %344 = vmatprep.subr.mxu0 0.0
  %345 = vmatpush1.msra.mxu0 %v316
  %346 = vmatprep.subr.mxu0 0.0
  %347 = vmatpush1.msra.mxu0 %v317
  %348 = vmatprep.subr.mxu0 0.0
  %349 = vmatpush1.msra.mxu0 %v318
  %350 = vmatprep.subr.mxu0 0.0
  %351 = vmatpush1.msra.mxu0 %v319
  %352 = vmatprep.subr.mxu0 0.0
  %353 = vmatpush1.msra.mxu0 0.0
  %354 = vmatprep.subr.mxu0 0.0
  %355 = vmatpush1.msra.mxu0 0.0
  %356 = vmatprep.subr.mxu0 0.0
  %357 = vmatpush1.msra.mxu0 0.0
  %358 = vmatprep.subr.mxu0 0.0
  %359 = vmatpush1.msra.mxu0 0.0
  %360 = vmatprep.subr.mxu0 0.0
  %361 = vmatpush1.msra.mxu0 0.0
  %362 = vmatprep.subr.mxu0 0.0
  %363 = vmatpush1.msra.mxu0 0.0
  %364 = vmatprep.subr.mxu0 0.0
  %365 = vmatpush1.msra.mxu0 0.0
  %366 = vmatprep.subr.mxu0 0.0
  %367 = vmatpush1.msra.mxu0 0.0
  %368 = vmatprep.subr.mxu0 0.0
  %369 = vmatpush1.msra.mxu0 0.0
  %370 = vmatprep.subr.mxu0 0.0
  %371 = vmatpush1.msra.mxu0 0.0
  %372 = vmatprep.subr.mxu0 0.0
  %373 = vmatpush1.msra.mxu0 0.0
  %374 = vmatprep.subr.mxu0 0.0
  %375 = vmatpush1.msra.mxu0 0.0
  %376 = vmatprep.subr.mxu0 0.0
  %377 = vmatpush1.msra.mxu0 0.0
  %378 = vmatprep.subr.mxu0 0.0
  %379 = vmatpush1.msra.mxu0 0.0
  %380 = vmatprep.subr.mxu0 0.0
  %381 = vmatpush1.msra.mxu0 0.0
  %382 = vmatprep.subr.mxu0 0.0
  %383 = vmatpush1.msra.mxu0 0.0
  %384 = vmatprep.mubr.f32.mxu0 0.0
  %385 = vmatmul.mubr.f32.gmra.mrb[0].mxu0 %v266
  %v386 = vpop.f32.mrb[0].mxu0
  %v387 = vadd.f32 0.0, %v386
  %v388 = vpop.f32.mrb[0].mxu0
  %389 = vdwg.mxu0
  %390 = vmatprep.subr.mxu0 0.0
  %391 = vmatpush1.msra.mxu0 %v304
  %392 = vmatprep.subr.mxu0 0.0
  %393 = vmatpush1.msra.mxu0 %v305
  %394 = vmatprep.subr.mxu0 0.0
  %395 = vmatpush1.msra.mxu0 %v306
  %396 = vmatprep.subr.mxu0 0.0
  %397 = vmatpush1.msra.mxu0 %v307
  %398 = vmatprep.subr.mxu0 0.0
  %399 = vmatpush1.msra.mxu0 %v308
  %400 = vmatprep.subr.mxu0 0.0
  %401 = vmatpush1.msra.mxu0 %v309
  %402 = vmatprep.subr.mxu0 0.0
  %403 = vmatpush1.msra.mxu0 %v310
  %404 = vmatprep.subr.mxu0 0.0
  %405 = vmatpush1.msra.mxu0 %v311
  %406 = vmatprep.subr.mxu0 0.0
  %407 = vmatpush1.msra.mxu0 %v312
  %408 = vmatprep.subr.mxu0 0.0
  %409 = vmatpush1.msra.mxu0 %v313
  %410 = vmatprep.subr.mxu0 0.0
  %411 = vmatpush1.msra.mxu0 %v314
  %412 = vmatprep.subr.mxu0 0.0
  %413 = vmatpush1.msra.mxu0 %v315
  %414 = vmatprep.subr.mxu0 0.0
  %415 = vmatpush1.msra.mxu0 %v316
  %416 = vmatprep.subr.mxu0 0.0
  %417 = vmatpush1.msra.mxu0 %v317
  %418 = vmatprep.subr.mxu0 0.0
  %419 = vmatpush1.msra.mxu0 %v318
  %420 = vmatprep.subr.mxu0 0.0
  %421 = vmatpush1.msra.mxu0 %v319
  %422 = vmatprep.subr.mxu0 0.0
  %423 = vmatpush1.msra.mxu0 0.0
  %424 = vmatprep.subr.mxu0 0.0
  %425 = vmatpush1.msra.mxu0 0.0
  %426 = vmatprep.subr.mxu0 0.0
  %427 = vmatpush1.msra.mxu0 0.0
  %428 = vmatprep.subr.mxu0 0.0
  %429 = vmatpush1.msra.mxu0 0.0
  %430 = vmatprep.subr.mxu0 0.0
  %431 = vmatpush1.msra.mxu0 0.0
  %432 = vmatprep.subr.mxu0 0.0
  %433 = vmatpush1.msra.mxu0 0.0
  %434 = vmatprep.subr.mxu0 0.0
  %435 = vmatpush1.msra.mxu0 0.0
  %436 = vmatprep.subr.mxu0 0.0
  %437 = vmatpush1.msra.mxu0 0.0
  %438 = vmatprep.subr.mxu0 0.0
  %439 = vmatpush1.msra.mxu0 0.0
  %440 = vmatprep.subr.mxu0 0.0
  %441 = vmatpush1.msra.mxu0 0.0
  %442 = vmatprep.subr.mxu0 0.0
  %443 = vmatpush1.msra.mxu0 0.0
  %444 = vmatprep.subr.mxu0 0.0
  %445 = vmatpush1.msra.mxu0 0.0
  %446 = vmatprep.subr.mxu0 0.0
  %447 = vmatpush1.msra.mxu0 0.0
  %448 = vmatprep.subr.mxu0 0.0
  %449 = vmatpush1.msra.mxu0 0.0
  %450 = vmatprep.subr.mxu0 0.0
  %451 = vmatpush1.msra.mxu0 0.0
  %452 = vmatprep.subr.mxu0 0.0
  %453 = vmatpush1.msra.mxu0 0.0
  %454 = vmatprep.mubr.f32.mxu0 0.0
  %455 = vmatmul.mubr.f32.gmra.mrb[0].mxu0 %v303
  %v456 = vpop.f32.mrb[0].mxu0
  %v457 = vadd.f32 0.0, %v456
  %v458 = vpop.f32.mrb[0].mxu0
  %459 = vdwg.mxu0
  %v460 = vmul.f32 %v387, 0.001953125
  %v461 = vmul.f32 %v457, 0.001953125
  %v462 = vmul.f32 %v460, %v460
  %v463 = vsub.f32 %v461, %v462
  %v464 = vmax.f32 %v463, 0.0
  %v465 = vld [vmem:[%s3] sm:$0x1]
  %v466 = vadd.f32 %v464, 1e-05
  %v467 = vrsqrt.pop %v466
  %v468 = vmul.f32 %v465, %v467
  %v469 = vld [vmem:[%s4] sm:$0x1]
  %v470 = vmul.f32 %v460, %v468
  %v471 = vsub.f32 %v469, %v470
  %v473 = vlaneseq
  %v474 = vshrl.u32 %v473, 7
  %v475 = vsub.s32 0, %v474
  %v476 = vrot.slane %v468, %v475
  %v478 = vmul.f32 %v184, %v476
  %v479 = vmul.f32 %v187, %v476
  %v480 = vmul.f32 %v192, %v476
  %v481 = vmul.f32 %v195, %v476
  %v482 = vmul.f32 %v200, %v476
  %v483 = vmul.f32 %v203, %v476
  %v484 = vmul.f32 %v208, %v476
  %v485 = vmul.f32 %v211, %v476
  %v486 = vmul.f32 %v216, %v476
  %v487 = vmul.f32 %v219, %v476
  %v488 = vmul.f32 %v224, %v476
  %v489 = vmul.f32 %v227, %v476
  %v490 = vmul.f32 %v232, %v476
  %v491 = vmul.f32 %v235, %v476
  %v492 = vmul.f32 %v240, %v476
  %v493 = vmul.f32 %v243, %v476
  %v495 = vlaneseq
  %v496 = vshrl.u32 %v495, 7
  %v497 = vsub.s32 0, %v496
  %v498 = vrot.slane %v471, %v497
  %v500 = vadd.f32 %v478, %v498
  %v501 = vadd.f32 %v479, %v498
  %v502 = vadd.f32 %v480, %v498
  %v503 = vadd.f32 %v481, %v498
  %v504 = vadd.f32 %v482, %v498
  %v505 = vadd.f32 %v483, %v498
  %v506 = vadd.f32 %v484, %v498
  %v507 = vadd.f32 %v485, %v498
  %v508 = vadd.f32 %v486, %v498
  %v509 = vadd.f32 %v487, %v498
  %v510 = vadd.f32 %v488, %v498
  %v511 = vadd.f32 %v489, %v498
  %v512 = vadd.f32 %v490, %v498
  %v513 = vadd.f32 %v491, %v498
  %v514 = vadd.f32 %v492, %v498
  %v515 = vadd.f32 %v493, %v498
  %v516 = vxor.u32 %v500, 2147483648
  %v517 = vxor.u32 %v501, 2147483648
  %v518 = vxor.u32 %v502, 2147483648
  %v519 = vxor.u32 %v503, 2147483648
  %v520 = vxor.u32 %v504, 2147483648
  %v521 = vxor.u32 %v505, 2147483648
  %v522 = vxor.u32 %v506, 2147483648
  %v523 = vxor.u32 %v507, 2147483648
  %v524 = vxor.u32 %v508, 2147483648
  %v525 = vxor.u32 %v509, 2147483648
  %v526 = vxor.u32 %v510, 2147483648
  %v527 = vxor.u32 %v511, 2147483648
  %v528 = vxor.u32 %v512, 2147483648
  %v529 = vxor.u32 %v513, 2147483648
  %v530 = vxor.u32 %v514, 2147483648
  %v531 = vxor.u32 %v515, 2147483648
  %v532 = vmul.f32 %v516, 1.442695
  %v533 = vpow.pop %v532
  %v534 = vmul.f32 %v517, 1.442695
  %v535 = vpow.pop %v534
  %v536 = vmul.f32 %v518, 1.442695
  %v537 = vpow.pop %v536
  %v538 = vmul.f32 %v519, 1.442695
  %v539 = vpow.pop %v538
  %v540 = vmul.f32 %v520, 1.442695
  %v541 = vpow.pop %v540
  %v542 = vmul.f32 %v521, 1.442695
  %v543 = vpow.pop %v542
  %v544 = vmul.f32 %v522, 1.442695
  %v545 = vpow.pop %v544
  %v546 = vmul.f32 %v523, 1.442695
  %v547 = vpow.pop %v546
  %v548 = vmul.f32 %v524, 1.442695
  %v549 = vpow.pop %v548
  %v550 = vmul.f32 %v525, 1.442695
  %v551 = vpow.pop %v550
  %v552 = vmul.f32 %v526, 1.442695
  %v553 = vpow.pop %v552
  %v554 = vmul.f32 %v527, 1.442695
  %v555 = vpow.pop %v554
  %v556 = vmul.f32 %v528, 1.442695
  %v557 = vpow.pop %v556
  %v558 = vmul.f32 %v529, 1.442695
  %v559 = vpow.pop %v558
  %v560 = vmul.f32 %v530, 1.442695
  %v561 = vpow.pop %v560
  %v562 = vmul.f32 %v531, 1.442695
  %v563 = vpow.pop %v562
  %v564 = vadd.f32 %v533, 1.0
  %v565 = vadd.f32 %v535, 1.0
  %v566 = vadd.f32 %v537, 1.0
  %v567 = vadd.f32 %v539, 1.0
  %v568 = vadd.f32 %v541, 1.0
  %v569 = vadd.f32 %v543, 1.0
  %v570 = vadd.f32 %v545, 1.0
  %v571 = vadd.f32 %v547, 1.0
  %v572 = vadd.f32 %v549, 1.0
  %v573 = vadd.f32 %v551, 1.0
  %v574 = vadd.f32 %v553, 1.0
  %v575 = vadd.f32 %v555, 1.0
  %v576 = vadd.f32 %v557, 1.0
  %v577 = vadd.f32 %v559, 1.0
  %v578 = vadd.f32 %v561, 1.0
  %v579 = vadd.f32 %v563, 1.0
  %v580 = vrcp.pop %v564
  %v581 = vmul.f32 1.0, %v580
  %v582 = vrcp.pop %v565
  %v583 = vmul.f32 1.0, %v582
  %v584 = vrcp.pop %v566
  %v585 = vmul.f32 1.0, %v584
  %v586 = vrcp.pop %v567
  %v587 = vmul.f32 1.0, %v586
  %v588 = vrcp.pop %v568
  %v589 = vmul.f32 1.0, %v588
  %v590 = vrcp.pop %v569
  %v591 = vmul.f32 1.0, %v590
  %v592 = vrcp.pop %v570
  %v593 = vmul.f32 1.0, %v592
  %v594 = vrcp.pop %v571
  %v595 = vmul.f32 1.0, %v594
  %v596 = vrcp.pop %v572
  %v597 = vmul.f32 1.0, %v596
  %v598 = vrcp.pop %v573
  %v599 = vmul.f32 1.0, %v598
  %v600 = vrcp.pop %v574
  %v601 = vmul.f32 1.0, %v600
  %v602 = vrcp.pop %v575
  %v603 = vmul.f32 1.0, %v602
  %v604 = vrcp.pop %v576
  %v605 = vmul.f32 1.0, %v604
  %v606 = vrcp.pop %v577
  %v607 = vmul.f32 1.0, %v606
  %v608 = vrcp.pop %v578
  %v609 = vmul.f32 1.0, %v608
  %v610 = vrcp.pop %v579
  %v611 = vmul.f32 1.0, %v610
  %v612 = vpack.c.bf16 %v583, %v581
  %v613 = vpack.c.bf16 %v587, %v585
  %v614 = vpack.c.bf16 %v591, %v589
  %v615 = vpack.c.bf16 %v595, %v593
  %v616 = vpack.c.bf16 %v599, %v597
  %v617 = vpack.c.bf16 %v603, %v601
  %v618 = vpack.c.bf16 %v607, %v605
  %v619 = vpack.c.bf16 %v611, %v609
  %v628 = vunpack.c.l.b16 %v612
  %v629 = vunpack.c.h.b16 %v612
  %v630 = vunpack.c.l.b16 %v613
  %v631 = vunpack.c.h.b16 %v613
  %v632 = vunpack.c.l.b16 %v614
  %v633 = vunpack.c.h.b16 %v614
  %v634 = vunpack.c.l.b16 %v615
  %v635 = vunpack.c.h.b16 %v615
  %v636 = vunpack.c.l.b16 %v616
  %v637 = vunpack.c.h.b16 %v616
  %v638 = vunpack.c.l.b16 %v617
  %v639 = vunpack.c.h.b16 %v617
  %v640 = vunpack.c.l.b16 %v618
  %v641 = vunpack.c.h.b16 %v618
  %v642 = vunpack.c.l.b16 %v619
  %v643 = vunpack.c.h.b16 %v619
  %v644 = vpack.c.b16 %v628, %v628
  %v645 = vpack.c.b16 %v629, %v629
  %v646 = vpack.c.b16 %v630, %v630
  %v647 = vpack.c.b16 %v631, %v631
  %v648 = vpack.c.b16 %v632, %v632
  %v649 = vpack.c.b16 %v633, %v633
  %v650 = vpack.c.b16 %v634, %v634
  %v651 = vpack.c.b16 %v635, %v635
  %v652 = vpack.c.b16 %v636, %v636
  %v653 = vpack.c.b16 %v637, %v637
  %v654 = vpack.c.b16 %v638, %v638
  %v655 = vpack.c.b16 %v639, %v639
  %v656 = vpack.c.b16 %v640, %v640
  %v657 = vpack.c.b16 %v641, %v641
  %v658 = vpack.c.b16 %v642, %v642
  %v659 = vpack.c.b16 %v643, %v643
  %676 = vst [vmem:[%s5] sm:$0xf] %v644
  %677 = vst [vmem:[%s5 + $0x4] sm:$0xf] %v645
  %678 = vst [vmem:[%s5 + $0x8] sm:$0xf] %v646
  %679 = vst [vmem:[%s5 + $0xc] sm:$0xf] %v647
  %680 = vst [vmem:[%s5 + $0x10] sm:$0xf] %v648
  %681 = vst [vmem:[%s5 + $0x14] sm:$0xf] %v649
  %682 = vst [vmem:[%s5 + $0x18] sm:$0xf] %v650
  %683 = vst [vmem:[%s5 + $0x1c] sm:$0xf] %v651
  %684 = vst [vmem:[%s5 + $0x20] sm:$0xf] %v652
  %685 = vst [vmem:[%s5 + $0x24] sm:$0xf] %v653
  %686 = vst [vmem:[%s5 + $0x28] sm:$0xf] %v654
  %687 = vst [vmem:[%s5 + $0x2c] sm:$0xf] %v655
  %688 = vst [vmem:[%s5 + $0x30] sm:$0xf] %v656
  %689 = vst [vmem:[%s5 + $0x34] sm:$0xf] %v657
  %690 = vst [vmem:[%s5 + $0x38] sm:$0xf] %v658
  %691 = vst [vmem:[%s5 + $0x3c] sm:$0xf] %v659
  // Predicated region
  $region22: #{encoder_decoder_forward.11} parent=0 // pred_check
    _
  $region23: #{encoder_decoder_forward.11} parent=0 // pred_check_branch
    %693 = sbr.rel (0) target = $region25
  $region24: #{encoder_decoder_forward.11} parent=0 // pred_region
    _
  $region25: #{encoder_decoder_forward.11} parent=0 // pred_fallthru
    _
  // Predicated region
  $region26: #{encoder_decoder_forward.11} parent=0 // pred_check
    _
  $region27: #{encoder_decoder_forward.11} parent=0 // pred_check_branch
    %695 = sbr.rel (0) target = $region29
  $region28: #{encoder_decoder_forward.11} parent=0 // pred_region
    _
  $region29: #{encoder_decoder_forward.11} parent=0 // pred_fallthru
    _

</llo_original>
